<compile_context>
chip_gen: v7x
topology: tpu7x:2x2x1
jax: 0.10.0
libtpu: 0.0.40
codegen_flags: <defaults>
</compile_context>

<pallas_src>
import math

import jax
import jax.numpy as jnp
from jax.experimental import pallas as pl
from jax.experimental.pallas import tpu as pltpu


def _round_up(x, m):
    return ((x + m - 1) // m) * m


def _block_diag(blocks):
    rows = sum(b.shape[0] for b in blocks)
    cols = sum(b.shape[1] for b in blocks)
    out = jnp.zeros((rows, cols), blocks[0].dtype)
    r = c = 0
    for b in blocks:
        out = out.at[r:r + b.shape[0], c:c + b.shape[1]].set(b)
        r += b.shape[0]
        c += b.shape[1]
    return out


def _pad_cols(a, to):
    return jnp.pad(a, ((0, 0), (0, to - a.shape[1])))


def _pad_rows(a, to):
    return jnp.pad(a, ((0, to - a.shape[0]), (0, 0)))


def make_params(key, k, num_points):
    """Deterministic init (PyTorch-style uniform(+-1/sqrt(fan_in)); BN/LN gamma=1, beta=0)."""
    def u(kk_, shape, fan_in):
        bound = 1.0 / math.sqrt(fan_in)
        return jax.random.uniform(kk_, shape, jnp.float32, -bound, bound)

    keys = iter(jax.random.split(key, 64))
    p = {}
    # 3 per-group PointNets: per-point MLP 5 -> 64 -> 128 -> k (rows 3/4 of layer 1 see mask==1)
    p["pn_w1"] = u(next(keys), (3, 5, 64), 5);       p["pn_b1"] = u(next(keys), (3, 64), 5)
    p["pn_w2"] = u(next(keys), (3, 64, 128), 64);    p["pn_b2"] = u(next(keys), (3, 128), 64)
    p["pn_w3"] = u(next(keys), (3, 128, k), 128);    p["pn_b3"] = u(next(keys), (3, k), 128)
    # state MLP 128 -> k
    p["st_w"] = u(next(keys), (128, k), 128);        p["st_b"] = u(next(keys), (1, k), 128)
    # transformer (q, k, v, o projections)
    p["wq"] = u(next(keys), (k, k), k); p["bq"] = u(next(keys), (1, k), k)
    p["wk"] = u(next(keys), (k, k), k); p["bk"] = u(next(keys), (1, k), k)
    p["wv"] = u(next(keys), (k, k), k); p["bv"] = u(next(keys), (1, k), k)
    p["wo"] = u(next(keys), (k, k), k); p["bo"] = u(next(keys), (1, k), k)
    p["ln1_g"] = jnp.ones((1, k), jnp.float32);      p["ln1_b"] = jnp.zeros((1, k), jnp.float32)
    p["ffn_w1"] = u(next(keys), (k, 2 * k), k);      p["ffn_b1"] = u(next(keys), (1, 2 * k), k)
    p["ffn_w2"] = u(next(keys), (2 * k, k), 2 * k);  p["ffn_b2"] = u(next(keys), (1, k), 2 * k)
    p["ln2_g"] = jnp.ones((1, k), jnp.float32);      p["ln2_b"] = jnp.zeros((1, k), jnp.float32)
    # global MLP k -> k
    p["gm_w"] = u(next(keys), (k, k), k);            p["gm_b"] = u(next(keys), (1, k), k)
    # decoder: Conv1d(k,256,bias=False) + BN + ReLU + Conv1d(256,256,bias=False) + BN + ReLU + Conv1d(256,3N)
    p["dec_w1"] = u(next(keys), (k, 256), k)
    p["bn1_g"] = jnp.ones((1, 256), jnp.float32);    p["bn1_b"] = jnp.zeros((1, 256), jnp.float32)
    p["bn1_m"] = jnp.zeros((1, 256), jnp.float32);   p["bn1_v"] = jnp.ones((1, 256), jnp.float32)
    p["dec_w2"] = u(next(keys), (256, 256), 256)
    p["bn2_g"] = jnp.ones((1, 256), jnp.float32);    p["bn2_b"] = jnp.zeros((1, 256), jnp.float32)
    p["bn2_m"] = jnp.zeros((1, 256), jnp.float32);   p["bn2_v"] = jnp.ones((1, 256), jnp.float32)
    p["dec_w3"] = u(next(keys), (256, 3 * num_points), 256)
    p["dec_b3"] = u(next(keys), (1, 3 * num_points), 256)
    return p


def autoencoder_transpn_forward(x, params):
    """x: [B, 3, num_points] float32 (PyTorch NCW). Returns (encoding [B,k,1], restoration [B,3,N])."""
    B, three, N = x.shape
    assert three == 3
    k = int(params["gm_w"].shape[0])
    k3 = 3 * k
    f32, bf16 = jnp.float32, jnp.bfloat16

    K_PAD = _round_up(k, 128)
    R_PAD = _round_up(3 * N, 128)
    TN = min(1024, _round_up(N, 128))      # point tile on the lane axis; ragged tail masked in-kernel
    NT = pl.cdiv(N, TN)

    # ---------------- fused backbone weights (transposed for points-on-lanes layout) ----------------
    # layer 1: xyz rows of each group's [5, 64] weight; mask rows fold into the bias (mask == 1)
    w1t = jnp.concatenate([params["pn_w1"][g][0:3].T for g in range(3)], axis=0)           # [192, 3]
    b1eff = jnp.concatenate(
        [params["pn_b1"][g] + params["pn_w1"][g][3] + params["pn_w1"][g][4] for g in range(3)],
        axis=0)                                                                             # [192]
    w1aug = jnp.concatenate([w1t, b1eff[:, None]], axis=1).astype(f32)                      # [192, 4]
    w2t = _block_diag([params["pn_w2"][g].T for g in range(3)]).astype(bf16)                # [384, 192]
    w3t = _block_diag([params["pn_w3"][g].T for g in range(3)]).astype(bf16)                # [3k, 384]
    b23 = jnp.concatenate([params["pn_b2"].reshape(-1),
                           params["pn_b3"].reshape(-1)])[:, None].astype(f32)               # [384+3k, 1]

    # state token: data['state'] is hard-coded to ones -> identical row for every batch element
    st_tok = jnp.maximum(jnp.ones((1, 128), f32) @ params["st_w"] + params["st_b"], 0.0)    # [1, k]

    # transformer weights: fused QKV, bf16 matmul operands, f32 biases
    wqkv = jnp.concatenate([params["wq"], params["wk"], params["wv"]], axis=1).astype(bf16)  # [k, 3k]
    bqkv = jnp.concatenate([params["bq"], params["bk"], params["bv"]], axis=1).astype(f32)   # [1, 3k]
    wo_bf = params["wo"].astype(bf16)
    ffn_w1_bf = params["ffn_w1"].astype(bf16)
    ffn_w2_bf = params["ffn_w2"].astype(bf16)
    ffn_b1 = params["ffn_b1"].astype(f32)
    gm_w_p = _pad_cols(params["gm_w"], K_PAD).astype(bf16)                                   # [k, K_PAD]

    # coalesce the tiny [1, c] rows (+ the state token) into one lane-dense [8, K_PAD] slab
    def padk(r):
        return jnp.pad(r, ((0, 0), (0, K_PAD - r.shape[1])))
    rowcat = jnp.concatenate(
        [padk(st_tok), padk(params["bo"]), padk(params["ln1_g"]), padk(params["ln1_b"]),
         padk(params["ffn_b2"]), padk(params["ln2_g"]), padk(params["ln2_b"]),
         padk(params["gm_b"])], axis=0).astype(f32)                                          # [8, K_PAD]

    # decoder weights (eval-mode BN folded: scale into 1x1-conv columns, shift kept as a bias row)
    eps = 1e-5
    s1 = params["bn1_g"] * jax.lax.rsqrt(params["bn1_v"] + eps)
    sh1 = params["bn1_b"] - params["bn1_m"] * s1
    s2 = params["bn2_g"] * jax.lax.rsqrt(params["bn2_v"] + eps)
    sh2 = params["bn2_b"] - params["bn2_m"] * s2
    dec_w1s = _pad_rows(params["dec_w1"] * s1, K_PAD).astype(bf16)                           # [K_PAD, 256]
    dec_w2s = (params["dec_w2"] * s2).astype(bf16)                                           # [256, 256]
    bn_shift = jnp.concatenate([sh1, sh2], axis=0).astype(f32)                               # [2, 256]
    dec_w3_p = _pad_cols(params["dec_w3"], R_PAD).astype(bf16)                               # [256, R_PAD]
    dec_b3_p = _pad_cols(params["dec_b3"], R_PAD).astype(f32)                                # [1, R_PAD]

    # ---------------------------------- kernel 1: backbone ------------------------------------------
    def backbone_kernel(pc_ref, w1aug_ref, w2t_ref, w3t_ref, b23_ref,
                        wqkv_ref, bqkv_ref, wo_ref, ffn_w1_ref, ffn_b1_ref,
                        ffn_w2_ref, gm_w_ref, rows_ref, enc_ref, acc_ref):
        n_idx = pl.program_id(1)
        n_last = pl.num_programs(1) - 1

        # ---- fused per-point MLP on this tile; points on lanes -> [C, TN] activations ----
        xpts = pc_ref[0]                                          # [3, TN] f32
        w1a = w1aug_ref[...]                                      # [192, 4] = [W1t | b1(+mask rows)]
        h = (w1a[:, 0:1] * xpts[0:1, :] + w1a[:, 1:2] * xpts[1:2, :]
             + w1a[:, 2:3] * xpts[2:3, :] + w1a[:, 3:4])          # layer 1 on the VPU, f32
        h = jnp.maximum(h, 0.0).astype(bf16)                      # [192, TN]
        h = jnp.dot(w2t_ref[...], h, preferred_element_type=f32) + b23_ref[0:384, :]
        h = jnp.maximum(h, 0.0).astype(bf16)                      # [384, TN]
        h = jnp.dot(w3t_ref[...], h, preferred_element_type=f32) + b23_ref[384:384 + k3, :]

        # ragged last tile: ignore out-of-range point columns, then max-pool over points (lanes)
        lane = jax.lax.broadcasted_iota(jnp.int32, (1, TN), 1)
        valid = (n_idx * TN + lane) < N
        tile_max = jnp.max(jnp.where(valid, h, -1e30), axis=1, keepdims=True)   # [3k, 1]

        @pl.when(n_idx == 0)
        def _():
            acc_ref[...] = jnp.full(acc_ref.shape, -1e30, f32)

        acc_ref[...] = jnp.maximum(acc_ref[...], tile_max)

        # ---- transformer over 4 tokens + global head: only on the last point tile ----
        @pl.when(n_idx == n_last)
        def _():
            pooled_col = acc_ref[...]                             # [3k, 1]
            # column -> row without an explicit transpose: diagonal select + sublane reduce
            rid = jax.lax.broadcasted_iota(jnp.int32, (k3, k3), 0)
            cid = jax.lax.broadcasted_iota(jnp.int32, (k3, k3), 1)
            pooled = jnp.sum(jnp.where(rid == cid, pooled_col, 0.0),
                             axis=0, keepdims=True)               # [1, 3k]

            rows = rows_ref[...]                                  # [8, K_PAD]
            st = rows[0:1, 0:k]                                   # precomputed state token
            toks = jnp.concatenate(
                [st, pooled[:, 0:k], pooled[:, k:2 * k], pooled[:, 2 * k:3 * k]], axis=0)  # [4, k]

            def layer_norm(t, g, b):
                mu = jnp.mean(t, axis=-1, keepdims=True)
                var = jnp.mean(jnp.square(t - mu), axis=-1, keepdims=True)
                return (t - mu) * jax.lax.rsqrt(var + 1e-5) * g + b

            # single-head attention with fused QKV projection
            qkv = jnp.dot(toks.astype(bf16), wqkv_ref[...],
                          preferred_element_type=f32) + bqkv_ref[...]
            q, kk, v = qkv[:, 0:k], qkv[:, k:2 * k], qkv[:, 2 * k:3 * k]
            scores = jnp.einsum("td,sd->ts", q, kk,
                                preferred_element_type=f32) * (1.0 / math.sqrt(k))
            scores = scores - jnp.max(scores, axis=-1, keepdims=True)
            p = jnp.exp(scores)
            p = p / jnp.sum(p, axis=-1, keepdims=True)
            att = jnp.dot(p, v, preferred_element_type=f32)
            att = jnp.dot(att.astype(bf16), wo_ref[...],
                          preferred_element_type=f32) + rows[1:2, 0:k]

            xt = layer_norm(toks + att, rows[2:3, 0:k], rows[3:4, 0:k])
            ff = jnp.maximum(
                jnp.dot(xt.astype(bf16), ffn_w1_ref[...],
                        preferred_element_type=f32) + ffn_b1_ref[...], 0.0)
            ff = jnp.dot(ff.astype(bf16), ffn_w2_ref[...],
                         preferred_element_type=f32) + rows[4:5, 0:k]
            xt = layer_norm(xt + ff, rows[5:6, 0:k], rows[6:7, 0:k])

            gfeat = jnp.max(xt, axis=0, keepdims=True)            # pool tokens -> [1, k]
            enc = jnp.dot(gfeat.astype(bf16), gm_w_ref[...],
                          preferred_element_type=f32) + rows[7:8, :]
            enc_ref[...] = enc[None].astype(enc_ref.dtype)        # [1, 1, K_PAD] lane-dense store

    weight_args = (w1aug, w2t, w3t, b23, wqkv, bqkv, wo_bf, ffn_w1_bf, ffn_b1,
                   ffn_w2_bf, gm_w_p, rowcat)
    const2 = lambda b, n: (0, 0)
    grid_spec = pltpu.PrefetchScalarGridSpec(
        num_scalar_prefetch=0,
        grid=(B, NT),
        in_specs=[pl.BlockSpec((1, 3, TN), lambda b, n: (b, 0, n))]
                 + [pl.BlockSpec(w.shape, const2) for w in weight_args],
        out_specs=pl.BlockSpec((1, 1, K_PAD), lambda b, n: (b, 0, 0)),
        scratch_shapes=[pltpu.VMEM((k3, 1), f32)],
    )
    enc_pad = pl.pallas_call(
        backbone_kernel,
        out_shape=jax.ShapeDtypeStruct((B, 1, K_PAD), f32),
        grid_spec=grid_spec,
        compiler_params=pltpu.CompilerParams(
            dimension_semantics=("parallel", "arbitrary"),
            vmem_limit_bytes=48 * 1024 * 1024,
        ),
    )(x.astype(f32), *weight_args)

    # ------------------- kernel 2: decoder (streams dec_w3 in column tiles) -------------------------
    TR = min(1024, R_PAD)
    RT = pl.cdiv(R_PAD, TR)

    def decoder_kernel(enc_ref, w1_ref, shift_ref, w2_ref, w3_ref, b3_ref, out_ref):
        enc = enc_ref[...][:, 0, :]                               # [B, K_PAD] f32
        # first two (tiny) layers recomputed per r-tile; cost is negligible vs. the wide final matmul
        h = jnp.dot(enc.astype(bf16), w1_ref[...], preferred_element_type=f32)
        h = jnp.maximum(h + shift_ref[0:1, :], 0.0)               # BN1 (eval) folded into w1 / shift
        h = jnp.dot(h.astype(bf16), w2_ref[...], preferred_element_type=f32)
        h = jnp.maximum(h + shift_ref[1:2, :], 0.0)               # BN2 (eval) folded into w2 / shift
        r = jnp.dot(h.astype(bf16), w3_ref[...], preferred_element_type=f32) + b3_ref[...]
        out_ref[...] = r.astype(out_ref.dtype)                    # [B, TR] lane-dense store

    rest = pl.pallas_call(
        decoder_kernel,
        out_shape=jax.ShapeDtypeStruct((B, R_PAD), f32),
        grid=(RT,),
        in_specs=[
            pl.BlockSpec((B, 1, K_PAD), lambda r: (0, 0, 0)),
            pl.BlockSpec(dec_w1s.shape, lambda r: (0, 0)),
            pl.BlockSpec(bn_shift.shape, lambda r: (0, 0)),
            pl.BlockSpec(dec_w2s.shape, lambda r: (0, 0)),
            pl.BlockSpec((256, TR), lambda r: (0, r)),
            pl.BlockSpec((1, TR), lambda r: (0, r)),
        ],
        out_specs=pl.BlockSpec((B, TR), lambda r: (0, r)),
        compiler_params=pltpu.CompilerParams(dimension_semantics=("parallel",)),
    )(enc_pad, dec_w1s, bn_shift, dec_w2s, dec_w3_p, dec_b3_p)

    encoding = enc_pad[:, 0, :k][:, :, None]                      # .unsqueeze(2) -> [B, k, 1]
    restoration = rest[:, :3 * N].reshape(B, 3, N)                # .view(b, 3, num_points)
    return encoding, restoration


if __name__ == "__main__":
    key = jax.random.PRNGKey(0)
    k_dim, num_points, batch = 32, 16, 2
    pkey, xkey = jax.random.split(key)
    params = make_params(pkey, k_dim, num_points)
    x = jax.random.normal(xkey, (batch, 3, num_points), jnp.float32)

    fwd = jax.jit(autoencoder_transpn_forward)
    encoding, restoration = fwd(x, params)
    jax.block_until_ready((encoding, restoration))

    assert encoding.shape == (batch, k_dim, 1)
    assert restoration.shape == (batch, 3, num_points)
    assert bool(jnp.all(jnp.isfinite(encoding))) and bool(jnp.all(jnp.isfinite(restoration)))
    print("KERNEL_OK")
</pallas_src>

<mosaic_0001>
module attributes {stable_mosaic.version = 11 : i64} {
  func.func @backbone_kernel(%arg0: i32, %arg1: i32, %arg2: memref<1x3x128xf32, #tpu.memory_space<vmem>>, %arg3: memref<192x4xf32, #tpu.memory_space<vmem>>, %arg4: memref<384x192xbf16, #tpu.memory_space<vmem>>, %arg5: memref<96x384xbf16, #tpu.memory_space<vmem>>, %arg6: memref<480x1xf32, #tpu.memory_space<vmem>>, %arg7: memref<32x96xbf16, #tpu.memory_space<vmem>>, %arg8: memref<1x96xf32, #tpu.memory_space<vmem>>, %arg9: memref<32x32xbf16, #tpu.memory_space<vmem>>, %arg10: memref<32x64xbf16, #tpu.memory_space<vmem>>, %arg11: memref<1x64xf32, #tpu.memory_space<vmem>>, %arg12: memref<64x32xbf16, #tpu.memory_space<vmem>>, %arg13: memref<32x128xbf16, #tpu.memory_space<vmem>>, %arg14: memref<8x128xf32, #tpu.memory_space<vmem>>, %arg15: memref<1x1x128xf32, #tpu.memory_space<vmem>>, %arg16: memref<96x1xf32, #tpu.memory_space<vmem>>) attributes {dimension_semantics = [#tpu.dimension_semantics<parallel>, #tpu.dimension_semantics<arbitrary>], iteration_bounds = array<i64: 2, 1>, scalar_prefetch = 0 : i64, scratch_operands = 1 : i64, tpu.core_type = #tpu.core_type<tc>, window_params = [{transform_indices = @transform_0, window_bounds = array<i64: 1, 3, 128>}, {pipeline_mode = #tpu.pipeline_mode<synchronous>, transform_indices = @transform_1, window_bounds = array<i64: 192, 4>}, {pipeline_mode = #tpu.pipeline_mode<synchronous>, transform_indices = @transform_2, window_bounds = array<i64: 384, 192>}, {pipeline_mode = #tpu.pipeline_mode<synchronous>, transform_indices = @transform_3, window_bounds = array<i64: 96, 384>}, {pipeline_mode = #tpu.pipeline_mode<synchronous>, transform_indices = @transform_4, window_bounds = array<i64: 480, 1>}, {pipeline_mode = #tpu.pipeline_mode<synchronous>, transform_indices = @transform_5, window_bounds = array<i64: 32, 96>}, {pipeline_mode = #tpu.pipeline_mode<synchronous>, transform_indices = @transform_6, window_bounds = array<i64: 1, 96>}, {pipeline_mode = #tpu.pipeline_mode<synchronous>, transform_indices = @transform_7, window_bounds = array<i64: 32, 32>}, {pipeline_mode = #tpu.pipeline_mode<synchronous>, transform_indices = @transform_8, window_bounds = array<i64: 32, 64>}, {pipeline_mode = #tpu.pipeline_mode<synchronous>, transform_indices = @transform_9, window_bounds = array<i64: 1, 64>}, {pipeline_mode = #tpu.pipeline_mode<synchronous>, transform_indices = @transform_10, window_bounds = array<i64: 64, 32>}, {pipeline_mode = #tpu.pipeline_mode<synchronous>, transform_indices = @transform_11, window_bounds = array<i64: 32, 128>}, {pipeline_mode = #tpu.pipeline_mode<synchronous>, transform_indices = @transform_12, window_bounds = array<i64: 8, 128>}, {transform_indices = @transform_13, window_bounds = array<i64: 1, 1, 128>}]} {
    %c0 = arith.constant 0 : index
    %c0_0 = arith.constant 0 : index
    %c0_1 = arith.constant 0 : index
    %0 = vector.load %arg2[%c0, %c0_0, %c0_1] : memref<1x3x128xf32, #tpu.memory_space<vmem>>, vector<1x3x128xf32>
    %1 = vector.shape_cast %0 : vector<1x3x128xf32> to vector<3x128xf32>
    %c0_2 = arith.constant 0 : index
    %c0_3 = arith.constant 0 : index
    %2 = vector.load %arg3[%c0_2, %c0_3] : memref<192x4xf32, #tpu.memory_space<vmem>>, vector<192x4xf32>
    %3 = vector.extract_strided_slice %2 {offsets = [0, 0], sizes = [192, 1], strides = [1, 1]} : vector<192x4xf32> to vector<192x1xf32>
    %4 = vector.extract_strided_slice %1 {offsets = [0, 0], sizes = [1, 128], strides = [1, 1]} : vector<3x128xf32> to vector<1x128xf32>
    %5 = vector.broadcast %3 : vector<192x1xf32> to vector<192x128xf32>
    %6 = vector.broadcast %4 : vector<1x128xf32> to vector<192x128xf32>
    %7 = arith.mulf %5, %6 : vector<192x128xf32>
    %8 = vector.extract_strided_slice %2 {offsets = [0, 1], sizes = [192, 1], strides = [1, 1]} : vector<192x4xf32> to vector<192x1xf32>
    %9 = vector.extract_strided_slice %1 {offsets = [1, 0], sizes = [1, 128], strides = [1, 1]} : vector<3x128xf32> to vector<1x128xf32>
    %10 = vector.broadcast %8 : vector<192x1xf32> to vector<192x128xf32>
    %11 = vector.broadcast %9 : vector<1x128xf32> to vector<192x128xf32>
    %12 = arith.mulf %10, %11 : vector<192x128xf32>
    %13 = arith.addf %7, %12 : vector<192x128xf32>
    %14 = vector.extract_strided_slice %2 {offsets = [0, 2], sizes = [192, 1], strides = [1, 1]} : vector<192x4xf32> to vector<192x1xf32>
    %15 = vector.extract_strided_slice %1 {offsets = [2, 0], sizes = [1, 128], strides = [1, 1]} : vector<3x128xf32> to vector<1x128xf32>
    %16 = vector.broadcast %14 : vector<192x1xf32> to vector<192x128xf32>
    %17 = vector.broadcast %15 : vector<1x128xf32> to vector<192x128xf32>
    %18 = arith.mulf %16, %17 : vector<192x128xf32>
    %19 = arith.addf %13, %18 : vector<192x128xf32>
    %20 = vector.extract_strided_slice %2 {offsets = [0, 3], sizes = [192, 1], strides = [1, 1]} : vector<192x4xf32> to vector<192x1xf32>
    %21 = vector.broadcast %20 : vector<192x1xf32> to vector<192x128xf32>
    %22 = arith.addf %19, %21 : vector<192x128xf32>
    %cst = arith.constant 0.000000e+00 : f32
    %23 = vector.broadcast %cst : f32 to vector<192x128xf32>
    %24 = arith.maximumf %22, %23 : vector<192x128xf32>
    %25 = arith.truncf %24 : vector<192x128xf32> to vector<192x128xbf16>
    %c0_4 = arith.constant 0 : index
    %c0_5 = arith.constant 0 : index
    %26 = vector.load %arg4[%c0_4, %c0_5] : memref<384x192xbf16, #tpu.memory_space<vmem>>, vector<384x192xbf16>
    %cst_6 = arith.constant dense<0.000000e+00> : vector<384x128xf32>
    %27 = tpu.matmul %26, %25, %cst_6 {dimension_numbers = #tpu.dot_dimension_numbers<[1], [0], [0], [1], [0, 0, 1, 1], [], []>} : vector<384x192xbf16>, vector<192x128xbf16>, vector<384x128xf32> -> vector<384x128xf32>
    %c0_7 = arith.constant 0 : index
    %c0_8 = arith.constant 0 : index
    %28 = vector.load %arg6[%c0_7, %c0_8] : memref<480x1xf32, #tpu.memory_space<vmem>>, vector<384x1xf32>
    %29 = vector.broadcast %28 : vector<384x1xf32> to vector<384x128xf32>
    %30 = arith.addf %27, %29 : vector<384x128xf32>
    %cst_9 = arith.constant 0.000000e+00 : f32
    %31 = vector.broadcast %cst_9 : f32 to vector<384x128xf32>
    %32 = arith.maximumf %30, %31 : vector<384x128xf32>
    %33 = arith.truncf %32 : vector<384x128xf32> to vector<384x128xbf16>
    %c0_10 = arith.constant 0 : index
    %c0_11 = arith.constant 0 : index
    %34 = vector.load %arg5[%c0_10, %c0_11] : memref<96x384xbf16, #tpu.memory_space<vmem>>, vector<96x384xbf16>
    %cst_12 = arith.constant dense<0.000000e+00> : vector<96x128xf32>
    %35 = tpu.matmul %34, %33, %cst_12 {dimension_numbers = #tpu.dot_dimension_numbers<[1], [0], [0], [1], [0, 0, 1, 1], [], []>} : vector<96x384xbf16>, vector<384x128xbf16>, vector<96x128xf32> -> vector<96x128xf32>
    %c384 = arith.constant 384 : index
    %c0_13 = arith.constant 0 : index
    %36 = vector.load %arg6[%c384, %c0_13] : memref<480x1xf32, #tpu.memory_space<vmem>>, vector<96x1xf32>
    %37 = vector.broadcast %36 : vector<96x1xf32> to vector<96x128xf32>
    %38 = arith.addf %35, %37 : vector<96x128xf32>
    %39 = tpu.iota {dimensions = array<i32: 1>} : vector<1x128xi32>
    %c128_i32 = arith.constant 128 : i32
    %40 = arith.muli %arg1, %c128_i32 : i32
    %41 = vector.broadcast %40 : i32 to vector<1x128xi32>
    %42 = arith.addi %41, %39 : vector<1x128xi32>
    %c16_i32 = arith.constant 16 : i32
    %43 = vector.broadcast %c16_i32 : i32 to vector<1x128xi32>
    %44 = arith.cmpi slt, %42, %43 : vector<1x128xi32>
    %cst_14 = arith.constant -1.000000e+30 : f32
    %45 = vector.shape_cast %44 : vector<1x128xi1> to vector<1x128xi1>
    %46 = vector.broadcast %45 : vector<1x128xi1> to vector<96x128xi1>
    %47 = vector.broadcast %cst_14 : f32 to vector<96x128xf32>
    %48 = arith.select %46, %38, %47 : vector<96x128xi1>, vector<96x128xf32>
    %cst_15 = arith.constant dense<0xFF800000> : vector<96xf32>
    %49 = vector.multi_reduction <maximumf>, %48, %cst_15 [1] : vector<96x128xf32> to vector<96xf32>
    %50 = vector.shape_cast %49 : vector<96xf32> to vector<96x1xf32>
    %c0_i32 = arith.constant 0 : i32
    %51 = arith.cmpi eq, %arg1, %c0_i32 : i32
    %52 = arith.extui %51 : i1 to i32
    %c0_i32_16 = arith.constant 0 : i32
    %53 = arith.cmpi ne, %52, %c0_i32_16 : i32
    scf.if %53 {
      %cst_23 = arith.constant -1.000000e+30 : f32
      %60 = vector.broadcast %cst_23 : f32 to vector<96x1xf32>
      %c0_24 = arith.constant 0 : index
      %c0_25 = arith.constant 0 : index
      %61 = vector.load %arg16[%c0_24, %c0_25] : memref<96x1xf32, #tpu.memory_space<vmem>>, vector<96x1xf32>
      tpu.vector_store %arg16[%c0_24, %c0_25], %60 {strides = array<i32>} : memref<96x1xf32, #tpu.memory_space<vmem>>, vector<96x1xf32>,
    } else {
    }
    %c0_17 = arith.constant 0 : index
    %c0_18 = arith.constant 0 : index
    %54 = vector.load %arg16[%c0_17, %c0_18] : memref<96x1xf32, #tpu.memory_space<vmem>>, vector<96x1xf32>
    %55 = arith.maximumf %54, %50 : vector<96x1xf32>
    %c0_19 = arith.constant 0 : index
    %c0_20 = arith.constant 0 : index
    %56 = vector.load %arg16[%c0_19, %c0_20] : memref<96x1xf32, #tpu.memory_space<vmem>>, vector<96x1xf32>
    tpu.vector_store %arg16[%c0_19, %c0_20], %55 {strides = array<i32>} : memref<96x1xf32, #tpu.memory_space<vmem>>, vector<96x1xf32>,
    %c0_i32_21 = arith.constant 0 : i32
    %57 = arith.cmpi eq, %arg1, %c0_i32_21 : i32
    %58 = arith.extui %57 : i1 to i32
    %c0_i32_22 = arith.constant 0 : i32
    %59 = arith.cmpi ne, %58, %c0_i32_22 : i32
    scf.if %59 {
      %c0_23 = arith.constant 0 : index
      %c0_24 = arith.constant 0 : index
      %60 = vector.load %arg16[%c0_23, %c0_24] : memref<96x1xf32, #tpu.memory_space<vmem>>, vector<96x1xf32>
      %61 = tpu.iota {dimensions = array<i32: 0>} : vector<96x96xi32>
      %62 = tpu.iota {dimensions = array<i32: 1>} : vector<96x96xi32>
      %63 = arith.cmpi eq, %61, %62 : vector<96x96xi32>
      %cst_25 = arith.constant 0.000000e+00 : f32
      %64 = vector.shape_cast %60 : vector<96x1xf32> to vector<96x1xf32>
      %65 = vector.broadcast %64 : vector<96x1xf32> to vector<96x96xf32>
      %66 = vector.broadcast %cst_25 : f32 to vector<96x96xf32>
      %67 = arith.select %63, %65, %66 : vector<96x96xi1>, vector<96x96xf32>
      %cst_26 = arith.constant dense<0.000000e+00> : vector<96xf32>
      %68 = vector.multi_reduction <add>, %67, %cst_26 [0] : vector<96x96xf32> to vector<96xf32>
      %69 = vector.shape_cast %68 : vector<96xf32> to vector<1x96xf32>
      %c0_27 = arith.constant 0 : index
      %c0_28 = arith.constant 0 : index
      %70 = vector.load %arg14[%c0_27, %c0_28] : memref<8x128xf32, #tpu.memory_space<vmem>>, vector<8x128xf32>
      %71 = vector.extract_strided_slice %70 {offsets = [0, 0], sizes = [1, 32], strides = [1, 1]} : vector<8x128xf32> to vector<1x32xf32>
      %72 = vector.extract_strided_slice %69 {offsets = [0, 0], sizes = [1, 32], strides = [1, 1]} : vector<1x96xf32> to vector<1x32xf32>
      %73 = vector.extract_strided_slice %69 {offsets = [0, 32], sizes = [1, 32], strides = [1, 1]} : vector<1x96xf32> to vector<1x32xf32>
      %74 = vector.extract_strided_slice %69 {offsets = [0, 64], sizes = [1, 32], strides = [1, 1]} : vector<1x96xf32> to vector<1x32xf32>
      %75 = tpu.concatenate %71, %72, %73, %74 in 0 : vector<1x32xf32>, vector<1x32xf32>, vector<1x32xf32>, vector<1x32xf32> -> vector<4x32xf32>
      %76 = arith.truncf %75 : vector<4x32xf32> to vector<4x32xbf16>
      %c0_29 = arith.constant 0 : index
      %c0_30 = arith.constant 0 : index
      %77 = vector.load %arg7[%c0_29, %c0_30] : memref<32x96xbf16, #tpu.memory_space<vmem>>, vector<32x96xbf16>
      %cst_31 = arith.constant dense<0.000000e+00> : vector<4x96xf32>
      %78 = tpu.matmul %76, %77, %cst_31 {dimension_numbers = #tpu.dot_dimension_numbers<[1], [0], [0], [1], [0, 0, 1, 1], [], []>} : vector<4x32xbf16>, vector<32x96xbf16>, vector<4x96xf32> -> vector<4x96xf32>
      %c0_32 = arith.constant 0 : index
      %c0_33 = arith.constant 0 : index
      %79 = vector.load %arg8[%c0_32, %c0_33] : memref<1x96xf32, #tpu.memory_space<vmem>>, vector<1x96xf32>
      %80 = vector.broadcast %79 : vector<1x96xf32> to vector<4x96xf32>
      %81 = arith.addf %78, %80 : vector<4x96xf32>
      %82 = vector.extract_strided_slice %81 {offsets = [0, 0], sizes = [4, 32], strides = [1, 1]} : vector<4x96xf32> to vector<4x32xf32>
      %83 = vector.extract_strided_slice %81 {offsets = [0, 32], sizes = [4, 32], strides = [1, 1]} : vector<4x96xf32> to vector<4x32xf32>
      %84 = vector.extract_strided_slice %81 {offsets = [0, 64], sizes = [4, 32], strides = [1, 1]} : vector<4x96xf32> to vector<4x32xf32>
      "tpu.trace_start"() <{level = 10 : i32, message = "td,sd->ts"}> : () -> ()
      %cst_34 = arith.constant dense<0.000000e+00> : vector<4x4xf32>
      %85 = tpu.matmul %82, %83, %cst_34 {dimension_numbers = #tpu.dot_dimension_numbers<[1], [1], [0], [0], [0, 0, 1, 0], [], []>} : vector<4x32xf32>, vector<4x32xf32>, vector<4x4xf32> -> vector<4x4xf32>
      "tpu.trace_stop"() : () -> ()
      %cst_35 = arith.constant 0.176776692 : f32
      %86 = vector.broadcast %cst_35 : f32 to vector<4x4xf32>
      %87 = arith.mulf %85, %86 : vector<4x4xf32>
      %cst_36 = arith.constant dense<0xFF800000> : vector<4xf32>
      %88 = vector.multi_reduction <maximumf>, %87, %cst_36 [1] : vector<4x4xf32> to vector<4xf32>
      %89 = vector.shape_cast %88 : vector<4xf32> to vector<4x1xf32>
      %90 = vector.broadcast %89 : vector<4x1xf32> to vector<4x4xf32>
      %91 = arith.subf %87, %90 : vector<4x4xf32>
      %92 = math.exp %91 : vector<4x4xf32>
      %cst_37 = arith.constant dense<0.000000e+00> : vector<4xf32>
      %93 = vector.multi_reduction <add>, %92, %cst_37 [1] : vector<4x4xf32> to vector<4xf32>
      %94 = vector.shape_cast %93 : vector<4xf32> to vector<4x1xf32>
      %95 = vector.broadcast %94 : vector<4x1xf32> to vector<4x4xf32>
      %96 = arith.divf %92, %95 : vector<4x4xf32>
      %cst_38 = arith.constant dense<0.000000e+00> : vector<4x32xf32>
      %97 = tpu.matmul %96, %84, %cst_38 {dimension_numbers = #tpu.dot_dimension_numbers<[1], [0], [0], [1], [0, 0, 1, 1], [], []>} : vector<4x4xf32>, vector<4x32xf32>, vector<4x32xf32> -> vector<4x32xf32>
      %98 = arith.truncf %97 : vector<4x32xf32> to vector<4x32xbf16>
      %c0_39 = arith.constant 0 : index
      %c0_40 = arith.constant 0 : index
      %99 = vector.load %arg9[%c0_39, %c0_40] : memref<32x32xbf16, #tpu.memory_space<vmem>>, vector<32x32xbf16>
      %cst_41 = arith.constant dense<0.000000e+00> : vector<4x32xf32>
      %100 = tpu.matmul %98, %99, %cst_41 {dimension_numbers = #tpu.dot_dimension_numbers<[1], [0], [0], [1], [0, 0, 1, 1], [], []>} : vector<4x32xbf16>, vector<32x32xbf16>, vector<4x32xf32> -> vector<4x32xf32>
      %101 = vector.extract_strided_slice %70 {offsets = [1, 0], sizes = [1, 32], strides = [1, 1]} : vector<8x128xf32> to vector<1x32xf32>
      %102 = vector.broadcast %101 : vector<1x32xf32> to vector<4x32xf32>
      %103 = arith.addf %100, %102 : vector<4x32xf32>
      %104 = arith.addf %75, %103 : vector<4x32xf32>
      %105 = vector.extract_strided_slice %70 {offsets = [2, 0], sizes = [1, 32], strides = [1, 1]} : vector<8x128xf32> to vector<1x32xf32>
      %106 = vector.extract_strided_slice %70 {offsets = [3, 0], sizes = [1, 32], strides = [1, 1]} : vector<8x128xf32> to vector<1x32xf32>
      %cst_42 = arith.constant dense<0.000000e+00> : vector<4xf32>
      %107 = vector.multi_reduction <add>, %104, %cst_42 [1] : vector<4x32xf32> to vector<4xf32>
      %108 = vector.shape_cast %107 : vector<4xf32> to vector<4x1xf32>
      %cst_43 = arith.constant 3.200000e+01 : f32
      %109 = vector.broadcast %cst_43 : f32 to vector<4x1xf32>
      %110 = arith.divf %108, %109 : vector<4x1xf32>
      %111 = vector.broadcast %110 : vector<4x1xf32> to vector<4x32xf32>
      %112 = arith.subf %104, %111 : vector<4x32xf32>
      %113 = arith.mulf %112, %112 : vector<4x32xf32>
      %cst_44 = arith.constant dense<0.000000e+00> : vector<4xf32>
      %114 = vector.multi_reduction <add>, %113, %cst_44 [1] : vector<4x32xf32> to vector<4xf32>
      %115 = vector.shape_cast %114 : vector<4xf32> to vector<4x1xf32>
      %cst_45 = arith.constant 3.200000e+01 : f32
      %116 = vector.broadcast %cst_45 : f32 to vector<4x1xf32>
      %117 = arith.divf %115, %116 : vector<4x1xf32>
      %118 = vector.broadcast %110 : vector<4x1xf32> to vector<4x32xf32>
      %119 = arith.subf %104, %118 : vector<4x32xf32>
      %cst_46 = arith.constant 9.99999974E-6 : f32
      %120 = vector.broadcast %cst_46 : f32 to vector<4x1xf32>
      %121 = arith.addf %117, %120 : vector<4x1xf32>
      %122 = math.rsqrt %121 : vector<4x1xf32>
      %123 = vector.broadcast %122 : vector<4x1xf32> to vector<4x32xf32>
      %124 = arith.mulf %119, %123 : vector<4x32xf32>
      %125 = vector.broadcast %105 : vector<1x32xf32> to vector<4x32xf32>
      %126 = arith.mulf %124, %125 : vector<4x32xf32>
      %127 = vector.broadcast %106 : vector<1x32xf32> to vector<4x32xf32>
      %128 = arith.addf %126, %127 : vector<4x32xf32>
      %129 = arith.truncf %128 : vector<4x32xf32> to vector<4x32xbf16>
      %c0_47 = arith.constant 0 : index
      %c0_48 = arith.constant 0 : index
      %130 = vector.load %arg10[%c0_47, %c0_48] : memref<32x64xbf16, #tpu.memory_space<vmem>>, vector<32x64xbf16>
      %cst_49 = arith.constant dense<0.000000e+00> : vector<4x64xf32>
      %131 = tpu.matmul %129, %130, %cst_49 {dimension_numbers = #tpu.dot_dimension_numbers<[1], [0], [0], [1], [0, 0, 1, 1], [], []>} : vector<4x32xbf16>, vector<32x64xbf16>, vector<4x64xf32> -> vector<4x64xf32>
      %c0_50 = arith.constant 0 : index
      %c0_51 = arith.constant 0 : index
      %132 = vector.load %arg11[%c0_50, %c0_51] : memref<1x64xf32, #tpu.memory_space<vmem>>, vector<1x64xf32>
      %133 = vector.broadcast %132 : vector<1x64xf32> to vector<4x64xf32>
      %134 = arith.addf %131, %133 : vector<4x64xf32>
      %cst_52 = arith.constant 0.000000e+00 : f32
      %135 = vector.broadcast %cst_52 : f32 to vector<4x64xf32>
      %136 = arith.maximumf %134, %135 : vector<4x64xf32>
      %137 = arith.truncf %136 : vector<4x64xf32> to vector<4x64xbf16>
      %c0_53 = arith.constant 0 : index
      %c0_54 = arith.constant 0 : index
      %138 = vector.load %arg12[%c0_53, %c0_54] : memref<64x32xbf16, #tpu.memory_space<vmem>>, vector<64x32xbf16>
      %cst_55 = arith.constant dense<0.000000e+00> : vector<4x32xf32>
      %139 = tpu.matmul %137, %138, %cst_55 {dimension_numbers = #tpu.dot_dimension_numbers<[1], [0], [0], [1], [0, 0, 1, 1], [], []>} : vector<4x64xbf16>, vector<64x32xbf16>, vector<4x32xf32> -> vector<4x32xf32>
      %140 = vector.extract_strided_slice %70 {offsets = [4, 0], sizes = [1, 32], strides = [1, 1]} : vector<8x128xf32> to vector<1x32xf32>
      %141 = vector.broadcast %140 : vector<1x32xf32> to vector<4x32xf32>
      %142 = arith.addf %139, %141 : vector<4x32xf32>
      %143 = arith.addf %128, %142 : vector<4x32xf32>
      %144 = vector.extract_strided_slice %70 {offsets = [5, 0], sizes = [1, 32], strides = [1, 1]} : vector<8x128xf32> to vector<1x32xf32>
      %145 = vector.extract_strided_slice %70 {offsets = [6, 0], sizes = [1, 32], strides = [1, 1]} : vector<8x128xf32> to vector<1x32xf32>
      %cst_56 = arith.constant dense<0.000000e+00> : vector<4xf32>
      %146 = vector.multi_reduction <add>, %143, %cst_56 [1] : vector<4x32xf32> to vector<4xf32>
      %147 = vector.shape_cast %146 : vector<4xf32> to vector<4x1xf32>
      %cst_57 = arith.constant 3.200000e+01 : f32
      %148 = vector.broadcast %cst_57 : f32 to vector<4x1xf32>
      %149 = arith.divf %147, %148 : vector<4x1xf32>
      %150 = vector.broadcast %149 : vector<4x1xf32> to vector<4x32xf32>
      %151 = arith.subf %143, %150 : vector<4x32xf32>
      %152 = arith.mulf %151, %151 : vector<4x32xf32>
      %cst_58 = arith.constant dense<0.000000e+00> : vector<4xf32>
      %153 = vector.multi_reduction <add>, %152, %cst_58 [1] : vector<4x32xf32> to vector<4xf32>
      %154 = vector.shape_cast %153 : vector<4xf32> to vector<4x1xf32>
      %cst_59 = arith.constant 3.200000e+01 : f32
      %155 = vector.broadcast %cst_59 : f32 to vector<4x1xf32>
      %156 = arith.divf %154, %155 : vector<4x1xf32>
      %157 = vector.broadcast %149 : vector<4x1xf32> to vector<4x32xf32>
      %158 = arith.subf %143, %157 : vector<4x32xf32>
      %cst_60 = arith.constant 9.99999974E-6 : f32
      %159 = vector.broadcast %cst_60 : f32 to vector<4x1xf32>
      %160 = arith.addf %156, %159 : vector<4x1xf32>
      %161 = math.rsqrt %160 : vector<4x1xf32>
      %162 = vector.broadcast %161 : vector<4x1xf32> to vector<4x32xf32>
      %163 = arith.mulf %158, %162 : vector<4x32xf32>
      %164 = vector.broadcast %144 : vector<1x32xf32> to vector<4x32xf32>
      %165 = arith.mulf %163, %164 : vector<4x32xf32>
      %166 = vector.broadcast %145 : vector<1x32xf32> to vector<4x32xf32>
      %167 = arith.addf %165, %166 : vector<4x32xf32>
      %cst_61 = arith.constant dense<0xFF800000> : vector<32xf32>
      %168 = vector.multi_reduction <maximumf>, %167, %cst_61 [0] : vector<4x32xf32> to vector<32xf32>
      %169 = vector.shape_cast %168 : vector<32xf32> to vector<1x32xf32>
      %170 = arith.truncf %169 : vector<1x32xf32> to vector<1x32xbf16>
      %c0_62 = arith.constant 0 : index
      %c0_63 = arith.constant 0 : index
      %171 = vector.load %arg13[%c0_62, %c0_63] : memref<32x128xbf16, #tpu.memory_space<vmem>>, vector<32x128xbf16>
      %cst_64 = arith.constant dense<0.000000e+00> : vector<1x128xf32>
      %172 = tpu.matmul %170, %171, %cst_64 {dimension_numbers = #tpu.dot_dimension_numbers<[1], [0], [0], [1], [0, 0, 1, 1], [], []>} : vector<1x32xbf16>, vector<32x128xbf16>, vector<1x128xf32> -> vector<1x128xf32>
      %173 = vector.extract_strided_slice %70 {offsets = [7, 0], sizes = [1, 128], strides = [1, 1]} : vector<8x128xf32> to vector<1x128xf32>
      %174 = arith.addf %172, %173 : vector<1x128xf32>
      %175 = vector.shape_cast %174 : vector<1x128xf32> to vector<1x1x128xf32>
      %c0_65 = arith.constant 0 : index
      %c0_66 = arith.constant 0 : index
      %c0_67 = arith.constant 0 : index
      %176 = vector.load %arg15[%c0_65, %c0_66, %c0_67] : memref<1x1x128xf32, #tpu.memory_space<vmem>>, vector<1x1x128xf32>
      tpu.vector_store %arg15[%c0_65, %c0_66, %c0_67], %175 {strides = array<i32>} : memref<1x1x128xf32, #tpu.memory_space<vmem>>, vector<1x1x128xf32>,
    } else {
    }
    return
  }
  func.func @transform_0(%arg0: i32, %arg1: i32) -> (i32, i32, i32) {
    %c0_i32 = arith.constant 0 : i32
    %c0_i32_0 = arith.constant 0 : i32
    return %arg0, %c0_i32, %arg1 : i32, i32, i32
  }
  func.func @transform_1(%arg0: i32, %arg1: i32) -> (i32, i32) {
    %c0_i32 = arith.constant 0 : i32
    %c0_i32_0 = arith.constant 0 : i32
    %c0_i32_1 = arith.constant 0 : i32
    return %c0_i32, %c0_i32_0 : i32, i32
  }
  func.func @transform_2(%arg0: i32, %arg1: i32) -> (i32, i32) {
    %c0_i32 = arith.constant 0 : i32
    %c0_i32_0 = arith.constant 0 : i32
    %c0_i32_1 = arith.constant 0 : i32
    return %c0_i32, %c0_i32_0 : i32, i32
  }
  func.func @transform_3(%arg0: i32, %arg1: i32) -> (i32, i32) {
    %c0_i32 = arith.constant 0 : i32
    %c0_i32_0 = arith.constant 0 : i32
    %c0_i32_1 = arith.constant 0 : i32
    return %c0_i32, %c0_i32_0 : i32, i32
  }
  func.func @transform_4(%arg0: i32, %arg1: i32) -> (i32, i32) {
    %c0_i32 = arith.constant 0 : i32
    %c0_i32_0 = arith.constant 0 : i32
    %c0_i32_1 = arith.constant 0 : i32
    return %c0_i32, %c0_i32_0 : i32, i32
  }
  func.func @transform_5(%arg0: i32, %arg1: i32) -> (i32, i32) {
    %c0_i32 = arith.constant 0 : i32
    %c0_i32_0 = arith.constant 0 : i32
    %c0_i32_1 = arith.constant 0 : i32
    return %c0_i32, %c0_i32_0 : i32, i32
  }
  func.func @transform_6(%arg0: i32, %arg1: i32) -> (i32, i32) {
    %c0_i32 = arith.constant 0 : i32
    %c0_i32_0 = arith.constant 0 : i32
    %c0_i32_1 = arith.constant 0 : i32
    return %c0_i32, %c0_i32_0 : i32, i32
  }
  func.func @transform_7(%arg0: i32, %arg1: i32) -> (i32, i32) {
    %c0_i32 = arith.constant 0 : i32
    %c0_i32_0 = arith.constant 0 : i32
    %c0_i32_1 = arith.constant 0 : i32
    return %c0_i32, %c0_i32_0 : i32, i32
  }
  func.func @transform_8(%arg0: i32, %arg1: i32) -> (i32, i32) {
    %c0_i32 = arith.constant 0 : i32
    %c0_i32_0 = arith.constant 0 : i32
    %c0_i32_1 = arith.constant 0 : i32
    return %c0_i32, %c0_i32_0 : i32, i32
  }
  func.func @transform_9(%arg0: i32, %arg1: i32) -> (i32, i32) {
    %c0_i32 = arith.constant 0 : i32
    %c0_i32_0 = arith.constant 0 : i32
    %c0_i32_1 = arith.constant 0 : i32
    return %c0_i32, %c0_i32_0 : i32, i32
  }
  func.func @transform_10(%arg0: i32, %arg1: i32) -> (i32, i32) {
    %c0_i32 = arith.constant 0 : i32
    %c0_i32_0 = arith.constant 0 : i32
    %c0_i32_1 = arith.constant 0 : i32
    return %c0_i32, %c0_i32_0 : i32, i32
  }
  func.func @transform_11(%arg0: i32, %arg1: i32) -> (i32, i32) {
    %c0_i32 = arith.constant 0 : i32
    %c0_i32_0 = arith.constant 0 : i32
    %c0_i32_1 = arith.constant 0 : i32
    return %c0_i32, %c0_i32_0 : i32, i32
  }
  func.func @transform_12(%arg0: i32, %arg1: i32) -> (i32, i32) {
    %c0_i32 = arith.constant 0 : i32
    %c0_i32_0 = arith.constant 0 : i32
    %c0_i32_1 = arith.constant 0 : i32
    return %c0_i32, %c0_i32_0 : i32, i32
  }
  func.func @transform_13(%arg0: i32, %arg1: i32) -> (i32, i32, i32) {
    %c0_i32 = arith.constant 0 : i32
    %c0_i32_0 = arith.constant 0 : i32
    %c0_i32_1 = arith.constant 0 : i32
    return %arg0, %c0_i32, %c0_i32_0 : i32, i32, i32
  }
}

module attributes {stable_mosaic.version = 11 : i64} {
  func.func @decoder_kernel(%arg0: i32, %arg1: memref<2x1x128xf32, #tpu.memory_space<vmem>>, %arg2: memref<128x256xbf16, #tpu.memory_space<vmem>>, %arg3: memref<2x256xf32, #tpu.memory_space<vmem>>, %arg4: memref<256x256xbf16, #tpu.memory_space<vmem>>, %arg5: memref<256x128xbf16, #tpu.memory_space<vmem>>, %arg6: memref<1x128xf32, #tpu.memory_space<vmem>>, %arg7: memref<2x128xf32, #tpu.memory_space<vmem>>) attributes {dimension_semantics = [#tpu.dimension_semantics<parallel>], iteration_bounds = array<i64: 1>, scalar_prefetch = 0 : i64, scratch_operands = 0 : i64, tpu.core_type = #tpu.core_type<tc>, window_params = [{pipeline_mode = #tpu.pipeline_mode<synchronous>, transform_indices = @transform_0, window_bounds = array<i64: 2, 1, 128>}, {pipeline_mode = #tpu.pipeline_mode<synchronous>, transform_indices = @transform_1, window_bounds = array<i64: 128, 256>}, {pipeline_mode = #tpu.pipeline_mode<synchronous>, transform_indices = @transform_2, window_bounds = array<i64: 2, 256>}, {pipeline_mode = #tpu.pipeline_mode<synchronous>, transform_indices = @transform_3, window_bounds = array<i64: 256, 256>}, {transform_indices = @transform_4, window_bounds = array<i64: 256, 128>}, {transform_indices = @transform_5, window_bounds = array<i64: 1, 128>}, {transform_indices = @transform_6, window_bounds = array<i64: 2, 128>}]} {
    %c0 = arith.constant 0 : index
    %c0_0 = arith.constant 0 : index
    %c0_1 = arith.constant 0 : index
    %0 = vector.load %arg1[%c0, %c0_0, %c0_1] : memref<2x1x128xf32, #tpu.memory_space<vmem>>, vector<2x1x128xf32>
    %1 = vector.shape_cast %0 : vector<2x1x128xf32> to vector<2x128xf32>
    %2 = arith.truncf %1 : vector<2x128xf32> to vector<2x128xbf16>
    %c0_2 = arith.constant 0 : index
    %c0_3 = arith.constant 0 : index
    %3 = vector.load %arg2[%c0_2, %c0_3] : memref<128x256xbf16, #tpu.memory_space<vmem>>, vector<128x256xbf16>
    %cst = arith.constant dense<0.000000e+00> : vector<2x256xf32>
    %4 = tpu.matmul %2, %3, %cst {dimension_numbers = #tpu.dot_dimension_numbers<[1], [0], [0], [1], [0, 0, 1, 1], [], []>} : vector<2x128xbf16>, vector<128x256xbf16>, vector<2x256xf32> -> vector<2x256xf32>
    %c0_4 = arith.constant 0 : index
    %c0_5 = arith.constant 0 : index
    %5 = vector.load %arg3[%c0_4, %c0_5] : memref<2x256xf32, #tpu.memory_space<vmem>>, vector<1x256xf32>
    %6 = vector.broadcast %5 : vector<1x256xf32> to vector<2x256xf32>
    %7 = arith.addf %4, %6 : vector<2x256xf32>
    %cst_6 = arith.constant 0.000000e+00 : f32
    %8 = vector.broadcast %cst_6 : f32 to vector<2x256xf32>
    %9 = arith.maximumf %7, %8 : vector<2x256xf32>
    %10 = arith.truncf %9 : vector<2x256xf32> to vector<2x256xbf16>
    %c0_7 = arith.constant 0 : index
    %c0_8 = arith.constant 0 : index
    %11 = vector.load %arg4[%c0_7, %c0_8] : memref<256x256xbf16, #tpu.memory_space<vmem>>, vector<256x256xbf16>
    %cst_9 = arith.constant dense<0.000000e+00> : vector<2x256xf32>
    %12 = tpu.matmul %10, %11, %cst_9 {dimension_numbers = #tpu.dot_dimension_numbers<[1], [0], [0], [1], [0, 0, 1, 1], [], []>} : vector<2x256xbf16>, vector<256x256xbf16>, vector<2x256xf32> -> vector<2x256xf32>
    %c1 = arith.constant 1 : index
    %c0_10 = arith.constant 0 : index
    %13 = vector.load %arg3[%c1, %c0_10] : memref<2x256xf32, #tpu.memory_space<vmem>>, vector<1x256xf32>
    %14 = vector.broadcast %13 : vector<1x256xf32> to vector<2x256xf32>
    %15 = arith.addf %12, %14 : vector<2x256xf32>
    %cst_11 = arith.constant 0.000000e+00 : f32
    %16 = vector.broadcast %cst_11 : f32 to vector<2x256xf32>
    %17 = arith.maximumf %15, %16 : vector<2x256xf32>
    %18 = arith.truncf %17 : vector<2x256xf32> to vector<2x256xbf16>
    %c0_12 = arith.constant 0 : index
    %c0_13 = arith.constant 0 : index
    %19 = vector.load %arg5[%c0_12, %c0_13] : memref<256x128xbf16, #tpu.memory_space<vmem>>, vector<256x128xbf16>
    %cst_14 = arith.constant dense<0.000000e+00> : vector<2x128xf32>
    %20 = tpu.matmul %18, %19, %cst_14 {dimension_numbers = #tpu.dot_dimension_numbers<[1], [0], [0], [1], [0, 0, 1, 1], [], []>} : vector<2x256xbf16>, vector<256x128xbf16>, vector<2x128xf32> -> vector<2x128xf32>
    %c0_15 = arith.constant 0 : index
    %c0_16 = arith.constant 0 : index
    %21 = vector.load %arg6[%c0_15, %c0_16] : memref<1x128xf32, #tpu.memory_space<vmem>>, vector<1x128xf32>
    %22 = vector.broadcast %21 : vector<1x128xf32> to vector<2x128xf32>
    %23 = arith.addf %20, %22 : vector<2x128xf32>
    %c0_17 = arith.constant 0 : index
    %c0_18 = arith.constant 0 : index
    %24 = vector.load %arg7[%c0_17, %c0_18] : memref<2x128xf32, #tpu.memory_space<vmem>>, vector<2x128xf32>
    tpu.vector_store %arg7[%c0_17, %c0_18], %23 {strides = array<i32>} : memref<2x128xf32, #tpu.memory_space<vmem>>, vector<2x128xf32>,
    return
  }
  func.func @transform_0(%arg0: i32) -> (i32, i32, i32) {
    %c0_i32 = arith.constant 0 : i32
    %c0_i32_0 = arith.constant 0 : i32
    %c0_i32_1 = arith.constant 0 : i32
    %c0_i32_2 = arith.constant 0 : i32
    return %c0_i32, %c0_i32_0, %c0_i32_1 : i32, i32, i32
  }
  func.func @transform_1(%arg0: i32) -> (i32, i32) {
    %c0_i32 = arith.constant 0 : i32
    %c0_i32_0 = arith.constant 0 : i32
    %c0_i32_1 = arith.constant 0 : i32
    return %c0_i32, %c0_i32_0 : i32, i32
  }
  func.func @transform_2(%arg0: i32) -> (i32, i32) {
    %c0_i32 = arith.constant 0 : i32
    %c0_i32_0 = arith.constant 0 : i32
    %c0_i32_1 = arith.constant 0 : i32
    return %c0_i32, %c0_i32_0 : i32, i32
  }
  func.func @transform_3(%arg0: i32) -> (i32, i32) {
    %c0_i32 = arith.constant 0 : i32
    %c0_i32_0 = arith.constant 0 : i32
    %c0_i32_1 = arith.constant 0 : i32
    return %c0_i32, %c0_i32_0 : i32, i32
  }
  func.func @transform_4(%arg0: i32) -> (i32, i32) {
    %c0_i32 = arith.constant 0 : i32
    %c0_i32_0 = arith.constant 0 : i32
    return %c0_i32, %arg0 : i32, i32
  }
  func.func @transform_5(%arg0: i32) -> (i32, i32) {
    %c0_i32 = arith.constant 0 : i32
    %c0_i32_0 = arith.constant 0 : i32
    return %c0_i32, %arg0 : i32, i32
  }
  func.func @transform_6(%arg0: i32) -> (i32, i32) {
    %c0_i32 = arith.constant 0 : i32
    %c0_i32_0 = arith.constant 0 : i32
    return %c0_i32, %arg0 : i32, i32
  }
}

</mosaic_0001>

<llo_original>
// kernel: autoencoder_transpn_forward.3
$region0: #{autoencoder_transpn_forward.3}
  #allocation0 [shape = 'u32[]', space=smem, size = 0x4, offset = 0x4, fixed_abs, tag = 'smem constant byte address 0x4 - core index']
  #allocation1 [shape = 'u32[144,128]{1,0:T(1,128)}', space=vmem, size = 0x12000, scoped, tag = 'internal scratch']
  %s0 = inlined_call_operand.vmem [shape: f32[2,1,128], index: 0, kind: input, shape index: {}]
  %s1 = inlined_call_operand.vmem [shape: bf16[128,256], index: 1, kind: input, shape index: {}]
  %s2 = inlined_call_operand.vmem [shape: f32[2,256], index: 2, kind: input, shape index: {}]
  %s3 = inlined_call_operand.vmem [shape: bf16[256,256], index: 3, kind: input, shape index: {}]
  %s4 = inlined_call_operand.vmem [shape: bf16[256,128], index: 4, kind: input, shape index: {}]
  %s5 = inlined_call_operand.vmem [shape: f32[1,128], index: 5, kind: input, shape index: {}]
  %s6 = inlined_call_operand.vmem [shape: f32[2,128], index: 6, kind: output, shape index: {}]
  %s7 = sld [smem:[#allocation0]]
  $region34: #{autoencoder_transpn_forward.3} parent=0
    _
  %s9 = ssub.s32 1, %s7
  %s10 = scalar_select 0, %s9, %s7
  // Predicated region
  $region2: #{autoencoder_transpn_forward.3} parent=0 // pred_check
    _
  $region3: #{autoencoder_transpn_forward.3} parent=0 // pred_check_branch
    %12 = sbr.rel (0) target = $region5
  $region4: #{autoencoder_transpn_forward.3} parent=0 // pred_region
    _
  $region5: #{autoencoder_transpn_forward.3} parent=0 // pred_fallthru
    _
  // Predicated region
  $region6: #{autoencoder_transpn_forward.3} parent=0 // pred_check
    _
  $region7: #{autoencoder_transpn_forward.3} parent=0 // pred_check_branch
    %14 = sbr.rel (0) target = $region9
  $region8: #{autoencoder_transpn_forward.3} parent=0 // pred_region
    _
  $region9: #{autoencoder_transpn_forward.3} parent=0 // pred_fallthru
    _
  // Predicated region
  $region10: #{autoencoder_transpn_forward.3} parent=0 // pred_check
    _
  $region11: #{autoencoder_transpn_forward.3} parent=0 // pred_check_branch
    %16 = sbr.rel (0) target = $region13
  $region12: #{autoencoder_transpn_forward.3} parent=0 // pred_region
    _
  $region13: #{autoencoder_transpn_forward.3} parent=0 // pred_fallthru
    _
  // Predicated region
  $region14: #{autoencoder_transpn_forward.3} parent=0 // pred_check
    _
  $region15: #{autoencoder_transpn_forward.3} parent=0 // pred_check_branch
    %18 = sbr.rel (0) target = $region17
  $region16: #{autoencoder_transpn_forward.3} parent=0 // pred_region
    _
  $region17: #{autoencoder_transpn_forward.3} parent=0 // pred_fallthru
    _
  // Predicated region
  $region18: #{autoencoder_transpn_forward.3} parent=0 // pred_check
    _
  $region19: #{autoencoder_transpn_forward.3} parent=0 // pred_check_branch
    %20 = sbr.rel (0) target = $region21
  $region20: #{autoencoder_transpn_forward.3} parent=0 // pred_region
    _
  $region21: #{autoencoder_transpn_forward.3} parent=0 // pred_fallthru
    _
  // Predicated region
  $region22: #{autoencoder_transpn_forward.3} parent=0 // pred_check
    _
  $region23: #{autoencoder_transpn_forward.3} parent=0 // pred_check_branch
    %22 = sbr.rel (0) target = $region25
  $region24: #{autoencoder_transpn_forward.3} parent=0 // pred_region
    _
  $region25: #{autoencoder_transpn_forward.3} parent=0 // pred_fallthru
    _
  %v24 = vld [vmem:[%s0] sm:$0x1]
  %v25 = vld [vmem:[%s0 + $0x1] sm:$0x1]
  %v26 = vpack.c.bf16 %v24, %v24
  %v27 = vpack.c.bf16 %v25, %v25
  %v28 = vld [vmem:[%s1] sm:$0xff]
  %v29 = vld [vmem:[%s1 + $0x8] sm:$0xff]
  %v30 = vld [vmem:[%s1 + $0x10] sm:$0xff]
  %v31 = vld [vmem:[%s1 + $0x18] sm:$0xff]
  %v32 = vld [vmem:[%s1 + $0x20] sm:$0xff]
  %v33 = vld [vmem:[%s1 + $0x28] sm:$0xff]
  %v34 = vld [vmem:[%s1 + $0x30] sm:$0xff]
  %v35 = vld [vmem:[%s1 + $0x38] sm:$0xff]
  %v36 = vld [vmem:[%s1 + $0x40] sm:$0xff]
  %v37 = vld [vmem:[%s1 + $0x48] sm:$0xff]
  %v38 = vld [vmem:[%s1 + $0x50] sm:$0xff]
  %v39 = vld [vmem:[%s1 + $0x58] sm:$0xff]
  %v40 = vld [vmem:[%s1 + $0x60] sm:$0xff]
  %v41 = vld [vmem:[%s1 + $0x68] sm:$0xff]
  %v42 = vld [vmem:[%s1 + $0x70] sm:$0xff]
  %v43 = vld [vmem:[%s1 + $0x78] sm:$0xff]
  %v44 = vld [vmem:[%s2] ss:$2 sm:$0x3]
  %v46 = vlaneseq
  %v47 = vshrl.u32 %v46, 7
  %v48 = vsub.s32 0, %v47
  %v49 = vrot.slane %v44, %v48
  %v50 = vlaneseq
  %v51 = vshrl.u32 %v50, 7
  %v52 = vsub.s32 1, %v51
  %v53 = vrot.slane %v44, %v52
  %v58 = vunpack.c.l.b16 %v26
  %v59 = vunpack.c.l.b16 %v27
  %v60 = vrot.slane %v59, 7
  %vm61 = vcmask 1041409
  %v62 = vsel %vm61, %v60, %v58
  %v63 = vpack.c.b16 %v62, %v62
  %v81 = vunpack.c.l.b16 %v28
  %v82 = vunpack.c.h.b16 %v28
  %v83 = vunpack.c.l.b16 %v29
  %v84 = vunpack.c.h.b16 %v29
  %v85 = vunpack.c.l.b16 %v30
  %v86 = vunpack.c.h.b16 %v30
  %v87 = vunpack.c.l.b16 %v31
  %v88 = vunpack.c.h.b16 %v31
  %v89 = vunpack.c.l.b16 %v32
  %v90 = vunpack.c.h.b16 %v32
  %v91 = vunpack.c.l.b16 %v33
  %v92 = vunpack.c.h.b16 %v33
  %v93 = vunpack.c.l.b16 %v34
  %v94 = vunpack.c.h.b16 %v34
  %v95 = vunpack.c.l.b16 %v35
  %v96 = vunpack.c.h.b16 %v35
  %v97 = vunpack.c.l.b16 %v36
  %v98 = vunpack.c.h.b16 %v36
  %v99 = vunpack.c.l.b16 %v37
  %v100 = vunpack.c.h.b16 %v37
  %v101 = vunpack.c.l.b16 %v38
  %v102 = vunpack.c.h.b16 %v38
  %v103 = vunpack.c.l.b16 %v39
  %v104 = vunpack.c.h.b16 %v39
  %v105 = vunpack.c.l.b16 %v40
  %v106 = vunpack.c.h.b16 %v40
  %v107 = vunpack.c.l.b16 %v41
  %v108 = vunpack.c.h.b16 %v41
  %v109 = vunpack.c.l.b16 %v42
  %v110 = vunpack.c.h.b16 %v42
  %v111 = vunpack.c.l.b16 %v43
  %v112 = vunpack.c.h.b16 %v43
  %v113 = vpack.c.b16 %v83, %v81
  %v114 = vpack.c.b16 %v84, %v82
  %v115 = vpack.c.b16 %v87, %v85
  %v116 = vpack.c.b16 %v88, %v86
  %v117 = vpack.c.b16 %v91, %v89
  %v118 = vpack.c.b16 %v92, %v90
  %v119 = vpack.c.b16 %v95, %v93
  %v120 = vpack.c.b16 %v96, %v94
  %v121 = vpack.c.b16 %v99, %v97
  %v122 = vpack.c.b16 %v100, %v98
  %v123 = vpack.c.b16 %v103, %v101
  %v124 = vpack.c.b16 %v104, %v102
  %v125 = vpack.c.b16 %v107, %v105
  %v126 = vpack.c.b16 %v108, %v106
  %v127 = vpack.c.b16 %v111, %v109
  %v128 = vpack.c.b16 %v112, %v110
  %145 = vmatprep.subr.bf16.mxu0 %v114
  %146 = vmatpush1.bf16.msra.mxu0 %v113
  %147 = vmatprep.subr.bf16.mxu0 %v116
  %148 = vmatpush1.bf16.msra.mxu0 %v115
  %149 = vmatprep.subr.bf16.mxu0 %v118
  %150 = vmatpush1.bf16.msra.mxu0 %v117
  %151 = vmatprep.subr.bf16.mxu0 %v120
  %152 = vmatpush1.bf16.msra.mxu0 %v119
  %153 = vmatprep.subr.bf16.mxu0 %v122
  %154 = vmatpush1.bf16.msra.mxu0 %v121
  %155 = vmatprep.subr.bf16.mxu0 %v124
  %156 = vmatpush1.bf16.msra.mxu0 %v123
  %157 = vmatprep.subr.bf16.mxu0 %v126
  %158 = vmatpush1.bf16.msra.mxu0 %v125
  %159 = vmatprep.subr.bf16.mxu0 %v128
  %160 = vmatpush1.bf16.msra.mxu0 %v127
  %161 = vmatprep.subr.bf16.mxu0 0
  %162 = vmatpush1.bf16.msra.mxu0 0
  %163 = vmatprep.subr.bf16.mxu0 0
  %164 = vmatpush1.bf16.msra.mxu0 0
  %165 = vmatprep.subr.bf16.mxu0 0
  %166 = vmatpush1.bf16.msra.mxu0 0
  %167 = vmatprep.subr.bf16.mxu0 0
  %168 = vmatpush1.bf16.msra.mxu0 0
  %169 = vmatprep.subr.bf16.mxu0 0
  %170 = vmatpush1.bf16.msra.mxu0 0
  %171 = vmatprep.subr.bf16.mxu0 0
  %172 = vmatpush1.bf16.msra.mxu0 0
  %173 = vmatprep.subr.bf16.mxu0 0
  %174 = vmatpush1.bf16.msra.mxu0 0
  %175 = vmatprep.subr.bf16.mxu0 0
  %176 = vmatpush1.bf16.msra.mxu0 0
  %177 = vmatprep.mubr.bf16.mxu0 0
  %178 = vmatmul.mubr.bf16.gmra.mrb[0].mxu0 %v63
  %v179 = vpop.f32.mrb[0].mxu0
  %v180 = vadd.f32 %v49, %v179
  %v181 = vpop.f32.mrb[0].mxu0
  %v182 = vadd.f32 %v53, %v181
  %v183 = vpop.f32.mrb[0].mxu0
  %v184 = vpop.f32.mrb[0].mxu0
  %185 = vdwg.mxu0
  %v186 = vmax.f32 %v180, 0.0
  %v187 = vmax.f32 %v182, 0.0
  %v188 = vpack.c.bf16 %v186, %v186
  %v189 = vpack.c.bf16 %v187, %v187
  %v190 = vld [vmem:[%s3] sm:$0xff]
  %v191 = vld [vmem:[%s3 + $0x8] sm:$0xff]
  %v192 = vld [vmem:[%s3 + $0x10] sm:$0xff]
  %v193 = vld [vmem:[%s3 + $0x18] sm:$0xff]
  %v194 = vld [vmem:[%s3 + $0x20] sm:$0xff]
  %v195 = vld [vmem:[%s3 + $0x28] sm:$0xff]
  %v196 = vld [vmem:[%s3 + $0x30] sm:$0xff]
  %v197 = vld [vmem:[%s3 + $0x38] sm:$0xff]
  %v198 = vld [vmem:[%s3 + $0x40] sm:$0xff]
  %v199 = vld [vmem:[%s3 + $0x48] sm:$0xff]
  %v200 = vld [vmem:[%s3 + $0x50] sm:$0xff]
  %v201 = vld [vmem:[%s3 + $0x58] sm:$0xff]
  %v202 = vld [vmem:[%s3 + $0x60] sm:$0xff]
  %v203 = vld [vmem:[%s3 + $0x68] sm:$0xff]
  %v204 = vld [vmem:[%s3 + $0x70] sm:$0xff]
  %v205 = vld [vmem:[%s3 + $0x78] sm:$0xff]
  %v206 = vld [vmem:[%s3 + $0x80] sm:$0xff]
  %v207 = vld [vmem:[%s3 + $0x88] sm:$0xff]
  %v208 = vld [vmem:[%s3 + $0x90] sm:$0xff]
  %v209 = vld [vmem:[%s3 + $0x98] sm:$0xff]
  %v210 = vld [vmem:[%s3 + $0xa0] sm:$0xff]
  %v211 = vld [vmem:[%s3 + $0xa8] sm:$0xff]
  %v212 = vld [vmem:[%s3 + $0xb0] sm:$0xff]
  %v213 = vld [vmem:[%s3 + $0xb8] sm:$0xff]
  %v214 = vld [vmem:[%s3 + $0xc0] sm:$0xff]
  %v215 = vld [vmem:[%s3 + $0xc8] sm:$0xff]
  %v216 = vld [vmem:[%s3 + $0xd0] sm:$0xff]
  %v217 = vld [vmem:[%s3 + $0xd8] sm:$0xff]
  %v218 = vld [vmem:[%s3 + $0xe0] sm:$0xff]
  %v219 = vld [vmem:[%s3 + $0xe8] sm:$0xff]
  %v220 = vld [vmem:[%s3 + $0xf0] sm:$0xff]
  %v221 = vld [vmem:[%s3 + $0xf8] sm:$0xff]
  %s222 = scalar_lea.vmem %s2, 1
  %v223 = vld [vmem:[%s222] ss:$2 sm:$0x3]
  %v225 = vlaneseq
  %v226 = vshrl.u32 %v225, 7
  %v227 = vsub.s32 0, %v226
  %v228 = vrot.slane %v223, %v227
  %v229 = vlaneseq
  %v230 = vshrl.u32 %v229, 7
  %v231 = vsub.s32 1, %v230
  %v232 = vrot.slane %v223, %v231
  %v267 = vunpack.c.l.b16 %v190
  %v268 = vunpack.c.h.b16 %v190
  %v269 = vunpack.c.l.b16 %v191
  %v270 = vunpack.c.h.b16 %v191
  %v271 = vunpack.c.l.b16 %v192
  %v272 = vunpack.c.h.b16 %v192
  %v273 = vunpack.c.l.b16 %v193
  %v274 = vunpack.c.h.b16 %v193
  %v275 = vunpack.c.l.b16 %v194
  %v276 = vunpack.c.h.b16 %v194
  %v277 = vunpack.c.l.b16 %v195
  %v278 = vunpack.c.h.b16 %v195
  %v279 = vunpack.c.l.b16 %v196
  %v280 = vunpack.c.h.b16 %v196
  %v281 = vunpack.c.l.b16 %v197
  %v282 = vunpack.c.h.b16 %v197
  %v283 = vunpack.c.l.b16 %v198
  %v284 = vunpack.c.h.b16 %v198
  %v285 = vunpack.c.l.b16 %v199
  %v286 = vunpack.c.h.b16 %v199
  %v287 = vunpack.c.l.b16 %v200
  %v288 = vunpack.c.h.b16 %v200
  %v289 = vunpack.c.l.b16 %v201
  %v290 = vunpack.c.h.b16 %v201
  %v291 = vunpack.c.l.b16 %v202
  %v292 = vunpack.c.h.b16 %v202
  %v293 = vunpack.c.l.b16 %v203
  %v294 = vunpack.c.h.b16 %v203
  %v295 = vunpack.c.l.b16 %v204
  %v296 = vunpack.c.h.b16 %v204
  %v297 = vunpack.c.l.b16 %v205
  %v298 = vunpack.c.h.b16 %v205
  %v299 = vunpack.c.l.b16 %v206
  %v300 = vunpack.c.h.b16 %v206
  %v301 = vunpack.c.l.b16 %v207
  %v302 = vunpack.c.h.b16 %v207
  %v303 = vunpack.c.l.b16 %v208
  %v304 = vunpack.c.h.b16 %v208
  %v305 = vunpack.c.l.b16 %v209
  %v306 = vunpack.c.h.b16 %v209
  %v307 = vunpack.c.l.b16 %v210
  %v308 = vunpack.c.h.b16 %v210
  %v309 = vunpack.c.l.b16 %v211
  %v310 = vunpack.c.h.b16 %v211
  %v311 = vunpack.c.l.b16 %v212
  %v312 = vunpack.c.h.b16 %v212
  %v313 = vunpack.c.l.b16 %v213
  %v314 = vunpack.c.h.b16 %v213
  %v315 = vunpack.c.l.b16 %v214
  %v316 = vunpack.c.h.b16 %v214
  %v317 = vunpack.c.l.b16 %v215
  %v318 = vunpack.c.h.b16 %v215
  %v319 = vunpack.c.l.b16 %v216
  %v320 = vunpack.c.h.b16 %v216
  %v321 = vunpack.c.l.b16 %v217
  %v322 = vunpack.c.h.b16 %v217
  %v323 = vunpack.c.l.b16 %v218
  %v324 = vunpack.c.h.b16 %v218
  %v325 = vunpack.c.l.b16 %v219
  %v326 = vunpack.c.h.b16 %v219
  %v327 = vunpack.c.l.b16 %v220
  %v328 = vunpack.c.h.b16 %v220
  %v329 = vunpack.c.l.b16 %v221
  %v330 = vunpack.c.h.b16 %v221
  %v331 = vpack.c.b16 %v269, %v267
  %v332 = vpack.c.b16 %v270, %v268
  %v333 = vpack.c.b16 %v273, %v271
  %v334 = vpack.c.b16 %v274, %v272
  %v335 = vpack.c.b16 %v277, %v275
  %v336 = vpack.c.b16 %v278, %v276
  %v337 = vpack.c.b16 %v281, %v279
  %v338 = vpack.c.b16 %v282, %v280
  %v339 = vpack.c.b16 %v285, %v283
  %v340 = vpack.c.b16 %v286, %v284
  %v341 = vpack.c.b16 %v289, %v287
  %v342 = vpack.c.b16 %v290, %v288
  %v343 = vpack.c.b16 %v293, %v291
  %v344 = vpack.c.b16 %v294, %v292
  %v345 = vpack.c.b16 %v297, %v295
  %v346 = vpack.c.b16 %v298, %v296
  %v347 = vpack.c.b16 %v301, %v299
  %v348 = vpack.c.b16 %v302, %v300
  %v349 = vpack.c.b16 %v305, %v303
  %v350 = vpack.c.b16 %v306, %v304
  %v351 = vpack.c.b16 %v309, %v307
  %v352 = vpack.c.b16 %v310, %v308
  %v353 = vpack.c.b16 %v313, %v311
  %v354 = vpack.c.b16 %v314, %v312
  %v355 = vpack.c.b16 %v317, %v315
  %v356 = vpack.c.b16 %v318, %v316
  %v357 = vpack.c.b16 %v321, %v319
  %v358 = vpack.c.b16 %v322, %v320
  %v359 = vpack.c.b16 %v325, %v323
  %v360 = vpack.c.b16 %v326, %v324
  %v361 = vpack.c.b16 %v329, %v327
  %v362 = vpack.c.b16 %v330, %v328
  %395 = vmatprep.subr.bf16.mxu0 %v332
  %396 = vmatpush1.bf16.msra.mxu0 %v331
  %397 = vmatprep.subr.bf16.mxu0 %v334
  %398 = vmatpush1.bf16.msra.mxu0 %v333
  %399 = vmatprep.subr.bf16.mxu0 %v336
  %400 = vmatpush1.bf16.msra.mxu0 %v335
  %401 = vmatprep.subr.bf16.mxu0 %v338
  %402 = vmatpush1.bf16.msra.mxu0 %v337
  %403 = vmatprep.subr.bf16.mxu0 %v340
  %404 = vmatpush1.bf16.msra.mxu0 %v339
  %405 = vmatprep.subr.bf16.mxu0 %v342
  %406 = vmatpush1.bf16.msra.mxu0 %v341
  %407 = vmatprep.subr.bf16.mxu0 %v344
  %408 = vmatpush1.bf16.msra.mxu0 %v343
  %409 = vmatprep.subr.bf16.mxu0 %v346
  %410 = vmatpush1.bf16.msra.mxu0 %v345
  %411 = vmatprep.subr.bf16.mxu0 %v348
  %412 = vmatpush1.bf16.msra.mxu0 %v347
  %413 = vmatprep.subr.bf16.mxu0 %v350
  %414 = vmatpush1.bf16.msra.mxu0 %v349
  %415 = vmatprep.subr.bf16.mxu0 %v352
  %416 = vmatpush1.bf16.msra.mxu0 %v351
  %417 = vmatprep.subr.bf16.mxu0 %v354
  %418 = vmatpush1.bf16.msra.mxu0 %v353
  %419 = vmatprep.subr.bf16.mxu0 %v356
  %420 = vmatpush1.bf16.msra.mxu0 %v355
  %421 = vmatprep.subr.bf16.mxu0 %v358
  %422 = vmatpush1.bf16.msra.mxu0 %v357
  %423 = vmatprep.subr.bf16.mxu0 %v360
  %424 = vmatpush1.bf16.msra.mxu0 %v359
  %425 = vmatprep.subr.bf16.mxu0 %v362
  %426 = vmatpush1.bf16.msra.mxu0 %v361
  %427 = vmatprep.mubr.bf16.mxu0 %v189
  %428 = vmatmul.mubr.bf16.gmra.mrb[0].mxu0 %v188
  %v429 = vpop.f32.mrb[0].mxu0
  %v430 = vadd.f32 %v228, %v429
  %v431 = vpop.f32.mrb[0].mxu0
  %v432 = vadd.f32 %v232, %v431
  %v433 = vpop.f32.mrb[0].mxu0
  %v434 = vpop.f32.mrb[0].mxu0
  %435 = vdwg.mxu0
  %v436 = vmax.f32 %v430, 0.0
  %v437 = vmax.f32 %v432, 0.0
  %v438 = vpack.c.bf16 %v436, %v436
  %v439 = vpack.c.bf16 %v437, %v437
  %v440 = vld [vmem:[%s4] sm:$0xf]
  %v441 = vld [vmem:[%s4 + $0x4] sm:$0xf]
  %v442 = vld [vmem:[%s4 + $0x8] sm:$0xf]
  %v443 = vld [vmem:[%s4 + $0xc] sm:$0xf]
  %v444 = vld [vmem:[%s4 + $0x10] sm:$0xf]
  %v445 = vld [vmem:[%s4 + $0x14] sm:$0xf]
  %v446 = vld [vmem:[%s4 + $0x18] sm:$0xf]
  %v447 = vld [vmem:[%s4 + $0x1c] sm:$0xf]
  %v448 = vld [vmem:[%s4 + $0x20] sm:$0xf]
  %v449 = vld [vmem:[%s4 + $0x24] sm:$0xf]
  %v450 = vld [vmem:[%s4 + $0x28] sm:$0xf]
  %v451 = vld [vmem:[%s4 + $0x2c] sm:$0xf]
  %v452 = vld [vmem:[%s4 + $0x30] sm:$0xf]
  %v453 = vld [vmem:[%s4 + $0x34] sm:$0xf]
  %v454 = vld [vmem:[%s4 + $0x38] sm:$0xf]
  %v455 = vld [vmem:[%s4 + $0x3c] sm:$0xf]
  %v456 = vld [vmem:[%s4 + $0x40] sm:$0xf]
  %v457 = vld [vmem:[%s4 + $0x44] sm:$0xf]
  %v458 = vld [vmem:[%s4 + $0x48] sm:$0xf]
  %v459 = vld [vmem:[%s4 + $0x4c] sm:$0xf]
  %v460 = vld [vmem:[%s4 + $0x50] sm:$0xf]
  %v461 = vld [vmem:[%s4 + $0x54] sm:$0xf]
  %v462 = vld [vmem:[%s4 + $0x58] sm:$0xf]
  %v463 = vld [vmem:[%s4 + $0x5c] sm:$0xf]
  %v464 = vld [vmem:[%s4 + $0x60] sm:$0xf]
  %v465 = vld [vmem:[%s4 + $0x64] sm:$0xf]
  %v466 = vld [vmem:[%s4 + $0x68] sm:$0xf]
  %v467 = vld [vmem:[%s4 + $0x6c] sm:$0xf]
  %v468 = vld [vmem:[%s4 + $0x70] sm:$0xf]
  %v469 = vld [vmem:[%s4 + $0x74] sm:$0xf]
  %v470 = vld [vmem:[%s4 + $0x78] sm:$0xf]
  %v471 = vld [vmem:[%s4 + $0x7c] sm:$0xf]
  %v472 = vld [vmem:[%s5] sm:$0x1]
  %v474 = vlaneseq
  %v475 = vshrl.u32 %v474, 7
  %v476 = vsub.s32 0, %v475
  %v477 = vrot.slane %v472, %v476
  %v511 = vunpack.c.l.b16 %v440
  %v512 = vunpack.c.l.b16 %v441
  %v513 = vunpack.c.l.b16 %v442
  %v514 = vunpack.c.l.b16 %v443
  %v515 = vunpack.c.l.b16 %v444
  %v516 = vunpack.c.l.b16 %v445
  %v517 = vunpack.c.l.b16 %v446
  %v518 = vunpack.c.l.b16 %v447
  %v519 = vunpack.c.l.b16 %v448
  %v520 = vunpack.c.l.b16 %v449
  %v521 = vunpack.c.l.b16 %v450
  %v522 = vunpack.c.l.b16 %v451
  %v523 = vunpack.c.l.b16 %v452
  %v524 = vunpack.c.l.b16 %v453
  %v525 = vunpack.c.l.b16 %v454
  %v526 = vunpack.c.l.b16 %v455
  %v527 = vunpack.c.l.b16 %v456
  %v528 = vunpack.c.l.b16 %v457
  %v529 = vunpack.c.l.b16 %v458
  %v530 = vunpack.c.l.b16 %v459
  %v531 = vunpack.c.l.b16 %v460
  %v532 = vunpack.c.l.b16 %v461
  %v533 = vunpack.c.l.b16 %v462
  %v534 = vunpack.c.l.b16 %v463
  %v535 = vunpack.c.l.b16 %v464
  %v536 = vunpack.c.l.b16 %v465
  %v537 = vunpack.c.l.b16 %v466
  %v538 = vunpack.c.l.b16 %v467
  %v539 = vunpack.c.l.b16 %v468
  %v540 = vunpack.c.l.b16 %v469
  %v541 = vunpack.c.l.b16 %v470
  %v542 = vunpack.c.l.b16 %v471
  %v543 = vpack.c.b16 %v512, %v511
  %v544 = vpack.c.b16 %v514, %v513
  %v545 = vpack.c.b16 %v516, %v515
  %v546 = vpack.c.b16 %v518, %v517
  %v547 = vpack.c.b16 %v520, %v519
  %v548 = vpack.c.b16 %v522, %v521
  %v549 = vpack.c.b16 %v524, %v523
  %v550 = vpack.c.b16 %v526, %v525
  %v551 = vpack.c.b16 %v528, %v527
  %v552 = vpack.c.b16 %v530, %v529
  %v553 = vpack.c.b16 %v532, %v531
  %v554 = vpack.c.b16 %v534, %v533
  %v555 = vpack.c.b16 %v536, %v535
  %v556 = vpack.c.b16 %v538, %v537
  %v557 = vpack.c.b16 %v540, %v539
  %v558 = vpack.c.b16 %v542, %v541
  %575 = vmatprep.subr.bf16.mxu0 0
  %576 = vmatpush1.bf16.msra.mxu0 %v543
  %577 = vmatprep.subr.bf16.mxu0 0
  %578 = vmatpush1.bf16.msra.mxu0 %v544
  %579 = vmatprep.subr.bf16.mxu0 0
  %580 = vmatpush1.bf16.msra.mxu0 %v545
  %581 = vmatprep.subr.bf16.mxu0 0
  %582 = vmatpush1.bf16.msra.mxu0 %v546
  %583 = vmatprep.subr.bf16.mxu0 0
  %584 = vmatpush1.bf16.msra.mxu0 %v547
  %585 = vmatprep.subr.bf16.mxu0 0
  %586 = vmatpush1.bf16.msra.mxu0 %v548
  %587 = vmatprep.subr.bf16.mxu0 0
  %588 = vmatpush1.bf16.msra.mxu0 %v549
  %589 = vmatprep.subr.bf16.mxu0 0
  %590 = vmatpush1.bf16.msra.mxu0 %v550
  %591 = vmatprep.subr.bf16.mxu0 0
  %592 = vmatpush1.bf16.msra.mxu0 %v551
  %593 = vmatprep.subr.bf16.mxu0 0
  %594 = vmatpush1.bf16.msra.mxu0 %v552
  %595 = vmatprep.subr.bf16.mxu0 0
  %596 = vmatpush1.bf16.msra.mxu0 %v553
  %597 = vmatprep.subr.bf16.mxu0 0
  %598 = vmatpush1.bf16.msra.mxu0 %v554
  %599 = vmatprep.subr.bf16.mxu0 0
  %600 = vmatpush1.bf16.msra.mxu0 %v555
  %601 = vmatprep.subr.bf16.mxu0 0
  %602 = vmatpush1.bf16.msra.mxu0 %v556
  %603 = vmatprep.subr.bf16.mxu0 0
  %604 = vmatpush1.bf16.msra.mxu0 %v557
  %605 = vmatprep.subr.bf16.mxu0 0
  %606 = vmatpush1.bf16.msra.mxu0 %v558
  %607 = vmatprep.mubr.bf16.mxu0 %v439
  %608 = vmatmul.mubr.bf16.gmra.mrb[0].mxu0 %v438
  %v609 = vpop.f32.mrb[0].mxu0
  %v610 = vadd.f32 %v477, %v609
  %v611 = vpop.f32.mrb[0].mxu0
  %v612 = vpop.f32.mrb[0].mxu0
  %v613 = vpop.f32.mrb[0].mxu0
  %614 = vdwg.mxu0
  %615 = vst [vmem:[%s6] sm:$0x3] %v610
  // Predicated region
  $region26: #{autoencoder_transpn_forward.3} parent=0 // pred_check
    _
  $region27: #{autoencoder_transpn_forward.3} parent=0 // pred_check_branch
    %617 = sbr.rel (0) target = $region29
  $region28: #{autoencoder_transpn_forward.3} parent=0 // pred_region
    _
  $region29: #{autoencoder_transpn_forward.3} parent=0 // pred_fallthru
    _
  // Predicated region
  $region30: #{autoencoder_transpn_forward.3} parent=0 // pred_check
    _
  $region31: #{autoencoder_transpn_forward.3} parent=0 // pred_check_branch
    %619 = sbr.rel (0) target = $region33
  $region32: #{autoencoder_transpn_forward.3} parent=0 // pred_region
    _
  $region33: #{autoencoder_transpn_forward.3} parent=0 // pred_fallthru
    _

// kernel: autoencoder_transpn_forward.2
$region0: #{autoencoder_transpn_forward.2}
  #allocation0 [shape = 'u32[]', space=smem, size = 0x4, offset = 0x4, fixed_abs, tag = 'smem constant byte address 0x4 - core index']
  #allocation1 [shape = 'u32[144,128]{1,0:T(1,128)}', space=vmem, size = 0x12000, scoped, tag = 'internal scratch']
  #allocation2 [shape = 'f32[96,1]{1,0:T(8,128)}', space=vmem, size = 0xc000, scoped, tag = 'scratch operand']
  %s0 = inlined_call_operand.vmem [shape: f32[2,3,16], index: 0, kind: input, shape index: {}]
  %s1 = inlined_call_operand.vmem [shape: f32[192,4], index: 1, kind: input, shape index: {}]
  %s2 = inlined_call_operand.vmem [shape: bf16[384,192], index: 2, kind: input, shape index: {}]
  %s3 = inlined_call_operand.vmem [shape: bf16[96,384], index: 3, kind: input, shape index: {}]
  %s4 = inlined_call_operand.vmem [shape: f32[480,1], index: 4, kind: input, shape index: {}]
  %s5 = inlined_call_operand.vmem [shape: bf16[32,96], index: 5, kind: input, shape index: {}]
  %s6 = inlined_call_operand.vmem [shape: f32[1,96], index: 6, kind: input, shape index: {}]
  %s7 = inlined_call_operand.vmem [shape: bf16[32,32], index: 7, kind: input, shape index: {}]
  %s8 = inlined_call_operand.vmem [shape: bf16[32,64], index: 8, kind: input, shape index: {}]
  %s9 = inlined_call_operand.vmem [shape: f32[1,64], index: 9, kind: input, shape index: {}]
  %s10 = inlined_call_operand.vmem [shape: bf16[64,32], index: 10, kind: input, shape index: {}]
  %s11 = inlined_call_operand.vmem [shape: bf16[32,128], index: 11, kind: input, shape index: {}]
  %s12 = inlined_call_operand.vmem [shape: f32[8,128], index: 12, kind: input, shape index: {}]
  %s13 = inlined_call_operand.vmem [shape: f32[2,1,128], index: 13, kind: output, shape index: {}]
  %s14 = sld [smem:[#allocation0]]
  $region93: #{autoencoder_transpn_forward.2} parent=0
    _
  %s16 = ssub.s32 1, %s14
  %s17 = scalar_select 0, %s16, %s14
  loop: start=0, step=1, limit=4
  $region2: #{autoencoder_transpn_forward.2} parent=0 // loop_pre_header
    _
  $region3: #{autoencoder_transpn_forward.2} parent=0 // loop_header
    %s19 = sphi 0, %s23
    %p20 = scmp.ge.s32.totalorder %s19, 4
    %s26 = sphi 0, %s38
    %s27 = sphi 0, %s34
    %s28 = sphi 0, %s26
    %s29 = sphi 0, %s27
    %s30 = sphi 0, %s28
    %s31 = sphi 0, %s29
    %s43 = sphi 0, %s45
    %s46 = sphi 0, %s43
    %s47 = sphi 0, %s46
    %s63 = sphi 0, %s47
    %s67 = sphi 0, %s67
    %s69 = sphi 0, %s67
    %s70 = sphi 0, %s69
    %s84 = sphi 0, %s70
    %s88 = sphi 0, %s88
    %s90 = sphi 0, %s88
    %s91 = sphi 0, %s90
    %s105 = sphi 0, %s91
    %s109 = sphi 0, %s109
    %s111 = sphi 0, %s109
    %s112 = sphi 0, %s111
    %s126 = sphi 0, %s112
    %s130 = sphi 0, %s130
    %s132 = sphi 0, %s130
    %s133 = sphi 0, %s132
    %s147 = sphi 0, %s133
    %s151 = sphi 0, %s151
    %s153 = sphi 0, %s151
    %s154 = sphi 0, %s153
    %s168 = sphi 0, %s154
    %s172 = sphi 0, %s172
    %s174 = sphi 0, %s172
    %s175 = sphi 0, %s174
    %s189 = sphi 0, %s175
    %s193 = sphi 0, %s193
    %s195 = sphi 0, %s193
    %s196 = sphi 0, %s195
    %s210 = sphi 0, %s196
    %s214 = sphi 0, %s214
    %s216 = sphi 0, %s214
    %s217 = sphi 0, %s216
    %s231 = sphi 0, %s217
    %s235 = sphi 0, %s235
    %s237 = sphi 0, %s235
    %s238 = sphi 0, %s237
    %s252 = sphi 0, %s238
    %s256 = sphi 0, %s256
    %s258 = sphi 0, %s256
    %s259 = sphi 0, %s258
    %s273 = sphi 0, %s259
    %s277 = sphi 0, %s277
    %s279 = sphi 0, %s277
    %s280 = sphi 0, %s279
    %s294 = sphi 0, %s280
    %s298 = sphi 0, %s298
    %s300 = sphi 0, %s298
    %s301 = sphi 0, %s300
    %s315 = sphi 0, %s301
    %s321 = sphi 0, %s323
    %s324 = sphi 0, %s321
    %s325 = sphi 0, %s324
    %s341 = sphi 0, %s325
  $region4: #{autoencoder_transpn_forward.2} parent=0 // loop_header_branch
    %22 = sbr.rel (%p20) target = $region8
  $region5: #{autoencoder_transpn_forward.2} parent=0 // loop_body
    %s24 = ssub.s32 %s19, 1
    %s25 = ssub.s32 %s19, 2
    %s32 = sadd.s32 1, %s27
    %p33 = scmp.ge.s32.totalorder %s32, 1
    %s34 = scalar_select %p33, 0, %s32
    %s35 = sadd.s32 1, %s26
    %s36 = scalar_select %p33, %s35, %s26
    %p37 = scmp.ge.s32.totalorder %s36, 2
    %s38 = scalar_select %p37, 0, %s36
    %s39 = ssub.s32 %s26, %s38
    %s40 = ssub.s32 %s27, %s34
    %s41 = sor.u32 %s39, %s40
    %p42 = scmp.eq.s32.totalorder %s41, 0
    %s44 = sadd.s32 %s43, 1
    %s45 = scalar_select %p42, %s43, %s44
    %p48 = pneg %p42
    %p49 = scmp.eq.s32.totalorder %s19, 1
    %p50 = por %p48, %p49
    %p51 = scmp.ne.s32.totalorder %s43, %s46
    %p52 = scmp.eq.s32.totalorder %s19, 0
    %p53 = por %p51, %p52
    %p54 = scmp.ne.s32.totalorder %s43, %s46
    %p55 = scmp.eq.s32.totalorder %s24, 1
    %p56 = por %p54, %p55
    %p57 = scmp.ne.s32.totalorder %s46, %s47
    %p58 = scmp.eq.s32.totalorder %s24, 0
    %p59 = por %p57, %p58
    %p60 = scmp.ne.s32.totalorder %s46, %s47
    %p61 = scmp.eq.s32.totalorder %s25, 1
    %p62 = por %p60, %p61
    %p64 = scmp.ne.s32.totalorder %s47, %s63
    %p65 = scmp.eq.s32.totalorder %s25, 0
    %p66 = por %p64, %p65
    %s68 = sadd.s32 %s67, 1
    %p71 = scmp.eq.s32.totalorder %s19, 1
    %p72 = scmp.ne.s32.totalorder %s67, %s69
    %p73 = scmp.eq.s32.totalorder %s19, 0
    %p74 = por %p72, %p73
    %p75 = scmp.ne.s32.totalorder %s67, %s69
    %p76 = scmp.eq.s32.totalorder %s24, 1
    %p77 = por %p75, %p76
    %p78 = scmp.ne.s32.totalorder %s69, %s70
    %p79 = scmp.eq.s32.totalorder %s24, 0
    %p80 = por %p78, %p79
    %p81 = scmp.ne.s32.totalorder %s69, %s70
    %p82 = scmp.eq.s32.totalorder %s25, 1
    %p83 = por %p81, %p82
    %p85 = scmp.ne.s32.totalorder %s70, %s84
    %p86 = scmp.eq.s32.totalorder %s25, 0
    %p87 = por %p85, %p86
    %s89 = sadd.s32 %s88, 1
    %p92 = scmp.eq.s32.totalorder %s19, 1
    %p93 = scmp.ne.s32.totalorder %s88, %s90
    %p94 = scmp.eq.s32.totalorder %s19, 0
    %p95 = por %p93, %p94
    %p96 = scmp.ne.s32.totalorder %s88, %s90
    %p97 = scmp.eq.s32.totalorder %s24, 1
    %p98 = por %p96, %p97
    %p99 = scmp.ne.s32.totalorder %s90, %s91
    %p100 = scmp.eq.s32.totalorder %s24, 0
    %p101 = por %p99, %p100
    %p102 = scmp.ne.s32.totalorder %s90, %s91
    %p103 = scmp.eq.s32.totalorder %s25, 1
    %p104 = por %p102, %p103
    %p106 = scmp.ne.s32.totalorder %s91, %s105
    %p107 = scmp.eq.s32.totalorder %s25, 0
    %p108 = por %p106, %p107
    %s110 = sadd.s32 %s109, 1
    %p113 = scmp.eq.s32.totalorder %s19, 1
    %p114 = scmp.ne.s32.totalorder %s109, %s111
    %p115 = scmp.eq.s32.totalorder %s19, 0
    %p116 = por %p114, %p115
    %p117 = scmp.ne.s32.totalorder %s109, %s111
    %p118 = scmp.eq.s32.totalorder %s24, 1
    %p119 = por %p117, %p118
    %p120 = scmp.ne.s32.totalorder %s111, %s112
    %p121 = scmp.eq.s32.totalorder %s24, 0
    %p122 = por %p120, %p121
    %p123 = scmp.ne.s32.totalorder %s111, %s112
    %p124 = scmp.eq.s32.totalorder %s25, 1
    %p125 = por %p123, %p124
    %p127 = scmp.ne.s32.totalorder %s112, %s126
    %p128 = scmp.eq.s32.totalorder %s25, 0
    %p129 = por %p127, %p128
    %s131 = sadd.s32 %s130, 1
    %p134 = scmp.eq.s32.totalorder %s19, 1
    %p135 = scmp.ne.s32.totalorder %s130, %s132
    %p136 = scmp.eq.s32.totalorder %s19, 0
    %p137 = por %p135, %p136
    %p138 = scmp.ne.s32.totalorder %s130, %s132
    %p139 = scmp.eq.s32.totalorder %s24, 1
    %p140 = por %p138, %p139
    %p141 = scmp.ne.s32.totalorder %s132, %s133
    %p142 = scmp.eq.s32.totalorder %s24, 0
    %p143 = por %p141, %p142
    %p144 = scmp.ne.s32.totalorder %s132, %s133
    %p145 = scmp.eq.s32.totalorder %s25, 1
    %p146 = por %p144, %p145
    %p148 = scmp.ne.s32.totalorder %s133, %s147
    %p149 = scmp.eq.s32.totalorder %s25, 0
    %p150 = por %p148, %p149
    %s152 = sadd.s32 %s151, 1
    %p155 = scmp.eq.s32.totalorder %s19, 1
    %p156 = scmp.ne.s32.totalorder %s151, %s153
    %p157 = scmp.eq.s32.totalorder %s19, 0
    %p158 = por %p156, %p157
    %p159 = scmp.ne.s32.totalorder %s151, %s153
    %p160 = scmp.eq.s32.totalorder %s24, 1
    %p161 = por %p159, %p160
    %p162 = scmp.ne.s32.totalorder %s153, %s154
    %p163 = scmp.eq.s32.totalorder %s24, 0
    %p164 = por %p162, %p163
    %p165 = scmp.ne.s32.totalorder %s153, %s154
    %p166 = scmp.eq.s32.totalorder %s25, 1
    %p167 = por %p165, %p166
    %p169 = scmp.ne.s32.totalorder %s154, %s168
    %p170 = scmp.eq.s32.totalorder %s25, 0
    %p171 = por %p169, %p170
    %s173 = sadd.s32 %s172, 1
    %p176 = scmp.eq.s32.totalorder %s19, 1
    %p177 = scmp.ne.s32.totalorder %s172, %s174
    %p178 = scmp.eq.s32.totalorder %s19, 0
    %p179 = por %p177, %p178
    %p180 = scmp.ne.s32.totalorder %s172, %s174
    %p181 = scmp.eq.s32.totalorder %s24, 1
    %p182 = por %p180, %p181
    %p183 = scmp.ne.s32.totalorder %s174, %s175
    %p184 = scmp.eq.s32.totalorder %s24, 0
    %p185 = por %p183, %p184
    %p186 = scmp.ne.s32.totalorder %s174, %s175
    %p187 = scmp.eq.s32.totalorder %s25, 1
    %p188 = por %p186, %p187
    %p190 = scmp.ne.s32.totalorder %s175, %s189
    %p191 = scmp.eq.s32.totalorder %s25, 0
    %p192 = por %p190, %p191
    %s194 = sadd.s32 %s193, 1
    %p197 = scmp.eq.s32.totalorder %s19, 1
    %p198 = scmp.ne.s32.totalorder %s193, %s195
    %p199 = scmp.eq.s32.totalorder %s19, 0
    %p200 = por %p198, %p199
    %p201 = scmp.ne.s32.totalorder %s193, %s195
    %p202 = scmp.eq.s32.totalorder %s24, 1
    %p203 = por %p201, %p202
    %p204 = scmp.ne.s32.totalorder %s195, %s196
    %p205 = scmp.eq.s32.totalorder %s24, 0
    %p206 = por %p204, %p205
    %p207 = scmp.ne.s32.totalorder %s195, %s196
    %p208 = scmp.eq.s32.totalorder %s25, 1
    %p209 = por %p207, %p208
    %p211 = scmp.ne.s32.totalorder %s196, %s210
    %p212 = scmp.eq.s32.totalorder %s25, 0
    %p213 = por %p211, %p212
    %s215 = sadd.s32 %s214, 1
    %p218 = scmp.eq.s32.totalorder %s19, 1
    %p219 = scmp.ne.s32.totalorder %s214, %s216
    %p220 = scmp.eq.s32.totalorder %s19, 0
    %p221 = por %p219, %p220
    %p222 = scmp.ne.s32.totalorder %s214, %s216
    %p223 = scmp.eq.s32.totalorder %s24, 1
    %p224 = por %p222, %p223
    %p225 = scmp.ne.s32.totalorder %s216, %s217
    %p226 = scmp.eq.s32.totalorder %s24, 0
    %p227 = por %p225, %p226
    %p228 = scmp.ne.s32.totalorder %s216, %s217
    %p229 = scmp.eq.s32.totalorder %s25, 1
    %p230 = por %p228, %p229
    %p232 = scmp.ne.s32.totalorder %s217, %s231
    %p233 = scmp.eq.s32.totalorder %s25, 0
    %p234 = por %p232, %p233
    %s236 = sadd.s32 %s235, 1
    %p239 = scmp.eq.s32.totalorder %s19, 1
    %p240 = scmp.ne.s32.totalorder %s235, %s237
    %p241 = scmp.eq.s32.totalorder %s19, 0
    %p242 = por %p240, %p241
    %p243 = scmp.ne.s32.totalorder %s235, %s237
    %p244 = scmp.eq.s32.totalorder %s24, 1
    %p245 = por %p243, %p244
    %p246 = scmp.ne.s32.totalorder %s237, %s238
    %p247 = scmp.eq.s32.totalorder %s24, 0
    %p248 = por %p246, %p247
    %p249 = scmp.ne.s32.totalorder %s237, %s238
    %p250 = scmp.eq.s32.totalorder %s25, 1
    %p251 = por %p249, %p250
    %p253 = scmp.ne.s32.totalorder %s238, %s252
    %p254 = scmp.eq.s32.totalorder %s25, 0
    %p255 = por %p253, %p254
    %s257 = sadd.s32 %s256, 1
    %p260 = scmp.eq.s32.totalorder %s19, 1
    %p261 = scmp.ne.s32.totalorder %s256, %s258
    %p262 = scmp.eq.s32.totalorder %s19, 0
    %p263 = por %p261, %p262
    %p264 = scmp.ne.s32.totalorder %s256, %s258
    %p265 = scmp.eq.s32.totalorder %s24, 1
    %p266 = por %p264, %p265
    %p267 = scmp.ne.s32.totalorder %s258, %s259
    %p268 = scmp.eq.s32.totalorder %s24, 0
    %p269 = por %p267, %p268
    %p270 = scmp.ne.s32.totalorder %s258, %s259
    %p271 = scmp.eq.s32.totalorder %s25, 1
    %p272 = por %p270, %p271
    %p274 = scmp.ne.s32.totalorder %s259, %s273
    %p275 = scmp.eq.s32.totalorder %s25, 0
    %p276 = por %p274, %p275
    %s278 = sadd.s32 %s277, 1
    %p281 = scmp.eq.s32.totalorder %s19, 1
    %p282 = scmp.ne.s32.totalorder %s277, %s279
    %p283 = scmp.eq.s32.totalorder %s19, 0
    %p284 = por %p282, %p283
    %p285 = scmp.ne.s32.totalorder %s277, %s279
    %p286 = scmp.eq.s32.totalorder %s24, 1
    %p287 = por %p285, %p286
    %p288 = scmp.ne.s32.totalorder %s279, %s280
    %p289 = scmp.eq.s32.totalorder %s24, 0
    %p290 = por %p288, %p289
    %p291 = scmp.ne.s32.totalorder %s279, %s280
    %p292 = scmp.eq.s32.totalorder %s25, 1
    %p293 = por %p291, %p292
    %p295 = scmp.ne.s32.totalorder %s280, %s294
    %p296 = scmp.eq.s32.totalorder %s25, 0
    %p297 = por %p295, %p296
    %s299 = sadd.s32 %s298, 1
    %p302 = scmp.eq.s32.totalorder %s19, 1
    %p303 = scmp.ne.s32.totalorder %s298, %s300
    %p304 = scmp.eq.s32.totalorder %s19, 0
    %p305 = por %p303, %p304
    %p306 = scmp.ne.s32.totalorder %s298, %s300
    %p307 = scmp.eq.s32.totalorder %s24, 1
    %p308 = por %p306, %p307
    %p309 = scmp.ne.s32.totalorder %s300, %s301
    %p310 = scmp.eq.s32.totalorder %s24, 0
    %p311 = por %p309, %p310
    %p312 = scmp.ne.s32.totalorder %s300, %s301
    %p313 = scmp.eq.s32.totalorder %s25, 1
    %p314 = por %p312, %p313
    %p316 = scmp.ne.s32.totalorder %s301, %s315
    %p317 = scmp.eq.s32.totalorder %s25, 0
    %p318 = por %p316, %p317
    %s319 = ssub.s32 %s26, %s38
    %p320 = scmp.eq.s32.totalorder %s319, 0
    %s322 = sadd.s32 %s321, 1
    %s323 = scalar_select %p320, %s321, %s322
    %p326 = pneg %p320
    %p327 = scmp.eq.s32.totalorder %s19, 1
    %p328 = por %p326, %p327
    %p329 = scmp.ne.s32.totalorder %s321, %s324
    %p330 = scmp.eq.s32.totalorder %s19, 0
    %p331 = por %p329, %p330
    %p332 = scmp.ne.s32.totalorder %s321, %s324
    %p333 = scmp.eq.s32.totalorder %s24, 1
    %p334 = por %p332, %p333
    %p335 = scmp.ne.s32.totalorder %s324, %s325
    %p336 = scmp.eq.s32.totalorder %s24, 0
    %p337 = por %p335, %p336
    %p338 = scmp.ne.s32.totalorder %s324, %s325
    %p339 = scmp.eq.s32.totalorder %s25, 1
    %p340 = por %p338, %p339
    %p342 = scmp.ne.s32.totalorder %s325, %s341
    %p343 = scmp.eq.s32.totalorder %s25, 0
    %p344 = por %p342, %p343
    %p345 = scmp.le.s32.totalorder 1, %s19
    %p346 = scmp.lt.s32.totalorder %s19, 3
    %p347 = pnand %p345, %p346
    %p348 = pneg %p347
    // Predicated region
    $region9: #{autoencoder_transpn_forward.2} parent=5 // pred_check
      _
    $region10: #{autoencoder_transpn_forward.2} parent=5 // pred_check_branch
      %350 = sbr.rel (%p347) target = $region12
    $region11: #{autoencoder_transpn_forward.2} parent=5 // pred_region
      %s351 = ssub.s32 %s19, 1
      // Predicated region
      $region13: #{autoencoder_transpn_forward.2} parent=11 // pred_check
        %p352 = pneg %p80
      $region14: #{autoencoder_transpn_forward.2} parent=11 // pred_check_branch
        %354 = sbr.rel (%p352) target = $region16
      $region15: #{autoencoder_transpn_forward.2} parent=11 // pred_region
        _
      $region16: #{autoencoder_transpn_forward.2} parent=11 // pred_fallthru
        _
      // Predicated region
      $region17: #{autoencoder_transpn_forward.2} parent=11 // pred_check
        %p355 = pneg %p101
      $region18: #{autoencoder_transpn_forward.2} parent=11 // pred_check_branch
        %357 = sbr.rel (%p355) target = $region20
      $region19: #{autoencoder_transpn_forward.2} parent=11 // pred_region
        _
      $region20: #{autoencoder_transpn_forward.2} parent=11 // pred_fallthru
        _
      // Predicated region
      $region21: #{autoencoder_transpn_forward.2} parent=11 // pred_check
        %p358 = pneg %p122
      $region22: #{autoencoder_transpn_forward.2} parent=11 // pred_check_branch
        %360 = sbr.rel (%p358) target = $region24
      $region23: #{autoencoder_transpn_forward.2} parent=11 // pred_region
        _
      $region24: #{autoencoder_transpn_forward.2} parent=11 // pred_fallthru
        _
      // Predicated region
      $region25: #{autoencoder_transpn_forward.2} parent=11 // pred_check
        %p361 = pneg %p143
      $region26: #{autoencoder_transpn_forward.2} parent=11 // pred_check_branch
        %363 = sbr.rel (%p361) target = $region28
      $region27: #{autoencoder_transpn_forward.2} parent=11 // pred_region
        _
      $region28: #{autoencoder_transpn_forward.2} parent=11 // pred_fallthru
        _
      // Predicated region
      $region29: #{autoencoder_transpn_forward.2} parent=11 // pred_check
        %p364 = pneg %p164
      $region30: #{autoencoder_transpn_forward.2} parent=11 // pred_check_branch
        %366 = sbr.rel (%p364) target = $region32
      $region31: #{autoencoder_transpn_forward.2} parent=11 // pred_region
        _
      $region32: #{autoencoder_transpn_forward.2} parent=11 // pred_fallthru
        _
      // Predicated region
      $region33: #{autoencoder_transpn_forward.2} parent=11 // pred_check
        %p367 = pneg %p185
      $region34: #{autoencoder_transpn_forward.2} parent=11 // pred_check_branch
        %369 = sbr.rel (%p367) target = $region36
      $region35: #{autoencoder_transpn_forward.2} parent=11 // pred_region
        _
      $region36: #{autoencoder_transpn_forward.2} parent=11 // pred_fallthru
        _
      // Predicated region
      $region37: #{autoencoder_transpn_forward.2} parent=11 // pred_check
        %p370 = pneg %p206
      $region38: #{autoencoder_transpn_forward.2} parent=11 // pred_check_branch
        %372 = sbr.rel (%p370) target = $region40
      $region39: #{autoencoder_transpn_forward.2} parent=11 // pred_region
        _
      $region40: #{autoencoder_transpn_forward.2} parent=11 // pred_fallthru
        _
      // Predicated region
      $region41: #{autoencoder_transpn_forward.2} parent=11 // pred_check
        %p373 = pneg %p227
      $region42: #{autoencoder_transpn_forward.2} parent=11 // pred_check_branch
        %375 = sbr.rel (%p373) target = $region44
      $region43: #{autoencoder_transpn_forward.2} parent=11 // pred_region
        _
      $region44: #{autoencoder_transpn_forward.2} parent=11 // pred_fallthru
        _
      // Predicated region
      $region45: #{autoencoder_transpn_forward.2} parent=11 // pred_check
        %p376 = pneg %p248
      $region46: #{autoencoder_transpn_forward.2} parent=11 // pred_check_branch
        %378 = sbr.rel (%p376) target = $region48
      $region47: #{autoencoder_transpn_forward.2} parent=11 // pred_region
        _
      $region48: #{autoencoder_transpn_forward.2} parent=11 // pred_fallthru
        _
      // Predicated region
      $region49: #{autoencoder_transpn_forward.2} parent=11 // pred_check
        %p379 = pneg %p269
      $region50: #{autoencoder_transpn_forward.2} parent=11 // pred_check_branch
        %381 = sbr.rel (%p379) target = $region52
      $region51: #{autoencoder_transpn_forward.2} parent=11 // pred_region
        _
      $region52: #{autoencoder_transpn_forward.2} parent=11 // pred_fallthru
        _
      // Predicated region
      $region53: #{autoencoder_transpn_forward.2} parent=11 // pred_check
        %p382 = pneg %p290
      $region54: #{autoencoder_transpn_forward.2} parent=11 // pred_check_branch
        %384 = sbr.rel (%p382) target = $region56
      $region55: #{autoencoder_transpn_forward.2} parent=11 // pred_region
        _
      $region56: #{autoencoder_transpn_forward.2} parent=11 // pred_fallthru
        _
      // Predicated region
      $region57: #{autoencoder_transpn_forward.2} parent=11 // pred_check
        %p385 = pneg %p311
      $region58: #{autoencoder_transpn_forward.2} parent=11 // pred_check_branch
        %387 = sbr.rel (%p385) target = $region60
      $region59: #{autoencoder_transpn_forward.2} parent=11 // pred_region
        _
      $region60: #{autoencoder_transpn_forward.2} parent=11 // pred_fallthru
        _
    $region12: #{autoencoder_transpn_forward.2} parent=5 // pred_fallthru
      _
    %p388 = scmp.lt.s32.totalorder %s19, 2
    // Predicated region
    $region61: #{autoencoder_transpn_forward.2} parent=5 // pred_check
      %p389 = pneg %p388
    $region62: #{autoencoder_transpn_forward.2} parent=5 // pred_check_branch
      %391 = sbr.rel (%p389) target = $region64
    $region63: #{autoencoder_transpn_forward.2} parent=5 // pred_region
      // Predicated region
      $region65: #{autoencoder_transpn_forward.2} parent=63 // pred_check
        %p392 = pneg %p53
      $region66: #{autoencoder_transpn_forward.2} parent=63 // pred_check_branch
        %394 = sbr.rel (%p392) target = $region68
      $region67: #{autoencoder_transpn_forward.2} parent=63 // pred_region
        %p395 = scmp.lt.s32.totalorder %s26, 1
        %s396 = scalar_select %p395, %s26, 1
        %p397 = scmp.lt.s32.totalorder %s27, 0
        %s398 = scalar_select %p397, %s27, 0
        %s399 = sadd.s32 %s398, %s396
        %s400 = smul.addr %s399, 4
        %s401 = scalar_lea.vmem %s0, %s400
      $region68: #{autoencoder_transpn_forward.2} parent=63 // pred_fallthru
        _
    $region64: #{autoencoder_transpn_forward.2} parent=5 // pred_fallthru
      _
    %p402 = scmp.le.s32.totalorder 1, %s19
    %p403 = scmp.lt.s32.totalorder %s19, 3
    %p404 = pnand %p402, %p403
    %p405 = pneg %p404
    // Predicated region
    $region69: #{autoencoder_transpn_forward.2} parent=5 // pred_check
      _
    $region70: #{autoencoder_transpn_forward.2} parent=5 // pred_check_branch
      %407 = sbr.rel (%p404) target = $region72
    $region71: #{autoencoder_transpn_forward.2} parent=5 // pred_region
      %s408 = ssub.s32 %s19, 1
      %p409 = scmp.lt.s32.totalorder %s28, 1
      %s410 = scalar_select %p409, %s28, 1
      %p411 = scmp.lt.s32.totalorder %s29, 0
      %s412 = scalar_select %p411, %s29, 0
      %s413 = sadd.s32 %s412, %s410
      %s414 = smul.addr %s413, 4
      %s415 = scalar_lea.vmem %s0, %s414
      %p416 = pneg %p59
      %p417 = pneg %p56
      %p418 = pneg %p80
      %p419 = pneg %p77
      %p420 = pneg %p101
      %p421 = pneg %p98
      %p422 = pneg %p122
      %p423 = pneg %p119
      %p424 = pneg %p143
      %p425 = pneg %p140
      %p426 = pneg %p164
      %p427 = pneg %p161
      %p428 = pneg %p185
      %p429 = pneg %p182
      %p430 = pneg %p206
      %p431 = pneg %p203
      %p432 = pneg %p227
      %p433 = pneg %p224
      %p434 = pneg %p248
      %p435 = pneg %p245
      %p436 = pneg %p269
      %p437 = pneg %p266
      %p438 = pneg %p290
      %p439 = pneg %p287
      %p440 = pneg %p311
      %p441 = pneg %p308
      %p442 = pneg %p337
      %p443 = pneg %p334
      %p444 = scmp.lt.s32.totalorder %s28, 1
      %s445 = scalar_select %p444, %s28, 1
      %s446 = scalar_lea.vmem %s13, %s445
      %p447 = scmp.lt.s32.totalorder %s28, 1
      %s448 = scalar_select %p447, %s28, 1
      %p449 = scmp.lt.s32.totalorder %s29, 0
      %s450 = scalar_select %p449, %s29, 0
      %s451 = sadd.s32 %s450, %s448
      %s452 = smul.addr %s451, 4
      %s453 = scalar_lea.vmem %s0, %s452
      %p454 = scmp.lt.s32.totalorder %s28, 1
      %s455 = scalar_select %p454, %s28, 1
      %s456 = scalar_lea.vmem %s13, %s455
      %v458 = vld [vmem:[%s453] sm:$0x7]
      %v459 = vld [vmem:[%s1] sm:$0xff]
      %v460 = vld [vmem:[%s1 + $0x8] sm:$0xff]
      %v461 = vld [vmem:[%s1 + $0x10] sm:$0xff]
      %v462 = vld [vmem:[%s1 + $0x18] sm:$0xff]
      %v463 = vld [vmem:[%s1 + $0x20] sm:$0xff]
      %v464 = vld [vmem:[%s1 + $0x28] sm:$0xff]
      %v465 = vld [vmem:[%s1 + $0x30] sm:$0xff]
      %v466 = vld [vmem:[%s1 + $0x38] sm:$0xff]
      %v467 = vld [vmem:[%s1 + $0x40] sm:$0xff]
      %v468 = vld [vmem:[%s1 + $0x48] sm:$0xff]
      %v469 = vld [vmem:[%s1 + $0x50] sm:$0xff]
      %v470 = vld [vmem:[%s1 + $0x58] sm:$0xff]
      %v471 = vld [vmem:[%s1 + $0x60] sm:$0xff]
      %v472 = vld [vmem:[%s1 + $0x68] sm:$0xff]
      %v473 = vld [vmem:[%s1 + $0x70] sm:$0xff]
      %v474 = vld [vmem:[%s1 + $0x78] sm:$0xff]
      %v475 = vld [vmem:[%s1 + $0x80] sm:$0xff]
      %v476 = vld [vmem:[%s1 + $0x88] sm:$0xff]
      %v477 = vld [vmem:[%s1 + $0x90] sm:$0xff]
      %v478 = vld [vmem:[%s1 + $0x98] sm:$0xff]
      %v479 = vld [vmem:[%s1 + $0xa0] sm:$0xff]
      %v480 = vld [vmem:[%s1 + $0xa8] sm:$0xff]
      %v481 = vld [vmem:[%s1 + $0xb0] sm:$0xff]
      %v482 = vld [vmem:[%s1 + $0xb8] sm:$0xff]
      %484 = vset.pattern.permute.xlu0 0
      %485 = vperm.xlu0 %484, %v459
      %v486 = vpop.permute.xlu0 %485
      %489 = vset.pattern.permute.xlu0 0
      %490 = vperm.xlu0 %489, %v460
      %v491 = vpop.permute.xlu0 %490
      %494 = vset.pattern.permute.xlu0 0
      %495 = vperm.xlu0 %494, %v461
      %v496 = vpop.permute.xlu0 %495
      %499 = vset.pattern.permute.xlu0 0
      %500 = vperm.xlu0 %499, %v462
      %v501 = vpop.permute.xlu0 %500
      %504 = vset.pattern.permute.xlu0 0
      %505 = vperm.xlu0 %504, %v463
      %v506 = vpop.permute.xlu0 %505
      %509 = vset.pattern.permute.xlu0 0
      %510 = vperm.xlu0 %509, %v464
      %v511 = vpop.permute.xlu0 %510
      %514 = vset.pattern.permute.xlu0 0
      %515 = vperm.xlu0 %514, %v465
      %v516 = vpop.permute.xlu0 %515
      %519 = vset.pattern.permute.xlu0 0
      %520 = vperm.xlu0 %519, %v466
      %v521 = vpop.permute.xlu0 %520
      %524 = vset.pattern.permute.xlu0 0
      %525 = vperm.xlu0 %524, %v467
      %v526 = vpop.permute.xlu0 %525
      %529 = vset.pattern.permute.xlu0 0
      %530 = vperm.xlu0 %529, %v468
      %v531 = vpop.permute.xlu0 %530
      %534 = vset.pattern.permute.xlu0 0
      %535 = vperm.xlu0 %534, %v469
      %v536 = vpop.permute.xlu0 %535
      %539 = vset.pattern.permute.xlu0 0
      %540 = vperm.xlu0 %539, %v470
      %v541 = vpop.permute.xlu0 %540
      %544 = vset.pattern.permute.xlu0 0
      %545 = vperm.xlu0 %544, %v471
      %v546 = vpop.permute.xlu0 %545
      %549 = vset.pattern.permute.xlu0 0
      %550 = vperm.xlu0 %549, %v472
      %v551 = vpop.permute.xlu0 %550
      %554 = vset.pattern.permute.xlu0 0
      %555 = vperm.xlu0 %554, %v473
      %v556 = vpop.permute.xlu0 %555
      %559 = vset.pattern.permute.xlu0 0
      %560 = vperm.xlu0 %559, %v474
      %v561 = vpop.permute.xlu0 %560
      %564 = vset.pattern.permute.xlu0 0
      %565 = vperm.xlu0 %564, %v475
      %v566 = vpop.permute.xlu0 %565
      %569 = vset.pattern.permute.xlu0 0
      %570 = vperm.xlu0 %569, %v476
      %v571 = vpop.permute.xlu0 %570
      %574 = vset.pattern.permute.xlu0 0
      %575 = vperm.xlu0 %574, %v477
      %v576 = vpop.permute.xlu0 %575
      %579 = vset.pattern.permute.xlu0 0
      %580 = vperm.xlu0 %579, %v478
      %v581 = vpop.permute.xlu0 %580
      %584 = vset.pattern.permute.xlu0 0
      %585 = vperm.xlu0 %584, %v479
      %v586 = vpop.permute.xlu0 %585
      %589 = vset.pattern.permute.xlu0 0
      %590 = vperm.xlu0 %589, %v480
      %v591 = vpop.permute.xlu0 %590
      %594 = vset.pattern.permute.xlu0 0
      %595 = vperm.xlu0 %594, %v481
      %v596 = vpop.permute.xlu0 %595
      %599 = vset.pattern.permute.xlu0 0
      %600 = vperm.xlu0 %599, %v482
      %v601 = vpop.permute.xlu0 %600
      %v603 = vlaneseq
      %v604 = vshrl.u32 %v603, 7
      %v605 = vsub.s32 0, %v604
      %v606 = vrot.slane %v458, %v605
      %v607 = vmul.f32 %v486, %v606
      %v608 = vmul.f32 %v491, %v606
      %v609 = vmul.f32 %v496, %v606
      %v610 = vmul.f32 %v501, %v606
      %v611 = vmul.f32 %v506, %v606
      %v612 = vmul.f32 %v511, %v606
      %v613 = vmul.f32 %v516, %v606
      %v614 = vmul.f32 %v521, %v606
      %v615 = vmul.f32 %v526, %v606
      %v616 = vmul.f32 %v531, %v606
      %v617 = vmul.f32 %v536, %v606
      %v618 = vmul.f32 %v541, %v606
      %v619 = vmul.f32 %v546, %v606
      %v620 = vmul.f32 %v551, %v606
      %v621 = vmul.f32 %v556, %v606
      %v622 = vmul.f32 %v561, %v606
      %v623 = vmul.f32 %v566, %v606
      %v624 = vmul.f32 %v571, %v606
      %v625 = vmul.f32 %v576, %v606
      %v626 = vmul.f32 %v581, %v606
      %v627 = vmul.f32 %v586, %v606
      %v628 = vmul.f32 %v591, %v606
      %v629 = vmul.f32 %v596, %v606
      %v630 = vmul.f32 %v601, %v606
      %631 = vset.pattern.permute.xlu0 1
      %632 = vperm.xlu0 %631, %v459
      %v633 = vpop.permute.xlu0 %632
      %635 = vset.pattern.permute.xlu0 1
      %636 = vperm.xlu0 %635, %v460
      %v637 = vpop.permute.xlu0 %636
      %639 = vset.pattern.permute.xlu0 1
      %640 = vperm.xlu0 %639, %v461
      %v641 = vpop.permute.xlu0 %640
      %643 = vset.pattern.permute.xlu0 1
      %644 = vperm.xlu0 %643, %v462
      %v645 = vpop.permute.xlu0 %644
      %647 = vset.pattern.permute.xlu0 1
      %648 = vperm.xlu0 %647, %v463
      %v649 = vpop.permute.xlu0 %648
      %651 = vset.pattern.permute.xlu0 1
      %652 = vperm.xlu0 %651, %v464
      %v653 = vpop.permute.xlu0 %652
      %655 = vset.pattern.permute.xlu0 1
      %656 = vperm.xlu0 %655, %v465
      %v657 = vpop.permute.xlu0 %656
      %659 = vset.pattern.permute.xlu0 1
      %660 = vperm.xlu0 %659, %v466
      %v661 = vpop.permute.xlu0 %660
      %663 = vset.pattern.permute.xlu0 1
      %664 = vperm.xlu0 %663, %v467
      %v665 = vpop.permute.xlu0 %664
      %667 = vset.pattern.permute.xlu0 1
      %668 = vperm.xlu0 %667, %v468
      %v669 = vpop.permute.xlu0 %668
      %671 = vset.pattern.permute.xlu0 1
      %672 = vperm.xlu0 %671, %v469
      %v673 = vpop.permute.xlu0 %672
      %675 = vset.pattern.permute.xlu0 1
      %676 = vperm.xlu0 %675, %v470
      %v677 = vpop.permute.xlu0 %676
      %679 = vset.pattern.permute.xlu0 1
      %680 = vperm.xlu0 %679, %v471
      %v681 = vpop.permute.xlu0 %680
      %683 = vset.pattern.permute.xlu0 1
      %684 = vperm.xlu0 %683, %v472
      %v685 = vpop.permute.xlu0 %684
      %687 = vset.pattern.permute.xlu0 1
      %688 = vperm.xlu0 %687, %v473
      %v689 = vpop.permute.xlu0 %688
      %691 = vset.pattern.permute.xlu0 1
      %692 = vperm.xlu0 %691, %v474
      %v693 = vpop.permute.xlu0 %692
      %695 = vset.pattern.permute.xlu0 1
      %696 = vperm.xlu0 %695, %v475
      %v697 = vpop.permute.xlu0 %696
      %699 = vset.pattern.permute.xlu0 1
      %700 = vperm.xlu0 %699, %v476
      %v701 = vpop.permute.xlu0 %700
      %703 = vset.pattern.permute.xlu0 1
      %704 = vperm.xlu0 %703, %v477
      %v705 = vpop.permute.xlu0 %704
      %707 = vset.pattern.permute.xlu0 1
      %708 = vperm.xlu0 %707, %v478
      %v709 = vpop.permute.xlu0 %708
      %711 = vset.pattern.permute.xlu0 1
      %712 = vperm.xlu0 %711, %v479
      %v713 = vpop.permute.xlu0 %712
      %715 = vset.pattern.permute.xlu0 1
      %716 = vperm.xlu0 %715, %v480
      %v717 = vpop.permute.xlu0 %716
      %719 = vset.pattern.permute.xlu0 1
      %720 = vperm.xlu0 %719, %v481
      %v721 = vpop.permute.xlu0 %720
      %723 = vset.pattern.permute.xlu0 1
      %724 = vperm.xlu0 %723, %v482
      %v725 = vpop.permute.xlu0 %724
      %v727 = vlaneseq
      %v728 = vshrl.u32 %v727, 7
      %v729 = vsub.s32 1, %v728
      %v730 = vrot.slane %v458, %v729
      %v731 = vmul.f32 %v633, %v730
      %v732 = vmul.f32 %v637, %v730
      %v733 = vmul.f32 %v641, %v730
      %v734 = vmul.f32 %v645, %v730
      %v735 = vmul.f32 %v649, %v730
      %v736 = vmul.f32 %v653, %v730
      %v737 = vmul.f32 %v657, %v730
      %v738 = vmul.f32 %v661, %v730
      %v739 = vmul.f32 %v665, %v730
      %v740 = vmul.f32 %v669, %v730
      %v741 = vmul.f32 %v673, %v730
      %v742 = vmul.f32 %v677, %v730
      %v743 = vmul.f32 %v681, %v730
      %v744 = vmul.f32 %v685, %v730
      %v745 = vmul.f32 %v689, %v730
      %v746 = vmul.f32 %v693, %v730
      %v747 = vmul.f32 %v697, %v730
      %v748 = vmul.f32 %v701, %v730
      %v749 = vmul.f32 %v705, %v730
      %v750 = vmul.f32 %v709, %v730
      %v751 = vmul.f32 %v713, %v730
      %v752 = vmul.f32 %v717, %v730
      %v753 = vmul.f32 %v721, %v730
      %v754 = vmul.f32 %v725, %v730
      %v755 = vadd.f32 %v607, %v731
      %v756 = vadd.f32 %v608, %v732
      %v757 = vadd.f32 %v609, %v733
      %v758 = vadd.f32 %v610, %v734
      %v759 = vadd.f32 %v611, %v735
      %v760 = vadd.f32 %v612, %v736
      %v761 = vadd.f32 %v613, %v737
      %v762 = vadd.f32 %v614, %v738
      %v763 = vadd.f32 %v615, %v739
      %v764 = vadd.f32 %v616, %v740
      %v765 = vadd.f32 %v617, %v741
      %v766 = vadd.f32 %v618, %v742
      %v767 = vadd.f32 %v619, %v743
      %v768 = vadd.f32 %v620, %v744
      %v769 = vadd.f32 %v621, %v745
      %v770 = vadd.f32 %v622, %v746
      %v771 = vadd.f32 %v623, %v747
      %v772 = vadd.f32 %v624, %v748
      %v773 = vadd.f32 %v625, %v749
      %v774 = vadd.f32 %v626, %v750
      %v775 = vadd.f32 %v627, %v751
      %v776 = vadd.f32 %v628, %v752
      %v777 = vadd.f32 %v629, %v753
      %v778 = vadd.f32 %v630, %v754
      %779 = vset.pattern.permute.xlu0 2
      %780 = vperm.xlu0 %779, %v459
      %v781 = vpop.permute.xlu0 %780
      %783 = vset.pattern.permute.xlu0 2
      %784 = vperm.xlu0 %783, %v460
      %v785 = vpop.permute.xlu0 %784
      %787 = vset.pattern.permute.xlu0 2
      %788 = vperm.xlu0 %787, %v461
      %v789 = vpop.permute.xlu0 %788
      %791 = vset.pattern.permute.xlu0 2
      %792 = vperm.xlu0 %791, %v462
      %v793 = vpop.permute.xlu0 %792
      %795 = vset.pattern.permute.xlu0 2
      %796 = vperm.xlu0 %795, %v463
      %v797 = vpop.permute.xlu0 %796
      %799 = vset.pattern.permute.xlu0 2
      %800 = vperm.xlu0 %799, %v464
      %v801 = vpop.permute.xlu0 %800
      %803 = vset.pattern.permute.xlu0 2
      %804 = vperm.xlu0 %803, %v465
      %v805 = vpop.permute.xlu0 %804
      %807 = vset.pattern.permute.xlu0 2
      %808 = vperm.xlu0 %807, %v466
      %v809 = vpop.permute.xlu0 %808
      %811 = vset.pattern.permute.xlu0 2
      %812 = vperm.xlu0 %811, %v467
      %v813 = vpop.permute.xlu0 %812
      %815 = vset.pattern.permute.xlu0 2
      %816 = vperm.xlu0 %815, %v468
      %v817 = vpop.permute.xlu0 %816
      %819 = vset.pattern.permute.xlu0 2
      %820 = vperm.xlu0 %819, %v469
      %v821 = vpop.permute.xlu0 %820
      %823 = vset.pattern.permute.xlu0 2
      %824 = vperm.xlu0 %823, %v470
      %v825 = vpop.permute.xlu0 %824
      %827 = vset.pattern.permute.xlu0 2
      %828 = vperm.xlu0 %827, %v471
      %v829 = vpop.permute.xlu0 %828
      %831 = vset.pattern.permute.xlu0 2
      %832 = vperm.xlu0 %831, %v472
      %v833 = vpop.permute.xlu0 %832
      %835 = vset.pattern.permute.xlu0 2
      %836 = vperm.xlu0 %835, %v473
      %v837 = vpop.permute.xlu0 %836
      %839 = vset.pattern.permute.xlu0 2
      %840 = vperm.xlu0 %839, %v474
      %v841 = vpop.permute.xlu0 %840
      %843 = vset.pattern.permute.xlu0 2
      %844 = vperm.xlu0 %843, %v475
      %v845 = vpop.permute.xlu0 %844
      %847 = vset.pattern.permute.xlu0 2
      %848 = vperm.xlu0 %847, %v476
      %v849 = vpop.permute.xlu0 %848
      %851 = vset.pattern.permute.xlu0 2
      %852 = vperm.xlu0 %851, %v477
      %v853 = vpop.permute.xlu0 %852
      %855 = vset.pattern.permute.xlu0 2
      %856 = vperm.xlu0 %855, %v478
      %v857 = vpop.permute.xlu0 %856
      %859 = vset.pattern.permute.xlu0 2
      %860 = vperm.xlu0 %859, %v479
      %v861 = vpop.permute.xlu0 %860
      %863 = vset.pattern.permute.xlu0 2
      %864 = vperm.xlu0 %863, %v480
      %v865 = vpop.permute.xlu0 %864
      %867 = vset.pattern.permute.xlu0 2
      %868 = vperm.xlu0 %867, %v481
      %v869 = vpop.permute.xlu0 %868
      %871 = vset.pattern.permute.xlu0 2
      %872 = vperm.xlu0 %871, %v482
      %v873 = vpop.permute.xlu0 %872
      %v875 = vlaneseq
      %v876 = vshrl.u32 %v875, 7
      %v877 = vsub.s32 2, %v876
      %v878 = vrot.slane %v458, %v877
      %v879 = vmul.f32 %v781, %v878
      %v880 = vmul.f32 %v785, %v878
      %v881 = vmul.f32 %v789, %v878
      %v882 = vmul.f32 %v793, %v878
      %v883 = vmul.f32 %v797, %v878
      %v884 = vmul.f32 %v801, %v878
      %v885 = vmul.f32 %v805, %v878
      %v886 = vmul.f32 %v809, %v878
      %v887 = vmul.f32 %v813, %v878
      %v888 = vmul.f32 %v817, %v878
      %v889 = vmul.f32 %v821, %v878
      %v890 = vmul.f32 %v825, %v878
      %v891 = vmul.f32 %v829, %v878
      %v892 = vmul.f32 %v833, %v878
      %v893 = vmul.f32 %v837, %v878
      %v894 = vmul.f32 %v841, %v878
      %v895 = vmul.f32 %v845, %v878
      %v896 = vmul.f32 %v849, %v878
      %v897 = vmul.f32 %v853, %v878
      %v898 = vmul.f32 %v857, %v878
      %v899 = vmul.f32 %v861, %v878
      %v900 = vmul.f32 %v865, %v878
      %v901 = vmul.f32 %v869, %v878
      %v902 = vmul.f32 %v873, %v878
      %v903 = vadd.f32 %v755, %v879
      %v904 = vadd.f32 %v756, %v880
      %v905 = vadd.f32 %v757, %v881
      %v906 = vadd.f32 %v758, %v882
      %v907 = vadd.f32 %v759, %v883
      %v908 = vadd.f32 %v760, %v884
      %v909 = vadd.f32 %v761, %v885
      %v910 = vadd.f32 %v762, %v886
      %v911 = vadd.f32 %v763, %v887
      %v912 = vadd.f32 %v764, %v888
      %v913 = vadd.f32 %v765, %v889
      %v914 = vadd.f32 %v766, %v890
      %v915 = vadd.f32 %v767, %v891
      %v916 = vadd.f32 %v768, %v892
      %v917 = vadd.f32 %v769, %v893
      %v918 = vadd.f32 %v770, %v894
      %v919 = vadd.f32 %v771, %v895
      %v920 = vadd.f32 %v772, %v896
      %v921 = vadd.f32 %v773, %v897
      %v922 = vadd.f32 %v774, %v898
      %v923 = vadd.f32 %v775, %v899
      %v924 = vadd.f32 %v776, %v900
      %v925 = vadd.f32 %v777, %v901
      %v926 = vadd.f32 %v778, %v902
      %927 = vset.pattern.permute.xlu0 3
      %928 = vperm.xlu0 %927, %v459
      %v929 = vpop.permute.xlu0 %928
      %931 = vset.pattern.permute.xlu0 3
      %932 = vperm.xlu0 %931, %v460
      %v933 = vpop.permute.xlu0 %932
      %935 = vset.pattern.permute.xlu0 3
      %936 = vperm.xlu0 %935, %v461
      %v937 = vpop.permute.xlu0 %936
      %939 = vset.pattern.permute.xlu0 3
      %940 = vperm.xlu0 %939, %v462
      %v941 = vpop.permute.xlu0 %940
      %943 = vset.pattern.permute.xlu0 3
      %944 = vperm.xlu0 %943, %v463
      %v945 = vpop.permute.xlu0 %944
      %947 = vset.pattern.permute.xlu0 3
      %948 = vperm.xlu0 %947, %v464
      %v949 = vpop.permute.xlu0 %948
      %951 = vset.pattern.permute.xlu0 3
      %952 = vperm.xlu0 %951, %v465
      %v953 = vpop.permute.xlu0 %952
      %955 = vset.pattern.permute.xlu0 3
      %956 = vperm.xlu0 %955, %v466
      %v957 = vpop.permute.xlu0 %956
      %959 = vset.pattern.permute.xlu0 3
      %960 = vperm.xlu0 %959, %v467
      %v961 = vpop.permute.xlu0 %960
      %963 = vset.pattern.permute.xlu0 3
      %964 = vperm.xlu0 %963, %v468
      %v965 = vpop.permute.xlu0 %964
      %967 = vset.pattern.permute.xlu0 3
      %968 = vperm.xlu0 %967, %v469
      %v969 = vpop.permute.xlu0 %968
      %971 = vset.pattern.permute.xlu0 3
      %972 = vperm.xlu0 %971, %v470
      %v973 = vpop.permute.xlu0 %972
      %975 = vset.pattern.permute.xlu0 3
      %976 = vperm.xlu0 %975, %v471
      %v977 = vpop.permute.xlu0 %976
      %979 = vset.pattern.permute.xlu0 3
      %980 = vperm.xlu0 %979, %v472
      %v981 = vpop.permute.xlu0 %980
      %983 = vset.pattern.permute.xlu0 3
      %984 = vperm.xlu0 %983, %v473
      %v985 = vpop.permute.xlu0 %984
      %987 = vset.pattern.permute.xlu0 3
      %988 = vperm.xlu0 %987, %v474
      %v989 = vpop.permute.xlu0 %988
      %991 = vset.pattern.permute.xlu0 3
      %992 = vperm.xlu0 %991, %v475
      %v993 = vpop.permute.xlu0 %992
      %995 = vset.pattern.permute.xlu0 3
      %996 = vperm.xlu0 %995, %v476
      %v997 = vpop.permute.xlu0 %996
      %999 = vset.pattern.permute.xlu0 3
      %1000 = vperm.xlu0 %999, %v477
      %v1001 = vpop.permute.xlu0 %1000
      %1003 = vset.pattern.permute.xlu0 3
      %1004 = vperm.xlu0 %1003, %v478
      %v1005 = vpop.permute.xlu0 %1004
      %1007 = vset.pattern.permute.xlu0 3
      %1008 = vperm.xlu0 %1007, %v479
      %v1009 = vpop.permute.xlu0 %1008
      %1011 = vset.pattern.permute.xlu0 3
      %1012 = vperm.xlu0 %1011, %v480
      %v1013 = vpop.permute.xlu0 %1012
      %1015 = vset.pattern.permute.xlu0 3
      %1016 = vperm.xlu0 %1015, %v481
      %v1017 = vpop.permute.xlu0 %1016
      %1019 = vset.pattern.permute.xlu0 3
      %1020 = vperm.xlu0 %1019, %v482
      %v1021 = vpop.permute.xlu0 %1020
      %v1023 = vadd.f32 %v903, %v929
      %v1024 = vadd.f32 %v904, %v933
      %v1025 = vadd.f32 %v905, %v937
      %v1026 = vadd.f32 %v906, %v941
      %v1027 = vadd.f32 %v907, %v945
      %v1028 = vadd.f32 %v908, %v949
      %v1029 = vadd.f32 %v909, %v953
      %v1030 = vadd.f32 %v910, %v957
      %v1031 = vadd.f32 %v911, %v961
      %v1032 = vadd.f32 %v912, %v965
      %v1033 = vadd.f32 %v913, %v969
      %v1034 = vadd.f32 %v914, %v973
      %v1035 = vadd.f32 %v915, %v977
      %v1036 = vadd.f32 %v916, %v981
      %v1037 = vadd.f32 %v917, %v985
      %v1038 = vadd.f32 %v918, %v989
      %v1039 = vadd.f32 %v919, %v993
      %v1040 = vadd.f32 %v920, %v997
      %v1041 = vadd.f32 %v921, %v1001
      %v1042 = vadd.f32 %v922, %v1005
      %v1043 = vadd.f32 %v923, %v1009
      %v1044 = vadd.f32 %v924, %v1013
      %v1045 = vadd.f32 %v925, %v1017
      %v1046 = vadd.f32 %v926, %v1021
      %v1047 = vmax.f32 %v1023, 0.0
      %v1048 = vmax.f32 %v1024, 0.0
      %v1049 = vmax.f32 %v1025, 0.0
      %v1050 = vmax.f32 %v1026, 0.0
      %v1051 = vmax.f32 %v1027, 0.0
      %v1052 = vmax.f32 %v1028, 0.0
      %v1053 = vmax.f32 %v1029, 0.0
      %v1054 = vmax.f32 %v1030, 0.0
      %v1055 = vmax.f32 %v1031, 0.0
      %v1056 = vmax.f32 %v1032, 0.0
      %v1057 = vmax.f32 %v1033, 0.0
      %v1058 = vmax.f32 %v1034, 0.0
      %v1059 = vmax.f32 %v1035, 0.0
      %v1060 = vmax.f32 %v1036, 0.0
      %v1061 = vmax.f32 %v1037, 0.0
      %v1062 = vmax.f32 %v1038, 0.0
      %v1063 = vmax.f32 %v1039, 0.0
      %v1064 = vmax.f32 %v1040, 0.0
      %v1065 = vmax.f32 %v1041, 0.0
      %v1066 = vmax.f32 %v1042, 0.0
      %v1067 = vmax.f32 %v1043, 0.0
      %v1068 = vmax.f32 %v1044, 0.0
      %v1069 = vmax.f32 %v1045, 0.0
      %v1070 = vmax.f32 %v1046, 0.0
      %v1071 = vpack.c.bf16 %v1048, %v1047
      %v1072 = vpack.c.bf16 %v1050, %v1049
      %v1073 = vpack.c.bf16 %v1052, %v1051
      %v1074 = vpack.c.bf16 %v1054, %v1053
      %v1075 = vpack.c.bf16 %v1056, %v1055
      %v1076 = vpack.c.bf16 %v1058, %v1057
      %v1077 = vpack.c.bf16 %v1060, %v1059
      %v1078 = vpack.c.bf16 %v1062, %v1061
      %v1079 = vpack.c.bf16 %v1064, %v1063
      %v1080 = vpack.c.bf16 %v1066, %v1065
      %v1081 = vpack.c.bf16 %v1068, %v1067
      %v1082 = vpack.c.bf16 %v1070, %v1069
      %v1083 = vld [vmem:[%s2] sm:$0xff]
      %v1084 = vld [vmem:[%s2 + $0x8] sm:$0xff]
      %v1085 = vld [vmem:[%s2 + $0x10] sm:$0xff]
      %v1086 = vld [vmem:[%s2 + $0x18] sm:$0xff]
      %v1087 = vld [vmem:[%s2 + $0x20] sm:$0xff]
      %v1088 = vld [vmem:[%s2 + $0x28] sm:$0xff]
      %v1089 = vld [vmem:[%s2 + $0x30] sm:$0xff]
      %v1090 = vld [vmem:[%s2 + $0x38] sm:$0xff]
      %v1091 = vld [vmem:[%s2 + $0x40] sm:$0xff]
      %v1092 = vld [vmem:[%s2 + $0x48] sm:$0xff]
      %v1093 = vld [vmem:[%s2 + $0x50] sm:$0xff]
      %v1094 = vld [vmem:[%s2 + $0x58] sm:$0xff]
      %v1095 = vld [vmem:[%s2 + $0x60] sm:$0xff]
      %v1096 = vld [vmem:[%s2 + $0x68] sm:$0xff]
      %v1097 = vld [vmem:[%s2 + $0x70] sm:$0xff]
      %v1098 = vld [vmem:[%s2 + $0x78] sm:$0xff]
      %v1099 = vld [vmem:[%s2 + $0x80] sm:$0xff]
      %v1100 = vld [vmem:[%s2 + $0x88] sm:$0xff]
      %v1101 = vld [vmem:[%s2 + $0x90] sm:$0xff]
      %v1102 = vld [vmem:[%s2 + $0x98] sm:$0xff]
      %v1103 = vld [vmem:[%s2 + $0xa0] sm:$0xff]
      %v1104 = vld [vmem:[%s2 + $0xa8] sm:$0xff]
      %v1105 = vld [vmem:[%s2 + $0xb0] sm:$0xff]
      %v1106 = vld [vmem:[%s2 + $0xb8] sm:$0xff]
      %v1107 = vld [vmem:[%s2 + $0xc0] sm:$0xff]
      %v1108 = vld [vmem:[%s2 + $0xc8] sm:$0xff]
      %v1109 = vld [vmem:[%s2 + $0xd0] sm:$0xff]
      %v1110 = vld [vmem:[%s2 + $0xd8] sm:$0xff]
      %v1111 = vld [vmem:[%s2 + $0xe0] sm:$0xff]
      %v1112 = vld [vmem:[%s2 + $0xe8] sm:$0xff]
      %v1113 = vld [vmem:[%s2 + $0xf0] sm:$0xff]
      %v1114 = vld [vmem:[%s2 + $0xf8] sm:$0xff]
      %v1115 = vld [vmem:[%s2 + $0x100] sm:$0xff]
      %v1116 = vld [vmem:[%s2 + $0x108] sm:$0xff]
      %v1117 = vld [vmem:[%s2 + $0x110] sm:$0xff]
      %v1118 = vld [vmem:[%s2 + $0x118] sm:$0xff]
      %v1119 = vld [vmem:[%s2 + $0x120] sm:$0xff]
      %v1120 = vld [vmem:[%s2 + $0x128] sm:$0xff]
      %v1121 = vld [vmem:[%s2 + $0x130] sm:$0xff]
      %v1122 = vld [vmem:[%s2 + $0x138] sm:$0xff]
      %v1123 = vld [vmem:[%s2 + $0x140] sm:$0xff]
      %v1124 = vld [vmem:[%s2 + $0x148] sm:$0xff]
      %v1125 = vld [vmem:[%s2 + $0x150] sm:$0xff]
      %v1126 = vld [vmem:[%s2 + $0x158] sm:$0xff]
      %v1127 = vld [vmem:[%s2 + $0x160] sm:$0xff]
      %v1128 = vld [vmem:[%s2 + $0x168] sm:$0xff]
      %v1129 = vld [vmem:[%s2 + $0x170] sm:$0xff]
      %v1130 = vld [vmem:[%s2 + $0x178] sm:$0xff]
      %v1131 = vld [vmem:[%s4] sm:$0xff]
      %v1132 = vld [vmem:[%s4 + $0x8] sm:$0xff]
      %v1133 = vld [vmem:[%s4 + $0x10] sm:$0xff]
      %v1134 = vld [vmem:[%s4 + $0x18] sm:$0xff]
      %v1135 = vld [vmem:[%s4 + $0x20] sm:$0xff]
      %v1136 = vld [vmem:[%s4 + $0x28] sm:$0xff]
      %v1137 = vld [vmem:[%s4 + $0x30] sm:$0xff]
      %v1138 = vld [vmem:[%s4 + $0x38] sm:$0xff]
      %v1139 = vld [vmem:[%s4 + $0x40] sm:$0xff]
      %v1140 = vld [vmem:[%s4 + $0x48] sm:$0xff]
      %v1141 = vld [vmem:[%s4 + $0x50] sm:$0xff]
      %v1142 = vld [vmem:[%s4 + $0x58] sm:$0xff]
      %v1143 = vld [vmem:[%s4 + $0x60] sm:$0xff]
      %v1144 = vld [vmem:[%s4 + $0x68] sm:$0xff]
      %v1145 = vld [vmem:[%s4 + $0x70] sm:$0xff]
      %v1146 = vld [vmem:[%s4 + $0x78] sm:$0xff]
      %v1147 = vld [vmem:[%s4 + $0x80] sm:$0xff]
      %v1148 = vld [vmem:[%s4 + $0x88] sm:$0xff]
      %v1149 = vld [vmem:[%s4 + $0x90] sm:$0xff]
      %v1150 = vld [vmem:[%s4 + $0x98] sm:$0xff]
      %v1151 = vld [vmem:[%s4 + $0xa0] sm:$0xff]
      %v1152 = vld [vmem:[%s4 + $0xa8] sm:$0xff]
      %v1153 = vld [vmem:[%s4 + $0xb0] sm:$0xff]
      %v1154 = vld [vmem:[%s4 + $0xb8] sm:$0xff]
      %v1155 = vld [vmem:[%s4 + $0xc0] sm:$0xff]
      %v1156 = vld [vmem:[%s4 + $0xc8] sm:$0xff]
      %v1157 = vld [vmem:[%s4 + $0xd0] sm:$0xff]
      %v1158 = vld [vmem:[%s4 + $0xd8] sm:$0xff]
      %v1159 = vld [vmem:[%s4 + $0xe0] sm:$0xff]
      %v1160 = vld [vmem:[%s4 + $0xe8] sm:$0xff]
      %v1161 = vld [vmem:[%s4 + $0xf0] sm:$0xff]
      %v1162 = vld [vmem:[%s4 + $0xf8] sm:$0xff]
      %v1163 = vld [vmem:[%s4 + $0x100] sm:$0xff]
      %v1164 = vld [vmem:[%s4 + $0x108] sm:$0xff]
      %v1165 = vld [vmem:[%s4 + $0x110] sm:$0xff]
      %v1166 = vld [vmem:[%s4 + $0x118] sm:$0xff]
      %v1167 = vld [vmem:[%s4 + $0x120] sm:$0xff]
      %v1168 = vld [vmem:[%s4 + $0x128] sm:$0xff]
      %v1169 = vld [vmem:[%s4 + $0x130] sm:$0xff]
      %v1170 = vld [vmem:[%s4 + $0x138] sm:$0xff]
      %v1171 = vld [vmem:[%s4 + $0x140] sm:$0xff]
      %v1172 = vld [vmem:[%s4 + $0x148] sm:$0xff]
      %v1173 = vld [vmem:[%s4 + $0x150] sm:$0xff]
      %v1174 = vld [vmem:[%s4 + $0x158] sm:$0xff]
      %v1175 = vld [vmem:[%s4 + $0x160] sm:$0xff]
      %v1176 = vld [vmem:[%s4 + $0x168] sm:$0xff]
      %v1177 = vld [vmem:[%s4 + $0x170] sm:$0xff]
      %v1178 = vld [vmem:[%s4 + $0x178] sm:$0xff]
      %1180 = vset.pattern.permute.xlu0 0
      %1181 = vperm.xlu0 %1180, %v1131
      %v1182 = vpop.permute.xlu0 %1181
      %1185 = vset.pattern.permute.xlu0 0
      %1186 = vperm.xlu0 %1185, %v1132
      %v1187 = vpop.permute.xlu0 %1186
      %1190 = vset.pattern.permute.xlu0 0
      %1191 = vperm.xlu0 %1190, %v1133
      %v1192 = vpop.permute.xlu0 %1191
      %1195 = vset.pattern.permute.xlu0 0
      %1196 = vperm.xlu0 %1195, %v1134
      %v1197 = vpop.permute.xlu0 %1196
      %1200 = vset.pattern.permute.xlu0 0
      %1201 = vperm.xlu0 %1200, %v1135
      %v1202 = vpop.permute.xlu0 %1201
      %1205 = vset.pattern.permute.xlu0 0
      %1206 = vperm.xlu0 %1205, %v1136
      %v1207 = vpop.permute.xlu0 %1206
      %1210 = vset.pattern.permute.xlu0 0
      %1211 = vperm.xlu0 %1210, %v1137
      %v1212 = vpop.permute.xlu0 %1211
      %1215 = vset.pattern.permute.xlu0 0
      %1216 = vperm.xlu0 %1215, %v1138
      %v1217 = vpop.permute.xlu0 %1216
      %1220 = vset.pattern.permute.xlu0 0
      %1221 = vperm.xlu0 %1220, %v1139
      %v1222 = vpop.permute.xlu0 %1221
      %1225 = vset.pattern.permute.xlu0 0
      %1226 = vperm.xlu0 %1225, %v1140
      %v1227 = vpop.permute.xlu0 %1226
      %1230 = vset.pattern.permute.xlu0 0
      %1231 = vperm.xlu0 %1230, %v1141
      %v1232 = vpop.permute.xlu0 %1231
      %1235 = vset.pattern.permute.xlu0 0
      %1236 = vperm.xlu0 %1235, %v1142
      %v1237 = vpop.permute.xlu0 %1236
      %1240 = vset.pattern.permute.xlu0 0
      %1241 = vperm.xlu0 %1240, %v1143
      %v1242 = vpop.permute.xlu0 %1241
      %1245 = vset.pattern.permute.xlu0 0
      %1246 = vperm.xlu0 %1245, %v1144
      %v1247 = vpop.permute.xlu0 %1246
      %1250 = vset.pattern.permute.xlu0 0
      %1251 = vperm.xlu0 %1250, %v1145
      %v1252 = vpop.permute.xlu0 %1251
      %1255 = vset.pattern.permute.xlu0 0
      %1256 = vperm.xlu0 %1255, %v1146
      %v1257 = vpop.permute.xlu0 %1256
      %1260 = vset.pattern.permute.xlu0 0
      %1261 = vperm.xlu0 %1260, %v1147
      %v1262 = vpop.permute.xlu0 %1261
      %1265 = vset.pattern.permute.xlu0 0
      %1266 = vperm.xlu0 %1265, %v1148
      %v1267 = vpop.permute.xlu0 %1266
      %1270 = vset.pattern.permute.xlu0 0
      %1271 = vperm.xlu0 %1270, %v1149
      %v1272 = vpop.permute.xlu0 %1271
      %1275 = vset.pattern.permute.xlu0 0
      %1276 = vperm.xlu0 %1275, %v1150
      %v1277 = vpop.permute.xlu0 %1276
      %1280 = vset.pattern.permute.xlu0 0
      %1281 = vperm.xlu0 %1280, %v1151
      %v1282 = vpop.permute.xlu0 %1281
      %1285 = vset.pattern.permute.xlu0 0
      %1286 = vperm.xlu0 %1285, %v1152
      %v1287 = vpop.permute.xlu0 %1286
      %1290 = vset.pattern.permute.xlu0 0
      %1291 = vperm.xlu0 %1290, %v1153
      %v1292 = vpop.permute.xlu0 %1291
      %1295 = vset.pattern.permute.xlu0 0
      %1296 = vperm.xlu0 %1295, %v1154
      %v1297 = vpop.permute.xlu0 %1296
      %1300 = vset.pattern.permute.xlu0 0
      %1301 = vperm.xlu0 %1300, %v1155
      %v1302 = vpop.permute.xlu0 %1301
      %1305 = vset.pattern.permute.xlu0 0
      %1306 = vperm.xlu0 %1305, %v1156
      %v1307 = vpop.permute.xlu0 %1306
      %1310 = vset.pattern.permute.xlu0 0
      %1311 = vperm.xlu0 %1310, %v1157
      %v1312 = vpop.permute.xlu0 %1311
      %1315 = vset.pattern.permute.xlu0 0
      %1316 = vperm.xlu0 %1315, %v1158
      %v1317 = vpop.permute.xlu0 %1316
      %1320 = vset.pattern.permute.xlu0 0
      %1321 = vperm.xlu0 %1320, %v1159
      %v1322 = vpop.permute.xlu0 %1321
      %1325 = vset.pattern.permute.xlu0 0
      %1326 = vperm.xlu0 %1325, %v1160
      %v1327 = vpop.permute.xlu0 %1326
      %1330 = vset.pattern.permute.xlu0 0
      %1331 = vperm.xlu0 %1330, %v1161
      %v1332 = vpop.permute.xlu0 %1331
      %1335 = vset.pattern.permute.xlu0 0
      %1336 = vperm.xlu0 %1335, %v1162
      %v1337 = vpop.permute.xlu0 %1336
      %1340 = vset.pattern.permute.xlu0 0
      %1341 = vperm.xlu0 %1340, %v1163
      %v1342 = vpop.permute.xlu0 %1341
      %1345 = vset.pattern.permute.xlu0 0
      %1346 = vperm.xlu0 %1345, %v1164
      %v1347 = vpop.permute.xlu0 %1346
      %1350 = vset.pattern.permute.xlu0 0
      %1351 = vperm.xlu0 %1350, %v1165
      %v1352 = vpop.permute.xlu0 %1351
      %1355 = vset.pattern.permute.xlu0 0
      %1356 = vperm.xlu0 %1355, %v1166
      %v1357 = vpop.permute.xlu0 %1356
      %1360 = vset.pattern.permute.xlu0 0
      %1361 = vperm.xlu0 %1360, %v1167
      %v1362 = vpop.permute.xlu0 %1361
      %1365 = vset.pattern.permute.xlu0 0
      %1366 = vperm.xlu0 %1365, %v1168
      %v1367 = vpop.permute.xlu0 %1366
      %1370 = vset.pattern.permute.xlu0 0
      %1371 = vperm.xlu0 %1370, %v1169
      %v1372 = vpop.permute.xlu0 %1371
      %1375 = vset.pattern.permute.xlu0 0
      %1376 = vperm.xlu0 %1375, %v1170
      %v1377 = vpop.permute.xlu0 %1376
      %1380 = vset.pattern.permute.xlu0 0
      %1381 = vperm.xlu0 %1380, %v1171
      %v1382 = vpop.permute.xlu0 %1381
      %1385 = vset.pattern.permute.xlu0 0
      %1386 = vperm.xlu0 %1385, %v1172
      %v1387 = vpop.permute.xlu0 %1386
      %1390 = vset.pattern.permute.xlu0 0
      %1391 = vperm.xlu0 %1390, %v1173
      %v1392 = vpop.permute.xlu0 %1391
      %1395 = vset.pattern.permute.xlu0 0
      %1396 = vperm.xlu0 %1395, %v1174
      %v1397 = vpop.permute.xlu0 %1396
      %1400 = vset.pattern.permute.xlu0 0
      %1401 = vperm.xlu0 %1400, %v1175
      %v1402 = vpop.permute.xlu0 %1401
      %1405 = vset.pattern.permute.xlu0 0
      %1406 = vperm.xlu0 %1405, %v1176
      %v1407 = vpop.permute.xlu0 %1406
      %1410 = vset.pattern.permute.xlu0 0
      %1411 = vperm.xlu0 %1410, %v1177
      %v1412 = vpop.permute.xlu0 %1411
      %1415 = vset.pattern.permute.xlu0 0
      %1416 = vperm.xlu0 %1415, %v1178
      %v1417 = vpop.permute.xlu0 %1416
      %v1467 = vunpack.c.l.b16 %v1083
      %v1468 = vunpack.c.h.b16 %v1083
      %v1469 = vunpack.c.l.b16 %v1084
      %v1470 = vunpack.c.h.b16 %v1084
      %v1471 = vunpack.c.l.b16 %v1085
      %v1472 = vunpack.c.h.b16 %v1085
      %v1473 = vunpack.c.l.b16 %v1086
      %v1474 = vunpack.c.h.b16 %v1086
      %v1475 = vunpack.c.l.b16 %v1087
      %v1476 = vunpack.c.h.b16 %v1087
      %v1477 = vunpack.c.l.b16 %v1088
      %v1478 = vunpack.c.h.b16 %v1088
      %v1479 = vunpack.c.l.b16 %v1089
      %v1480 = vunpack.c.h.b16 %v1089
      %v1481 = vunpack.c.l.b16 %v1090
      %v1482 = vunpack.c.h.b16 %v1090
      %v1483 = vunpack.c.l.b16 %v1091
      %v1484 = vunpack.c.h.b16 %v1091
      %v1485 = vunpack.c.l.b16 %v1092
      %v1486 = vunpack.c.h.b16 %v1092
      %v1487 = vunpack.c.l.b16 %v1093
      %v1488 = vunpack.c.h.b16 %v1093
      %v1489 = vunpack.c.l.b16 %v1094
      %v1490 = vunpack.c.h.b16 %v1094
      %v1491 = vunpack.c.l.b16 %v1095
      %v1492 = vunpack.c.h.b16 %v1095
      %v1493 = vunpack.c.l.b16 %v1096
      %v1494 = vunpack.c.h.b16 %v1096
      %v1495 = vunpack.c.l.b16 %v1097
      %v1496 = vunpack.c.h.b16 %v1097
      %v1497 = vunpack.c.l.b16 %v1098
      %v1498 = vunpack.c.h.b16 %v1098
      %v1499 = vunpack.c.l.b16 %v1099
      %v1500 = vunpack.c.h.b16 %v1099
      %v1501 = vunpack.c.l.b16 %v1100
      %v1502 = vunpack.c.h.b16 %v1100
      %v1503 = vunpack.c.l.b16 %v1101
      %v1504 = vunpack.c.h.b16 %v1101
      %v1505 = vunpack.c.l.b16 %v1102
      %v1506 = vunpack.c.h.b16 %v1102
      %v1507 = vunpack.c.l.b16 %v1103
      %v1508 = vunpack.c.h.b16 %v1103
      %v1509 = vunpack.c.l.b16 %v1104
      %v1510 = vunpack.c.h.b16 %v1104
      %v1511 = vunpack.c.l.b16 %v1105
      %v1512 = vunpack.c.h.b16 %v1105
      %v1513 = vunpack.c.l.b16 %v1106
      %v1514 = vunpack.c.h.b16 %v1106
      %v1515 = vunpack.c.l.b16 %v1107
      %v1516 = vunpack.c.h.b16 %v1107
      %v1517 = vunpack.c.l.b16 %v1108
      %v1518 = vunpack.c.h.b16 %v1108
      %v1519 = vunpack.c.l.b16 %v1109
      %v1520 = vunpack.c.h.b16 %v1109
      %v1521 = vunpack.c.l.b16 %v1110
      %v1522 = vunpack.c.h.b16 %v1110
      %v1523 = vunpack.c.l.b16 %v1111
      %v1524 = vunpack.c.h.b16 %v1111
      %v1525 = vunpack.c.l.b16 %v1112
      %v1526 = vunpack.c.h.b16 %v1112
      %v1527 = vunpack.c.l.b16 %v1113
      %v1528 = vunpack.c.h.b16 %v1113
      %v1529 = vunpack.c.l.b16 %v1114
      %v1530 = vunpack.c.h.b16 %v1114
      %v1531 = vunpack.c.l.b16 %v1115
      %v1532 = vunpack.c.h.b16 %v1115
      %v1533 = vunpack.c.l.b16 %v1116
      %v1534 = vunpack.c.h.b16 %v1116
      %v1535 = vunpack.c.l.b16 %v1117
      %v1536 = vunpack.c.h.b16 %v1117
      %v1537 = vunpack.c.l.b16 %v1118
      %v1538 = vunpack.c.h.b16 %v1118
      %v1539 = vunpack.c.l.b16 %v1119
      %v1540 = vunpack.c.h.b16 %v1119
      %v1541 = vunpack.c.l.b16 %v1120
      %v1542 = vunpack.c.h.b16 %v1120
      %v1543 = vunpack.c.l.b16 %v1121
      %v1544 = vunpack.c.h.b16 %v1121
      %v1545 = vunpack.c.l.b16 %v1122
      %v1546 = vunpack.c.h.b16 %v1122
      %v1547 = vunpack.c.l.b16 %v1123
      %v1548 = vunpack.c.h.b16 %v1123
      %v1549 = vunpack.c.l.b16 %v1124
      %v1550 = vunpack.c.h.b16 %v1124
      %v1551 = vunpack.c.l.b16 %v1125
      %v1552 = vunpack.c.h.b16 %v1125
      %v1553 = vunpack.c.l.b16 %v1126
      %v1554 = vunpack.c.h.b16 %v1126
      %v1555 = vunpack.c.l.b16 %v1127
      %v1556 = vunpack.c.h.b16 %v1127
      %v1557 = vunpack.c.l.b16 %v1128
      %v1558 = vunpack.c.h.b16 %v1128
      %v1559 = vunpack.c.l.b16 %v1129
      %v1560 = vunpack.c.h.b16 %v1129
      %v1561 = vunpack.c.l.b16 %v1130
      %v1562 = vunpack.c.h.b16 %v1130
      %v1563 = vpack.c.b16 %v1469, %v1467
      %v1564 = vpack.c.b16 %v1470, %v1468
      %v1565 = vpack.c.b16 %v1473, %v1471
      %v1566 = vpack.c.b16 %v1474, %v1472
      %v1567 = vpack.c.b16 %v1477, %v1475
      %v1568 = vpack.c.b16 %v1478, %v1476
      %v1569 = vpack.c.b16 %v1481, %v1479
      %v1570 = vpack.c.b16 %v1482, %v1480
      %v1571 = vpack.c.b16 %v1485, %v1483
      %v1572 = vpack.c.b16 %v1486, %v1484
      %v1573 = vpack.c.b16 %v1489, %v1487
      %v1574 = vpack.c.b16 %v1490, %v1488
      %v1575 = vpack.c.b16 %v1493, %v1491
      %v1576 = vpack.c.b16 %v1494, %v1492
      %v1577 = vpack.c.b16 %v1497, %v1495
      %v1578 = vpack.c.b16 %v1498, %v1496
      %v1579 = vpack.c.b16 %v1501, %v1499
      %v1580 = vpack.c.b16 %v1502, %v1500
      %v1581 = vpack.c.b16 %v1505, %v1503
      %v1582 = vpack.c.b16 %v1506, %v1504
      %v1583 = vpack.c.b16 %v1509, %v1507
      %v1584 = vpack.c.b16 %v1510, %v1508
      %v1585 = vpack.c.b16 %v1513, %v1511
      %v1586 = vpack.c.b16 %v1514, %v1512
      %v1587 = vpack.c.b16 %v1517, %v1515
      %v1588 = vpack.c.b16 %v1518, %v1516
      %v1589 = vpack.c.b16 %v1521, %v1519
      %v1590 = vpack.c.b16 %v1522, %v1520
      %v1591 = vpack.c.b16 %v1525, %v1523
      %v1592 = vpack.c.b16 %v1526, %v1524
      %v1593 = vpack.c.b16 %v1529, %v1527
      %v1594 = vpack.c.b16 %v1530, %v1528
      %v1595 = vpack.c.b16 %v1533, %v1531
      %v1596 = vpack.c.b16 %v1534, %v1532
      %v1597 = vpack.c.b16 %v1537, %v1535
      %v1598 = vpack.c.b16 %v1538, %v1536
      %v1599 = vpack.c.b16 %v1541, %v1539
      %v1600 = vpack.c.b16 %v1542, %v1540
      %v1601 = vpack.c.b16 %v1545, %v1543
      %v1602 = vpack.c.b16 %v1546, %v1544
      %v1603 = vpack.c.b16 %v1549, %v1547
      %v1604 = vpack.c.b16 %v1550, %v1548
      %v1605 = vpack.c.b16 %v1553, %v1551
      %v1606 = vpack.c.b16 %v1554, %v1552
      %v1607 = vpack.c.b16 %v1557, %v1555
      %v1608 = vpack.c.b16 %v1558, %v1556
      %v1609 = vpack.c.b16 %v1561, %v1559
      %v1610 = vpack.c.b16 %v1562, %v1560
      %vm1635 = vcmask 523264
      %v1637 = vsel %vm1635, %v1564, 0
      %v1640 = vsel %vm1635, %v1566, 0
      %v1643 = vsel %vm1635, %v1568, 0
      %v1646 = vsel %vm1635, %v1570, 0
      %v1649 = vsel %vm1635, %v1572, 0
      %v1652 = vsel %vm1635, %v1574, 0
      %v1655 = vsel %vm1635, %v1576, 0
      %v1658 = vsel %vm1635, %v1578, 0
      %v1661 = vsel %vm1635, %v1580, 0
      %v1664 = vsel %vm1635, %v1582, 0
      %v1667 = vsel %vm1635, %v1584, 0
      %v1670 = vsel %vm1635, %v1586, 0
      %v1673 = vsel %vm1635, %v1588, 0
      %v1676 = vsel %vm1635, %v1590, 0
      %v1679 = vsel %vm1635, %v1592, 0
      %v1682 = vsel %vm1635, %v1594, 0
      %v1685 = vsel %vm1635, %v1596, 0
      %v1688 = vsel %vm1635, %v1598, 0
      %v1691 = vsel %vm1635, %v1600, 0
      %v1694 = vsel %vm1635, %v1602, 0
      %v1697 = vsel %vm1635, %v1604, 0
      %v1700 = vsel %vm1635, %v1606, 0
      %v1703 = vsel %vm1635, %v1608, 0
      %v1706 = vsel %vm1635, %v1610, 0
      %1708 = vmatprep.subr.bf16.mxu0 0
      %1709 = vmatpush1.bf16.msra.mxu0 %v1071
      %1710 = vmatprep.subr.bf16.mxu0 0
      %1711 = vmatpush1.bf16.msra.mxu0 %v1072
      %1712 = vmatprep.subr.bf16.mxu0 0
      %1713 = vmatpush1.bf16.msra.mxu0 %v1073
      %1714 = vmatprep.subr.bf16.mxu0 0
      %1715 = vmatpush1.bf16.msra.mxu0 %v1074
      %1716 = vmatprep.subr.bf16.mxu0 0
      %1717 = vmatpush1.bf16.msra.mxu0 %v1075
      %1718 = vmatprep.subr.bf16.mxu0 0
      %1719 = vmatpush1.bf16.msra.mxu0 %v1076
      %1720 = vmatprep.subr.bf16.mxu0 0
      %1721 = vmatpush1.bf16.msra.mxu0 %v1077
      %1722 = vmatprep.subr.bf16.mxu0 0
      %1723 = vmatpush1.bf16.msra.mxu0 %v1078
      %1724 = vmatprep.subr.bf16.mxu0 0
      %1725 = vmatpush1.bf16.msra.mxu0 %v1079
      %1726 = vmatprep.subr.bf16.mxu0 0
      %1727 = vmatpush1.bf16.msra.mxu0 %v1080
      %1728 = vmatprep.subr.bf16.mxu0 0
      %1729 = vmatpush1.bf16.msra.mxu0 %v1081
      %1730 = vmatprep.subr.bf16.mxu0 0
      %1731 = vmatpush1.bf16.msra.mxu0 %v1082
      %1732 = vmatprep.subr.bf16.mxu0 0
      %1733 = vmatpush1.bf16.msra.mxu0 0
      %1734 = vmatprep.subr.bf16.mxu0 0
      %1735 = vmatpush1.bf16.msra.mxu0 0
      %1736 = vmatprep.subr.bf16.mxu0 0
      %1737 = vmatpush1.bf16.msra.mxu0 0
      %1738 = vmatprep.subr.bf16.mxu0 0
      %1739 = vmatpush1.bf16.msra.mxu0 0
      %1740 = vmatprep.mubr.bf16.mxu0 %v1637
      %1741 = vmatmul.mubr.bf16.gmra.mrb[0].mxu0 %v1563
      %v1742 = vpop.f32.mrb[0].mxu0
      %v1743 = vadd.f32 %v1182, %v1742
      %v1744 = vpop.f32.mrb[0].mxu0
      %v1745 = vpop.f32.mrb[0].mxu0
      %v1746 = vadd.f32 %v1187, %v1745
      %v1747 = vpop.f32.mrb[0].mxu0
      %1748 = vmatprep.mubr.bf16.mxu0 %v1640
      %1749 = vmatmul.mubr.bf16.gmra.mrb[0].mxu0 %v1565
      %v1750 = vpop.f32.mrb[0].mxu0
      %v1751 = vadd.f32 %v1192, %v1750
      %v1752 = vpop.f32.mrb[0].mxu0
      %v1753 = vpop.f32.mrb[0].mxu0
      %v1754 = vadd.f32 %v1197, %v1753
      %v1755 = vpop.f32.mrb[0].mxu0
      %1756 = vmatprep.mubr.bf16.mxu0 %v1643
      %1757 = vmatmul.mubr.bf16.gmra.mrb[0].mxu0 %v1567
      %v1758 = vpop.f32.mrb[0].mxu0
      %v1759 = vadd.f32 %v1202, %v1758
      %v1760 = vpop.f32.mrb[0].mxu0
      %v1761 = vpop.f32.mrb[0].mxu0
      %v1762 = vadd.f32 %v1207, %v1761
      %v1763 = vpop.f32.mrb[0].mxu0
      %1764 = vmatprep.mubr.bf16.mxu0 %v1646
      %1765 = vmatmul.mubr.bf16.gmra.mrb[0].mxu0 %v1569
      %v1766 = vpop.f32.mrb[0].mxu0
      %v1767 = vadd.f32 %v1212, %v1766
      %v1768 = vpop.f32.mrb[0].mxu0
      %v1769 = vpop.f32.mrb[0].mxu0
      %v1770 = vadd.f32 %v1217, %v1769
      %v1771 = vpop.f32.mrb[0].mxu0
      %1772 = vmatprep.mubr.bf16.mxu0 %v1649
      %1773 = vmatmul.mubr.bf16.gmra.mrb[0].mxu0 %v1571
      %v1774 = vpop.f32.mrb[0].mxu0
      %v1775 = vadd.f32 %v1222, %v1774
      %v1776 = vpop.f32.mrb[0].mxu0
      %v1777 = vpop.f32.mrb[0].mxu0
      %v1778 = vadd.f32 %v1227, %v1777
      %v1779 = vpop.f32.mrb[0].mxu0
      %1780 = vmatprep.mubr.bf16.mxu0 %v1652
      %1781 = vmatmul.mubr.bf16.gmra.mrb[0].mxu0 %v1573
      %v1782 = vpop.f32.mrb[0].mxu0
      %v1783 = vadd.f32 %v1232, %v1782
      %v1784 = vpop.f32.mrb[0].mxu0
      %v1785 = vpop.f32.mrb[0].mxu0
      %v1786 = vadd.f32 %v1237, %v1785
      %v1787 = vpop.f32.mrb[0].mxu0
      %1788 = vmatprep.mubr.bf16.mxu0 %v1655
      %1789 = vmatmul.mubr.bf16.gmra.mrb[0].mxu0 %v1575
      %v1790 = vpop.f32.mrb[0].mxu0
      %v1791 = vadd.f32 %v1242, %v1790
      %v1792 = vpop.f32.mrb[0].mxu0
      %v1793 = vpop.f32.mrb[0].mxu0
      %v1794 = vadd.f32 %v1247, %v1793
      %v1795 = vpop.f32.mrb[0].mxu0
      %1796 = vmatprep.mubr.bf16.mxu0 %v1658
      %1797 = vmatmul.mubr.bf16.gmra.mrb[0].mxu0 %v1577
      %v1798 = vpop.f32.mrb[0].mxu0
      %v1799 = vadd.f32 %v1252, %v1798
      %v1800 = vpop.f32.mrb[0].mxu0
      %v1801 = vpop.f32.mrb[0].mxu0
      %v1802 = vadd.f32 %v1257, %v1801
      %v1803 = vpop.f32.mrb[0].mxu0
      %1804 = vmatprep.mubr.bf16.mxu0 %v1661
      %1805 = vmatmul.mubr.bf16.gmra.mrb[0].mxu0 %v1579
      %v1806 = vpop.f32.mrb[0].mxu0
      %v1807 = vadd.f32 %v1262, %v1806
      %v1808 = vpop.f32.mrb[0].mxu0
      %v1809 = vpop.f32.mrb[0].mxu0
      %v1810 = vadd.f32 %v1267, %v1809
      %v1811 = vpop.f32.mrb[0].mxu0
      %1812 = vmatprep.mubr.bf16.mxu0 %v1664
      %1813 = vmatmul.mubr.bf16.gmra.mrb[0].mxu0 %v1581
      %v1814 = vpop.f32.mrb[0].mxu0
      %v1815 = vadd.f32 %v1272, %v1814
      %v1816 = vpop.f32.mrb[0].mxu0
      %v1817 = vpop.f32.mrb[0].mxu0
      %v1818 = vadd.f32 %v1277, %v1817
      %v1819 = vpop.f32.mrb[0].mxu0
      %1820 = vmatprep.mubr.bf16.mxu0 %v1667
      %1821 = vmatmul.mubr.bf16.gmra.mrb[0].mxu0 %v1583
      %v1822 = vpop.f32.mrb[0].mxu0
      %v1823 = vadd.f32 %v1282, %v1822
      %v1824 = vpop.f32.mrb[0].mxu0
      %v1825 = vpop.f32.mrb[0].mxu0
      %v1826 = vadd.f32 %v1287, %v1825
      %v1827 = vpop.f32.mrb[0].mxu0
      %1828 = vmatprep.mubr.bf16.mxu0 %v1670
      %1829 = vmatmul.mubr.bf16.gmra.mrb[0].mxu0 %v1585
      %v1830 = vpop.f32.mrb[0].mxu0
      %v1831 = vadd.f32 %v1292, %v1830
      %v1832 = vpop.f32.mrb[0].mxu0
      %v1833 = vpop.f32.mrb[0].mxu0
      %v1834 = vadd.f32 %v1297, %v1833
      %v1835 = vpop.f32.mrb[0].mxu0
      %1836 = vmatprep.mubr.bf16.mxu0 %v1673
      %1837 = vmatmul.mubr.bf16.gmra.mrb[0].mxu0 %v1587
      %v1838 = vpop.f32.mrb[0].mxu0
      %v1839 = vadd.f32 %v1302, %v1838
      %v1840 = vpop.f32.mrb[0].mxu0
      %v1841 = vpop.f32.mrb[0].mxu0
      %v1842 = vadd.f32 %v1307, %v1841
      %v1843 = vpop.f32.mrb[0].mxu0
      %1844 = vmatprep.mubr.bf16.mxu0 %v1676
      %1845 = vmatmul.mubr.bf16.gmra.mrb[0].mxu0 %v1589
      %v1846 = vpop.f32.mrb[0].mxu0
      %v1847 = vadd.f32 %v1312, %v1846
      %v1848 = vpop.f32.mrb[0].mxu0
      %v1849 = vpop.f32.mrb[0].mxu0
      %v1850 = vadd.f32 %v1317, %v1849
      %v1851 = vpop.f32.mrb[0].mxu0
      %1852 = vmatprep.mubr.bf16.mxu0 %v1679
      %1853 = vmatmul.mubr.bf16.gmra.mrb[0].mxu0 %v1591
      %v1854 = vpop.f32.mrb[0].mxu0
      %v1855 = vadd.f32 %v1322, %v1854
      %v1856 = vpop.f32.mrb[0].mxu0
      %v1857 = vpop.f32.mrb[0].mxu0
      %v1858 = vadd.f32 %v1327, %v1857
      %v1859 = vpop.f32.mrb[0].mxu0
      %1860 = vmatprep.mubr.bf16.mxu0 %v1682
      %1861 = vmatmul.mubr.bf16.gmra.mrb[0].mxu0 %v1593
      %v1862 = vpop.f32.mrb[0].mxu0
      %v1863 = vadd.f32 %v1332, %v1862
      %v1864 = vpop.f32.mrb[0].mxu0
      %v1865 = vpop.f32.mrb[0].mxu0
      %v1866 = vadd.f32 %v1337, %v1865
      %v1867 = vpop.f32.mrb[0].mxu0
      %1868 = vmatprep.mubr.bf16.mxu0 %v1685
      %1869 = vmatmul.mubr.bf16.gmra.mrb[0].mxu0 %v1595
      %v1870 = vpop.f32.mrb[0].mxu0
      %v1871 = vadd.f32 %v1342, %v1870
      %v1872 = vpop.f32.mrb[0].mxu0
      %v1873 = vpop.f32.mrb[0].mxu0
      %v1874 = vadd.f32 %v1347, %v1873
      %v1875 = vpop.f32.mrb[0].mxu0
      %1876 = vmatprep.mubr.bf16.mxu0 %v1688
      %1877 = vmatmul.mubr.bf16.gmra.mrb[0].mxu0 %v1597
      %v1878 = vpop.f32.mrb[0].mxu0
      %v1879 = vadd.f32 %v1352, %v1878
      %v1880 = vpop.f32.mrb[0].mxu0
      %v1881 = vpop.f32.mrb[0].mxu0
      %v1882 = vadd.f32 %v1357, %v1881
      %v1883 = vpop.f32.mrb[0].mxu0
      %1884 = vmatprep.mubr.bf16.mxu0 %v1691
      %1885 = vmatmul.mubr.bf16.gmra.mrb[0].mxu0 %v1599
      %v1886 = vpop.f32.mrb[0].mxu0
      %v1887 = vadd.f32 %v1362, %v1886
      %v1888 = vpop.f32.mrb[0].mxu0
      %v1889 = vpop.f32.mrb[0].mxu0
      %v1890 = vadd.f32 %v1367, %v1889
      %v1891 = vpop.f32.mrb[0].mxu0
      %1892 = vmatprep.mubr.bf16.mxu0 %v1694
      %1893 = vmatmul.mubr.bf16.gmra.mrb[0].mxu0 %v1601
      %v1894 = vpop.f32.mrb[0].mxu0
      %v1895 = vadd.f32 %v1372, %v1894
      %v1896 = vpop.f32.mrb[0].mxu0
      %v1897 = vpop.f32.mrb[0].mxu0
      %v1898 = vadd.f32 %v1377, %v1897
      %v1899 = vpop.f32.mrb[0].mxu0
      %1900 = vmatprep.mubr.bf16.mxu0 %v1697
      %1901 = vmatmul.mubr.bf16.gmra.mrb[0].mxu0 %v1603
      %v1902 = vpop.f32.mrb[0].mxu0
      %v1903 = vadd.f32 %v1382, %v1902
      %v1904 = vpop.f32.mrb[0].mxu0
      %v1905 = vpop.f32.mrb[0].mxu0
      %v1906 = vadd.f32 %v1387, %v1905
      %v1907 = vpop.f32.mrb[0].mxu0
      %1908 = vmatprep.mubr.bf16.mxu0 %v1700
      %1909 = vmatmul.mubr.bf16.gmra.mrb[0].mxu0 %v1605
      %v1910 = vpop.f32.mrb[0].mxu0
      %v1911 = vadd.f32 %v1392, %v1910
      %v1912 = vpop.f32.mrb[0].mxu0
      %v1913 = vpop.f32.mrb[0].mxu0
      %v1914 = vadd.f32 %v1397, %v1913
      %v1915 = vpop.f32.mrb[0].mxu0
      %1916 = vmatprep.mubr.bf16.mxu0 %v1703
      %1917 = vmatmul.mubr.bf16.gmra.mrb[0].mxu0 %v1607
      %v1918 = vpop.f32.mrb[0].mxu0
      %v1919 = vadd.f32 %v1402, %v1918
      %v1920 = vpop.f32.mrb[0].mxu0
      %v1921 = vpop.f32.mrb[0].mxu0
      %v1922 = vadd.f32 %v1407, %v1921
      %v1923 = vpop.f32.mrb[0].mxu0
      %1924 = vmatprep.mubr.bf16.mxu0 %v1706
      %1925 = vmatmul.mubr.bf16.gmra.mrb[0].mxu0 %v1609
      %v1926 = vpop.f32.mrb[0].mxu0
      %v1927 = vadd.f32 %v1412, %v1926
      %v1928 = vpop.f32.mrb[0].mxu0
      %v1929 = vpop.f32.mrb[0].mxu0
      %v1930 = vadd.f32 %v1417, %v1929
      %v1931 = vpop.f32.mrb[0].mxu0
      %1932 = vdwg.mxu0
      %v1933 = vmax.f32 %v1743, 0.0
      %v1934 = vmax.f32 %v1746, 0.0
      %v1935 = vmax.f32 %v1751, 0.0
      %v1936 = vmax.f32 %v1754, 0.0
      %v1937 = vmax.f32 %v1759, 0.0
      %v1938 = vmax.f32 %v1762, 0.0
      %v1939 = vmax.f32 %v1767, 0.0
      %v1940 = vmax.f32 %v1770, 0.0
      %v1941 = vmax.f32 %v1775, 0.0
      %v1942 = vmax.f32 %v1778, 0.0
      %v1943 = vmax.f32 %v1783, 0.0
      %v1944 = vmax.f32 %v1786, 0.0
      %v1945 = vmax.f32 %v1791, 0.0
      %v1946 = vmax.f32 %v1794, 0.0
      %v1947 = vmax.f32 %v1799, 0.0
      %v1948 = vmax.f32 %v1802, 0.0
      %v1949 = vmax.f32 %v1807, 0.0
      %v1950 = vmax.f32 %v1810, 0.0
      %v1951 = vmax.f32 %v1815, 0.0
      %v1952 = vmax.f32 %v1818, 0.0
      %v1953 = vmax.f32 %v1823, 0.0
      %v1954 = vmax.f32 %v1826, 0.0
      %v1955 = vmax.f32 %v1831, 0.0
      %v1956 = vmax.f32 %v1834, 0.0
      %v1957 = vmax.f32 %v1839, 0.0
      %v1958 = vmax.f32 %v1842, 0.0
      %v1959 = vmax.f32 %v1847, 0.0
      %v1960 = vmax.f32 %v1850, 0.0
      %v1961 = vmax.f32 %v1855, 0.0
      %v1962 = vmax.f32 %v1858, 0.0
      %v1963 = vmax.f32 %v1863, 0.0
      %v1964 = vmax.f32 %v1866, 0.0
      %v1965 = vmax.f32 %v1871, 0.0
      %v1966 = vmax.f32 %v1874, 0.0
      %v1967 = vmax.f32 %v1879, 0.0
      %v1968 = vmax.f32 %v1882, 0.0
      %v1969 = vmax.f32 %v1887, 0.0
      %v1970 = vmax.f32 %v1890, 0.0
      %v1971 = vmax.f32 %v1895, 0.0
      %v1972 = vmax.f32 %v1898, 0.0
      %v1973 = vmax.f32 %v1903, 0.0
      %v1974 = vmax.f32 %v1906, 0.0
      %v1975 = vmax.f32 %v1911, 0.0
      %v1976 = vmax.f32 %v1914, 0.0
      %v1977 = vmax.f32 %v1919, 0.0
      %v1978 = vmax.f32 %v1922, 0.0
      %v1979 = vmax.f32 %v1927, 0.0
      %v1980 = vmax.f32 %v1930, 0.0
      %v1981 = vpack.c.bf16 %v1934, %v1933
      %v1982 = vpack.c.bf16 %v1936, %v1935
      %v1983 = vpack.c.bf16 %v1938, %v1937
      %v1984 = vpack.c.bf16 %v1940, %v1939
      %v1985 = vpack.c.bf16 %v1942, %v1941
      %v1986 = vpack.c.bf16 %v1944, %v1943
      %v1987 = vpack.c.bf16 %v1946, %v1945
      %v1988 = vpack.c.bf16 %v1948, %v1947
      %v1989 = vpack.c.bf16 %v1950, %v1949
      %v1990 = vpack.c.bf16 %v1952, %v1951
      %v1991 = vpack.c.bf16 %v1954, %v1953
      %v1992 = vpack.c.bf16 %v1956, %v1955
      %v1993 = vpack.c.bf16 %v1958, %v1957
      %v1994 = vpack.c.bf16 %v1960, %v1959
      %v1995 = vpack.c.bf16 %v1962, %v1961
      %v1996 = vpack.c.bf16 %v1964, %v1963
      %v1997 = vpack.c.bf16 %v1966, %v1965
      %v1998 = vpack.c.bf16 %v1968, %v1967
      %v1999 = vpack.c.bf16 %v1970, %v1969
      %v2000 = vpack.c.bf16 %v1972, %v1971
      %v2001 = vpack.c.bf16 %v1974, %v1973
      %v2002 = vpack.c.bf16 %v1976, %v1975
      %v2003 = vpack.c.bf16 %v1978, %v1977
      %v2004 = vpack.c.bf16 %v1980, %v1979
      %v2005 = vld [vmem:[%s3] sm:$0xff]
      %v2006 = vld [vmem:[%s3 + $0x8] sm:$0xf]
      %v2007 = vld [vmem:[%s3 + $0xc] sm:$0xff]
      %v2008 = vld [vmem:[%s3 + $0x14] sm:$0xf]
      %v2009 = vld [vmem:[%s3 + $0x18] sm:$0xff]
      %v2010 = vld [vmem:[%s3 + $0x20] sm:$0xf]
      %v2011 = vld [vmem:[%s3 + $0x24] sm:$0xff]
      %v2012 = vld [vmem:[%s3 + $0x2c] sm:$0xf]
      %v2013 = vld [vmem:[%s3 + $0x30] sm:$0xff]
      %v2014 = vld [vmem:[%s3 + $0x38] sm:$0xf]
      %v2015 = vld [vmem:[%s3 + $0x3c] sm:$0xff]
      %v2016 = vld [vmem:[%s3 + $0x44] sm:$0xf]
      %v2017 = vld [vmem:[%s3 + $0x48] sm:$0xff]
      %v2018 = vld [vmem:[%s3 + $0x50] sm:$0xf]
      %v2019 = vld [vmem:[%s3 + $0x54] sm:$0xff]
      %v2020 = vld [vmem:[%s3 + $0x5c] sm:$0xf]
      %v2021 = vld [vmem:[%s3 + $0x60] sm:$0xff]
      %v2022 = vld [vmem:[%s3 + $0x68] sm:$0xf]
      %v2023 = vld [vmem:[%s3 + $0x6c] sm:$0xff]
      %v2024 = vld [vmem:[%s3 + $0x74] sm:$0xf]
      %v2025 = vld [vmem:[%s3 + $0x78] sm:$0xff]
      %v2026 = vld [vmem:[%s3 + $0x80] sm:$0xf]
      %v2027 = vld [vmem:[%s3 + $0x84] sm:$0xff]
      %v2028 = vld [vmem:[%s3 + $0x8c] sm:$0xf]
      %v2029 = vld [vmem:[%s4 + $0x180] sm:$0xff]
      %v2030 = vld [vmem:[%s4 + $0x188] sm:$0xff]
      %v2031 = vld [vmem:[%s4 + $0x190] sm:$0xff]
      %v2032 = vld [vmem:[%s4 + $0x198] sm:$0xff]
      %v2033 = vld [vmem:[%s4 + $0x1a0] sm:$0xff]
      %v2034 = vld [vmem:[%s4 + $0x1a8] sm:$0xff]
      %v2035 = vld [vmem:[%s4 + $0x1b0] sm:$0xff]
      %v2036 = vld [vmem:[%s4 + $0x1b8] sm:$0xff]
      %v2037 = vld [vmem:[%s4 + $0x1c0] sm:$0xff]
      %v2038 = vld [vmem:[%s4 + $0x1c8] sm:$0xff]
      %v2039 = vld [vmem:[%s4 + $0x1d0] sm:$0xff]
      %v2040 = vld [vmem:[%s4 + $0x1d8] sm:$0xff]
      %2042 = vset.pattern.permute.xlu0 0
      %2043 = vperm.xlu0 %2042, %v2029
      %v2044 = vpop.permute.xlu0 %2043
      %2047 = vset.pattern.permute.xlu0 0
      %2048 = vperm.xlu0 %2047, %v2030
      %v2049 = vpop.permute.xlu0 %2048
      %2052 = vset.pattern.permute.xlu0 0
      %2053 = vperm.xlu0 %2052, %v2031
      %v2054 = vpop.permute.xlu0 %2053
      %2057 = vset.pattern.permute.xlu0 0
      %2058 = vperm.xlu0 %2057, %v2032
      %v2059 = vpop.permute.xlu0 %2058
      %2062 = vset.pattern.permute.xlu0 0
      %2063 = vperm.xlu0 %2062, %v2033
      %v2064 = vpop.permute.xlu0 %2063
      %2067 = vset.pattern.permute.xlu0 0
      %2068 = vperm.xlu0 %2067, %v2034
      %v2069 = vpop.permute.xlu0 %2068
      %2072 = vset.pattern.permute.xlu0 0
      %2073 = vperm.xlu0 %2072, %v2035
      %v2074 = vpop.permute.xlu0 %2073
      %2077 = vset.pattern.permute.xlu0 0
      %2078 = vperm.xlu0 %2077, %v2036
      %v2079 = vpop.permute.xlu0 %2078
      %2082 = vset.pattern.permute.xlu0 0
      %2083 = vperm.xlu0 %2082, %v2037
      %v2084 = vpop.permute.xlu0 %2083
      %2087 = vset.pattern.permute.xlu0 0
      %2088 = vperm.xlu0 %2087, %v2038
      %v2089 = vpop.permute.xlu0 %2088
      %2092 = vset.pattern.permute.xlu0 0
      %2093 = vperm.xlu0 %2092, %v2039
      %v2094 = vpop.permute.xlu0 %2093
      %2097 = vset.pattern.permute.xlu0 0
      %2098 = vperm.xlu0 %2097, %v2040
      %v2099 = vpop.permute.xlu0 %2098
      %v2125 = vunpack.c.l.b16 %v2005
      %v2126 = vunpack.c.h.b16 %v2005
      %v2127 = vunpack.c.l.b16 %v2006
      %v2128 = vunpack.c.l.b16 %v2007
      %v2129 = vunpack.c.h.b16 %v2007
      %v2130 = vunpack.c.l.b16 %v2008
      %v2131 = vunpack.c.l.b16 %v2009
      %v2132 = vunpack.c.h.b16 %v2009
      %v2133 = vunpack.c.l.b16 %v2010
      %v2134 = vunpack.c.l.b16 %v2011
      %v2135 = vunpack.c.h.b16 %v2011
      %v2136 = vunpack.c.l.b16 %v2012
      %v2137 = vunpack.c.l.b16 %v2013
      %v2138 = vunpack.c.h.b16 %v2013
      %v2139 = vunpack.c.l.b16 %v2014
      %v2140 = vunpack.c.l.b16 %v2015
      %v2141 = vunpack.c.h.b16 %v2015
      %v2142 = vunpack.c.l.b16 %v2016
      %v2143 = vunpack.c.l.b16 %v2017
      %v2144 = vunpack.c.h.b16 %v2017
      %v2145 = vunpack.c.l.b16 %v2018
      %v2146 = vunpack.c.l.b16 %v2019
      %v2147 = vunpack.c.h.b16 %v2019
      %v2148 = vunpack.c.l.b16 %v2020
      %v2149 = vunpack.c.l.b16 %v2021
      %v2150 = vunpack.c.h.b16 %v2021
      %v2151 = vunpack.c.l.b16 %v2022
      %v2152 = vunpack.c.l.b16 %v2023
      %v2153 = vunpack.c.h.b16 %v2023
      %v2154 = vunpack.c.l.b16 %v2024
      %v2155 = vunpack.c.l.b16 %v2025
      %v2156 = vunpack.c.h.b16 %v2025
      %v2157 = vunpack.c.l.b16 %v2026
      %v2158 = vunpack.c.l.b16 %v2027
      %v2159 = vunpack.c.h.b16 %v2027
      %v2160 = vunpack.c.l.b16 %v2028
      %v2161 = vpack.c.b16 %v2128, %v2125
      %v2162 = vpack.c.b16 %v2129, %v2126
      %v2163 = vpack.c.b16 %v2130, %v2127
      %v2164 = vpack.c.b16 %v2134, %v2131
      %v2165 = vpack.c.b16 %v2135, %v2132
      %v2166 = vpack.c.b16 %v2136, %v2133
      %v2167 = vpack.c.b16 %v2140, %v2137
      %v2168 = vpack.c.b16 %v2141, %v2138
      %v2169 = vpack.c.b16 %v2142, %v2139
      %v2170 = vpack.c.b16 %v2146, %v2143
      %v2171 = vpack.c.b16 %v2147, %v2144
      %v2172 = vpack.c.b16 %v2148, %v2145
      %v2173 = vpack.c.b16 %v2152, %v2149
      %v2174 = vpack.c.b16 %v2153, %v2150
      %v2175 = vpack.c.b16 %v2154, %v2151
      %v2176 = vpack.c.b16 %v2158, %v2155
      %v2177 = vpack.c.b16 %v2159, %v2156
      %v2178 = vpack.c.b16 %v2160, %v2157
      %2197 = vmatprep.subr.bf16.mxu0 0
      %2198 = vmatpush1.bf16.msra.mxu0 %v1981
      %2199 = vmatprep.subr.bf16.mxu0 0
      %2200 = vmatpush1.bf16.msra.mxu0 %v1982
      %2201 = vmatprep.subr.bf16.mxu0 0
      %2202 = vmatpush1.bf16.msra.mxu0 %v1983
      %2203 = vmatprep.subr.bf16.mxu0 0
      %2204 = vmatpush1.bf16.msra.mxu0 %v1984
      %2205 = vmatprep.subr.bf16.mxu0 0
      %2206 = vmatpush1.bf16.msra.mxu0 %v1985
      %2207 = vmatprep.subr.bf16.mxu0 0
      %2208 = vmatpush1.bf16.msra.mxu0 %v1986
      %2209 = vmatprep.subr.bf16.mxu0 0
      %2210 = vmatpush1.bf16.msra.mxu0 %v1987
      %2211 = vmatprep.subr.bf16.mxu0 0
      %2212 = vmatpush1.bf16.msra.mxu0 %v1988
      %2213 = vmatprep.subr.bf16.mxu0 0
      %2214 = vmatpush1.bf16.msra.mxu0 %v1989
      %2215 = vmatprep.subr.bf16.mxu0 0
      %2216 = vmatpush1.bf16.msra.mxu0 %v1990
      %2217 = vmatprep.subr.bf16.mxu0 0
      %2218 = vmatpush1.bf16.msra.mxu0 %v1991
      %2219 = vmatprep.subr.bf16.mxu0 0
      %2220 = vmatpush1.bf16.msra.mxu0 %v1992
      %2221 = vmatprep.subr.bf16.mxu0 0
      %2222 = vmatpush1.bf16.msra.mxu0 %v1993
      %2223 = vmatprep.subr.bf16.mxu0 0
      %2224 = vmatpush1.bf16.msra.mxu0 %v1994
      %2225 = vmatprep.subr.bf16.mxu0 0
      %2226 = vmatpush1.bf16.msra.mxu0 %v1995
      %2227 = vmatprep.subr.bf16.mxu0 0
      %2228 = vmatpush1.bf16.msra.mxu0 %v1996
      %2229 = vmatprep.mubr.bf16.mxu0 %v2162
      %2230 = vmatmul.mubr.bf16.gmra.mrb[0].mxu0 %v2161
      %v2231 = vpop.f32.mrb[0].mxu0
      %v2232 = vadd.f32 %v2044, %v2231
      %v2233 = vpop.f32.mrb[0].mxu0
      %v2234 = vpop.f32.mrb[0].mxu0
      %v2235 = vadd.f32 %v2049, %v2234
      %v2236 = vpop.f32.mrb[0].mxu0
      %2237 = vmatprep.mubr.bf16.mxu0 %v2165
      %2238 = vmatmul.mubr.bf16.gmra.mrb[0].mxu0 %v2164
      %v2239 = vpop.f32.mrb[0].mxu0
      %v2240 = vadd.f32 %v2054, %v2239
      %v2241 = vpop.f32.mrb[0].mxu0
      %v2242 = vpop.f32.mrb[0].mxu0
      %v2243 = vadd.f32 %v2059, %v2242
      %v2244 = vpop.f32.mrb[0].mxu0
      %2245 = vmatprep.mubr.bf16.mxu0 %v2168
      %2246 = vmatmul.mubr.bf16.gmra.mrb[0].mxu0 %v2167
      %v2247 = vpop.f32.mrb[0].mxu0
      %v2248 = vadd.f32 %v2064, %v2247
      %v2249 = vpop.f32.mrb[0].mxu0
      %v2250 = vpop.f32.mrb[0].mxu0
      %v2251 = vadd.f32 %v2069, %v2250
      %v2252 = vpop.f32.mrb[0].mxu0
      %2253 = vmatprep.mubr.bf16.mxu0 %v2171
      %2254 = vmatmul.mubr.bf16.gmra.mrb[0].mxu0 %v2170
      %v2255 = vpop.f32.mrb[0].mxu0
      %v2256 = vadd.f32 %v2074, %v2255
      %v2257 = vpop.f32.mrb[0].mxu0
      %v2258 = vpop.f32.mrb[0].mxu0
      %v2259 = vadd.f32 %v2079, %v2258
      %v2260 = vpop.f32.mrb[0].mxu0
      %2261 = vmatprep.mubr.bf16.mxu0 %v2174
      %2262 = vmatmul.mubr.bf16.gmra.mrb[0].mxu0 %v2173
      %v2263 = vpop.f32.mrb[0].mxu0
      %v2264 = vadd.f32 %v2084, %v2263
      %v2265 = vpop.f32.mrb[0].mxu0
      %v2266 = vpop.f32.mrb[0].mxu0
      %v2267 = vadd.f32 %v2089, %v2266
      %v2268 = vpop.f32.mrb[0].mxu0
      %2269 = vmatprep.mubr.bf16.mxu0 %v2177
      %2270 = vmatmul.mubr.bf16.gmra.mrb[0].mxu0 %v2176
      %v2271 = vpop.f32.mrb[0].mxu0
      %v2272 = vadd.f32 %v2094, %v2271
      %v2273 = vpop.f32.mrb[0].mxu0
      %v2274 = vpop.f32.mrb[0].mxu0
      %v2275 = vadd.f32 %v2099, %v2274
      %v2276 = vpop.f32.mrb[0].mxu0
      %2277 = vdwg.mxu0
      %2278 = vmatprep.subr.bf16.mxu0 0
      %2279 = vmatpush1.bf16.msra.mxu0 %v1997
      %2280 = vmatprep.subr.bf16.mxu0 0
      %2281 = vmatpush1.bf16.msra.mxu0 %v1998
      %2282 = vmatprep.subr.bf16.mxu0 0
      %2283 = vmatpush1.bf16.msra.mxu0 %v1999
      %2284 = vmatprep.subr.bf16.mxu0 0
      %2285 = vmatpush1.bf16.msra.mxu0 %v2000
      %2286 = vmatprep.subr.bf16.mxu0 0
      %2287 = vmatpush1.bf16.msra.mxu0 %v2001
      %2288 = vmatprep.subr.bf16.mxu0 0
      %2289 = vmatpush1.bf16.msra.mxu0 %v2002
      %2290 = vmatprep.subr.bf16.mxu0 0
      %2291 = vmatpush1.bf16.msra.mxu0 %v2003
      %2292 = vmatprep.subr.bf16.mxu0 0
      %2293 = vmatpush1.bf16.msra.mxu0 %v2004
      %2294 = vmatprep.subr.bf16.mxu0 0
      %2295 = vmatpush1.bf16.msra.mxu0 0
      %2296 = vmatprep.subr.bf16.mxu0 0
      %2297 = vmatpush1.bf16.msra.mxu0 0
      %2298 = vmatprep.subr.bf16.mxu0 0
      %2299 = vmatpush1.bf16.msra.mxu0 0
      %2300 = vmatprep.subr.bf16.mxu0 0
      %2301 = vmatpush1.bf16.msra.mxu0 0
      %2302 = vmatprep.subr.bf16.mxu0 0
      %2303 = vmatpush1.bf16.msra.mxu0 0
      %2304 = vmatprep.subr.bf16.mxu0 0
      %2305 = vmatpush1.bf16.msra.mxu0 0
      %2306 = vmatprep.subr.bf16.mxu0 0
      %2307 = vmatpush1.bf16.msra.mxu0 0
      %2308 = vmatprep.subr.bf16.mxu0 0
      %2309 = vmatpush1.bf16.msra.mxu0 0
      %2310 = vmatprep.mubr.bf16.mxu0 0
      %2311 = vmatmul.mubr.bf16.gmra.mrb[0].mxu0 %v2163
      %v2312 = vpop.f32.mrb[0].mxu0
      %v2313 = vadd.f32 %v2232, %v2312
      %v2314 = vpop.f32.mrb[0].mxu0
      %v2315 = vpop.f32.mrb[0].mxu0
      %v2316 = vadd.f32 %v2235, %v2315
      %v2317 = vpop.f32.mrb[0].mxu0
      %2318 = vmatprep.mubr.bf16.mxu0 0
      %2319 = vmatmul.mubr.bf16.gmra.mrb[0].mxu0 %v2166
      %v2320 = vpop.f32.mrb[0].mxu0
      %v2321 = vadd.f32 %v2240, %v2320
      %v2322 = vpop.f32.mrb[0].mxu0
      %v2323 = vpop.f32.mrb[0].mxu0
      %v2324 = vadd.f32 %v2243, %v2323
      %v2325 = vpop.f32.mrb[0].mxu0
      %2326 = vmatprep.mubr.bf16.mxu0 0
      %2327 = vmatmul.mubr.bf16.gmra.mrb[0].mxu0 %v2169
      %v2328 = vpop.f32.mrb[0].mxu0
      %v2329 = vadd.f32 %v2248, %v2328
      %v2330 = vpop.f32.mrb[0].mxu0
      %v2331 = vpop.f32.mrb[0].mxu0
      %v2332 = vadd.f32 %v2251, %v2331
      %v2333 = vpop.f32.mrb[0].mxu0
      %2334 = vmatprep.mubr.bf16.mxu0 0
      %2335 = vmatmul.mubr.bf16.gmra.mrb[0].mxu0 %v2172
      %v2336 = vpop.f32.mrb[0].mxu0
      %v2337 = vadd.f32 %v2256, %v2336
      %v2338 = vpop.f32.mrb[0].mxu0
      %v2339 = vpop.f32.mrb[0].mxu0
      %v2340 = vadd.f32 %v2259, %v2339
      %v2341 = vpop.f32.mrb[0].mxu0
      %2342 = vmatprep.mubr.bf16.mxu0 0
      %2343 = vmatmul.mubr.bf16.gmra.mrb[0].mxu0 %v2175
      %v2344 = vpop.f32.mrb[0].mxu0
      %v2345 = vadd.f32 %v2264, %v2344
      %v2346 = vpop.f32.mrb[0].mxu0
      %v2347 = vpop.f32.mrb[0].mxu0
      %v2348 = vadd.f32 %v2267, %v2347
      %v2349 = vpop.f32.mrb[0].mxu0
      %2350 = vmatprep.mubr.bf16.mxu0 0
      %2351 = vmatmul.mubr.bf16.gmra.mrb[0].mxu0 %v2178
      %v2352 = vpop.f32.mrb[0].mxu0
      %v2353 = vadd.f32 %v2272, %v2352
      %v2354 = vpop.f32.mrb[0].mxu0
      %v2355 = vpop.f32.mrb[0].mxu0
      %v2356 = vadd.f32 %v2275, %v2355
      %v2357 = vpop.f32.mrb[0].mxu0
      %2358 = vdwg.mxu0
      %v2359 = vlaneseq
      %v2360 = vand.u32 %v2359, 127
      %s2361 = smul.u32 %s29, 128
      %v2362 = vstv %s2361
      %v2363 = vadd.s32 %v2362, %v2360
      %vm2364 = vcmp.lt.s32.totalorder %v2363, 16
      %v2365 = vsel %vm2364, 1, 0
      %vm2366 = vcmp.eq.s32.totalorder %v2365, 1
      %v2367 = vsel %vm2366, %v2313, -1e+30
      %v2368 = vsel %vm2366, %v2316, -1e+30
      %v2369 = vsel %vm2366, %v2321, -1e+30
      %v2370 = vsel %vm2366, %v2324, -1e+30
      %v2371 = vsel %vm2366, %v2329, -1e+30
      %v2372 = vsel %vm2366, %v2332, -1e+30
      %v2373 = vsel %vm2366, %v2337, -1e+30
      %v2374 = vsel %vm2366, %v2340, -1e+30
      %v2375 = vsel %vm2366, %v2345, -1e+30
      %v2376 = vsel %vm2366, %v2348, -1e+30
      %v2377 = vsel %vm2366, %v2353, -1e+30
      %v2378 = vsel %vm2366, %v2356, -1e+30
      %2379 = vmax.xlane.f32.xlu0 %v2367
      %v2380 = vpop.xlane.xlu0 %2379
      %2381 = vmax.xlane.f32.xlu0 %v2368
      %v2382 = vpop.xlane.xlu0 %2381
      %2383 = vmax.xlane.f32.xlu0 %v2369
      %v2384 = vpop.xlane.xlu0 %2383
      %2385 = vmax.xlane.f32.xlu0 %v2370
      %v2386 = vpop.xlane.xlu0 %2385
      %2387 = vmax.xlane.f32.xlu0 %v2371
      %v2388 = vpop.xlane.xlu0 %2387
      %2389 = vmax.xlane.f32.xlu0 %v2372
      %v2390 = vpop.xlane.xlu0 %2389
      %2391 = vmax.xlane.f32.xlu0 %v2373
      %v2392 = vpop.xlane.xlu0 %2391
      %2393 = vmax.xlane.f32.xlu0 %v2374
      %v2394 = vpop.xlane.xlu0 %2393
      %2395 = vmax.xlane.f32.xlu0 %v2375
      %v2396 = vpop.xlane.xlu0 %2395
      %2397 = vmax.xlane.f32.xlu0 %v2376
      %v2398 = vpop.xlane.xlu0 %2397
      %2399 = vmax.xlane.f32.xlu0 %v2377
      %v2400 = vpop.xlane.xlu0 %2399
      %2401 = vmax.xlane.f32.xlu0 %v2378
      %v2402 = vpop.xlane.xlu0 %2401
      %p2403 = scmp.eq.s32.totalorder %s29, 0
      // Predicated region
      $region73: #{autoencoder_transpn_forward.2} parent=71 // pred_check
        %p2404 = pneg %p2403
      $region74: #{autoencoder_transpn_forward.2} parent=71 // pred_check_branch
        %2406 = sbr.rel (%p2404) target = $region76
      $region75: #{autoencoder_transpn_forward.2} parent=71 // pred_region
        %vm2407 = vcmask 7168
        %2408 = vst.msk [vmem:[#allocation2] sm:$0xff] %vm2407, -1e+30
        %2409 = vst.msk [vmem:[#allocation2 + $0x8] sm:$0xff] %vm2407, -1e+30
        %2410 = vst.msk [vmem:[#allocation2 + $0x10] sm:$0xff] %vm2407, -1e+30
        %2411 = vst.msk [vmem:[#allocation2 + $0x18] sm:$0xff] %vm2407, -1e+30
        %2412 = vst.msk [vmem:[#allocation2 + $0x20] sm:$0xff] %vm2407, -1e+30
        %2413 = vst.msk [vmem:[#allocation2 + $0x28] sm:$0xff] %vm2407, -1e+30
        %2414 = vst.msk [vmem:[#allocation2 + $0x30] sm:$0xff] %vm2407, -1e+30
        %2415 = vst.msk [vmem:[#allocation2 + $0x38] sm:$0xff] %vm2407, -1e+30
        %2416 = vst.msk [vmem:[#allocation2 + $0x40] sm:$0xff] %vm2407, -1e+30
        %2417 = vst.msk [vmem:[#allocation2 + $0x48] sm:$0xff] %vm2407, -1e+30
        %2418 = vst.msk [vmem:[#allocation2 + $0x50] sm:$0xff] %vm2407, -1e+30
        %2419 = vst.msk [vmem:[#allocation2 + $0x58] sm:$0xff] %vm2407, -1e+30
      $region76: #{autoencoder_transpn_forward.2} parent=71 // pred_fallthru
        _
      %v2420 = vld [vmem:[#allocation2] sm:$0xff]
      %v2421 = vld [vmem:[#allocation2 + $0x8] sm:$0xff]
      %v2422 = vld [vmem:[#allocation2 + $0x10] sm:$0xff]
      %v2423 = vld [vmem:[#allocation2 + $0x18] sm:$0xff]
      %v2424 = vld [vmem:[#allocation2 + $0x20] sm:$0xff]
      %v2425 = vld [vmem:[#allocation2 + $0x28] sm:$0xff]
      %v2426 = vld [vmem:[#allocation2 + $0x30] sm:$0xff]
      %v2427 = vld [vmem:[#allocation2 + $0x38] sm:$0xff]
      %v2428 = vld [vmem:[#allocation2 + $0x40] sm:$0xff]
      %v2429 = vld [vmem:[#allocation2 + $0x48] sm:$0xff]
      %v2430 = vld [vmem:[#allocation2 + $0x50] sm:$0xff]
      %v2431 = vld [vmem:[#allocation2 + $0x58] sm:$0xff]
      %v2432 = vmax.f32 %v2420, %v2380
      %v2433 = vmax.f32 %v2421, %v2382
      %v2434 = vmax.f32 %v2422, %v2384
      %v2435 = vmax.f32 %v2423, %v2386
      %v2436 = vmax.f32 %v2424, %v2388
      %v2437 = vmax.f32 %v2425, %v2390
      %v2438 = vmax.f32 %v2426, %v2392
      %v2439 = vmax.f32 %v2427, %v2394
      %v2440 = vmax.f32 %v2428, %v2396
      %v2441 = vmax.f32 %v2429, %v2398
      %v2442 = vmax.f32 %v2430, %v2400
      %v2443 = vmax.f32 %v2431, %v2402
      %vm2444 = vcmask 7168
      %2445 = vst.msk [vmem:[#allocation2] sm:$0xff] %vm2444, %v2432
      %2446 = vst.msk [vmem:[#allocation2 + $0x8] sm:$0xff] %vm2444, %v2433
      %2447 = vst.msk [vmem:[#allocation2 + $0x10] sm:$0xff] %vm2444, %v2434
      %2448 = vst.msk [vmem:[#allocation2 + $0x18] sm:$0xff] %vm2444, %v2435
      %2449 = vst.msk [vmem:[#allocation2 + $0x20] sm:$0xff] %vm2444, %v2436
      %2450 = vst.msk [vmem:[#allocation2 + $0x28] sm:$0xff] %vm2444, %v2437
      %2451 = vst.msk [vmem:[#allocation2 + $0x30] sm:$0xff] %vm2444, %v2438
      %2452 = vst.msk [vmem:[#allocation2 + $0x38] sm:$0xff] %vm2444, %v2439
      %2453 = vst.msk [vmem:[#allocation2 + $0x40] sm:$0xff] %vm2444, %v2440
      %2454 = vst.msk [vmem:[#allocation2 + $0x48] sm:$0xff] %vm2444, %v2441
      %2455 = vst.msk [vmem:[#allocation2 + $0x50] sm:$0xff] %vm2444, %v2442
      %2456 = vst.msk [vmem:[#allocation2 + $0x58] sm:$0xff] %vm2444, %v2443
      // Predicated region
      $region77: #{autoencoder_transpn_forward.2} parent=71 // pred_check
        %p2457 = pneg %p2403
      $region78: #{autoencoder_transpn_forward.2} parent=71 // pred_check_branch
        %2459 = sbr.rel (%p2457) target = $region80
      $region79: #{autoencoder_transpn_forward.2} parent=71 // pred_region
        %v2460 = vld [vmem:[#allocation2] sm:$0xff]
        %v2461 = vld [vmem:[#allocation2 + $0x8] sm:$0xff]
        %v2462 = vld [vmem:[#allocation2 + $0x10] sm:$0xff]
        %v2463 = vld [vmem:[#allocation2 + $0x18] sm:$0xff]
        %v2464 = vld [vmem:[#allocation2 + $0x20] sm:$0xff]
        %v2465 = vld [vmem:[#allocation2 + $0x28] sm:$0xff]
        %v2466 = vld [vmem:[#allocation2 + $0x30] sm:$0xff]
        %v2467 = vld [vmem:[#allocation2 + $0x38] sm:$0xff]
        %v2468 = vld [vmem:[#allocation2 + $0x40] sm:$0xff]
        %v2469 = vld [vmem:[#allocation2 + $0x48] sm:$0xff]
        %v2470 = vld [vmem:[#allocation2 + $0x50] sm:$0xff]
        %v2471 = vld [vmem:[#allocation2 + $0x58] sm:$0xff]
        %v2472 = vlaneseq
        %v2473 = vshrl.u32 %v2472, 7
        %v2474 = vadd.s32 %v2473, 8
        %v2475 = vadd.s32 %v2473, 16
        %v2476 = vadd.s32 %v2473, 24
        %v2477 = vadd.s32 %v2473, 32
        %v2478 = vadd.s32 %v2473, 40
        %v2479 = vadd.s32 %v2473, 48
        %v2480 = vadd.s32 %v2473, 56
        %v2481 = vadd.s32 %v2473, 64
        %v2482 = vadd.s32 %v2473, 72
        %v2483 = vadd.s32 %v2473, 80
        %v2484 = vadd.s32 %v2473, 88
        %vm2485 = vcmp.eq.s32.totalorder %v2473, %v2360
        %vm2486 = vcmp.eq.s32.totalorder %v2474, %v2360
        %vm2487 = vcmp.eq.s32.totalorder %v2475, %v2360
        %vm2488 = vcmp.eq.s32.totalorder %v2476, %v2360
        %vm2489 = vcmp.eq.s32.totalorder %v2477, %v2360
        %vm2490 = vcmp.eq.s32.totalorder %v2478, %v2360
        %vm2491 = vcmp.eq.s32.totalorder %v2479, %v2360
        %vm2492 = vcmp.eq.s32.totalorder %v2480, %v2360
        %vm2493 = vcmp.eq.s32.totalorder %v2481, %v2360
        %vm2494 = vcmp.eq.s32.totalorder %v2482, %v2360
        %vm2495 = vcmp.eq.s32.totalorder %v2483, %v2360
        %vm2496 = vcmp.eq.s32.totalorder %v2484, %v2360
        %2498 = vset.pattern.permute.xlu0 0
        %2499 = vperm.xlu0 %2498, %v2460
        %v2500 = vpop.permute.xlu0 %2499
        %2503 = vset.pattern.permute.xlu0 0
        %2504 = vperm.xlu0 %2503, %v2461
        %v2505 = vpop.permute.xlu0 %2504
        %2508 = vset.pattern.permute.xlu0 0
        %2509 = vperm.xlu0 %2508, %v2462
        %v2510 = vpop.permute.xlu0 %2509
        %2513 = vset.pattern.permute.xlu0 0
        %2514 = vperm.xlu0 %2513, %v2463
        %v2515 = vpop.permute.xlu0 %2514
        %2518 = vset.pattern.permute.xlu0 0
        %2519 = vperm.xlu0 %2518, %v2464
        %v2520 = vpop.permute.xlu0 %2519
        %2523 = vset.pattern.permute.xlu0 0
        %2524 = vperm.xlu0 %2523, %v2465
        %v2525 = vpop.permute.xlu0 %2524
        %2528 = vset.pattern.permute.xlu0 0
        %2529 = vperm.xlu0 %2528, %v2466
        %v2530 = vpop.permute.xlu0 %2529
        %2533 = vset.pattern.permute.xlu0 0
        %2534 = vperm.xlu0 %2533, %v2467
        %v2535 = vpop.permute.xlu0 %2534
        %2538 = vset.pattern.permute.xlu0 0
        %2539 = vperm.xlu0 %2538, %v2468
        %v2540 = vpop.permute.xlu0 %2539
        %2543 = vset.pattern.permute.xlu0 0
        %2544 = vperm.xlu0 %2543, %v2469
        %v2545 = vpop.permute.xlu0 %2544
        %2548 = vset.pattern.permute.xlu0 0
        %2549 = vperm.xlu0 %2548, %v2470
        %v2550 = vpop.permute.xlu0 %2549
        %2553 = vset.pattern.permute.xlu0 0
        %2554 = vperm.xlu0 %2553, %v2471
        %v2555 = vpop.permute.xlu0 %2554
        %v2557 = vsel %vm2485, %v2500, 0.0
        %v2558 = vsel %vm2486, %v2505, 0.0
        %v2559 = vsel %vm2487, %v2510, 0.0
        %v2560 = vsel %vm2488, %v2515, 0.0
        %v2561 = vsel %vm2489, %v2520, 0.0
        %v2562 = vsel %vm2490, %v2525, 0.0
        %v2563 = vsel %vm2491, %v2530, 0.0
        %v2564 = vsel %vm2492, %v2535, 0.0
        %v2565 = vsel %vm2493, %v2540, 0.0
        %v2566 = vsel %vm2494, %v2545, 0.0
        %v2567 = vsel %vm2495, %v2550, 0.0
        %v2568 = vsel %vm2496, %v2555, 0.0
        %vm2569 = vcmask 785408
        %v2570 = vsel %vm2569, %v2557, 0.0
        %v2571 = vsel %vm2569, %v2558, 0.0
        %v2572 = vadd.f32 %v2570, %v2571
        %v2573 = vsel %vm2569, %v2559, 0.0
        %v2574 = vadd.f32 %v2572, %v2573
        %v2575 = vsel %vm2569, %v2560, 0.0
        %v2576 = vadd.f32 %v2574, %v2575
        %v2577 = vsel %vm2569, %v2561, 0.0
        %v2578 = vadd.f32 %v2576, %v2577
        %v2579 = vsel %vm2569, %v2562, 0.0
        %v2580 = vadd.f32 %v2578, %v2579
        %v2581 = vsel %vm2569, %v2563, 0.0
        %v2582 = vadd.f32 %v2580, %v2581
        %v2583 = vsel %vm2569, %v2564, 0.0
        %v2584 = vadd.f32 %v2582, %v2583
        %v2585 = vsel %vm2569, %v2565, 0.0
        %v2586 = vadd.f32 %v2584, %v2585
        %v2587 = vsel %vm2569, %v2566, 0.0
        %v2588 = vadd.f32 %v2586, %v2587
        %v2589 = vsel %vm2569, %v2567, 0.0
        %v2590 = vadd.f32 %v2588, %v2589
        %v2591 = vsel %vm2569, %v2568, 0.0
        %v2592 = vadd.f32 %v2590, %v2591
        %v2593 = vrot.slane %v2592, 4
        %v2594 = vadd.f32 %v2592, %v2593
        %v2595 = vrot.slane %v2594, 2
        %v2596 = vadd.f32 %v2594, %v2595
        %v2597 = vrot.slane %v2596, 1
        %v2598 = vadd.f32 %v2596, %v2597
        %v2599 = vld [vmem:[%s12] sm:$0xff]
        %2601 = vrot.lane.b32.xlu0 %v2598, 96
        %v2602 = vpop.permute.xlu0 %2601
        %2604 = vrot.lane.b32.xlu0 %v2598, 64
        %v2605 = vpop.permute.xlu0 %2604
        %vm2607 = vcmask 1040384
        %v2608 = vsel %vm2607, %v2599, %v2598
        %vm2609 = vcmask 1041408
        %v2610 = vsel %vm2609, %v2608, %v2602
        %vm2611 = vcmask 1042432
        %v2612 = vsel %vm2611, %v2610, %v2605
        %v2613 = vpack.c.bf16 %v2612, %v2612
        %v2614 = vld [vmem:[%s5] sm:$0xf]
        %v2615 = vld [vmem:[%s5 + $0x4] sm:$0xf]
        %v2616 = vld [vmem:[%s5 + $0x8] sm:$0xf]
        %v2617 = vld [vmem:[%s5 + $0xc] sm:$0xf]
        %v2618 = vld [vmem:[%s6] sm:$0x1]
        %v2620 = vlaneseq
        %v2621 = vshrl.u32 %v2620, 7
        %v2622 = vsub.s32 0, %v2621
        %v2623 = vrot.slane %v2618, %v2622
        %v2629 = vunpack.c.l.b16 %v2614
        %v2630 = vunpack.c.l.b16 %v2615
        %v2631 = vunpack.c.l.b16 %v2616
        %v2632 = vunpack.c.l.b16 %v2617
        %v2633 = vpack.c.b16 %v2630, %v2629
        %v2634 = vpack.c.b16 %v2632, %v2631
        %vm2637 = vcmask 261120
        %v2639 = vsel %vm2637, %v2613, 0
        %2641 = vmatprep.subr.bf16.mxu0 0
        %2642 = vmatpush1.bf16.msra.mxu0 %v2633
        %2643 = vmatprep.subr.bf16.mxu0 0
        %2644 = vmatpush1.bf16.msra.mxu0 %v2634
        %2645 = vmatprep.subr.bf16.mxu0 0
        %2646 = vmatpush1.bf16.msra.mxu0 0
        %2647 = vmatprep.subr.bf16.mxu0 0
        %2648 = vmatpush1.bf16.msra.mxu0 0
        %2649 = vmatprep.subr.bf16.mxu0 0
        %2650 = vmatpush1.bf16.msra.mxu0 0
        %2651 = vmatprep.subr.bf16.mxu0 0
        %2652 = vmatpush1.bf16.msra.mxu0 0
        %2653 = vmatprep.subr.bf16.mxu0 0
        %2654 = vmatpush1.bf16.msra.mxu0 0
        %2655 = vmatprep.subr.bf16.mxu0 0
        %2656 = vmatpush1.bf16.msra.mxu0 0
        %2657 = vmatprep.subr.bf16.mxu0 0
        %2658 = vmatpush1.bf16.msra.mxu0 0
        %2659 = vmatprep.subr.bf16.mxu0 0
        %2660 = vmatpush1.bf16.msra.mxu0 0
        %2661 = vmatprep.subr.bf16.mxu0 0
        %2662 = vmatpush1.bf16.msra.mxu0 0
        %2663 = vmatprep.subr.bf16.mxu0 0
        %2664 = vmatpush1.bf16.msra.mxu0 0
        %2665 = vmatprep.subr.bf16.mxu0 0
        %2666 = vmatpush1.bf16.msra.mxu0 0
        %2667 = vmatprep.subr.bf16.mxu0 0
        %2668 = vmatpush1.bf16.msra.mxu0 0
        %2669 = vmatprep.subr.bf16.mxu0 0
        %2670 = vmatpush1.bf16.msra.mxu0 0
        %2671 = vmatprep.subr.bf16.mxu0 0
        %2672 = vmatpush1.bf16.msra.mxu0 0
        %2673 = vmatprep.mubr.bf16.mxu0 0
        %2674 = vmatmul.mubr.bf16.gmra.mrb[0].mxu0 %v2639
        %v2675 = vpop.f32.mrb[0].mxu0
        %v2676 = vadd.f32 %v2623, %v2675
        %v2677 = vpop.f32.mrb[0].mxu0
        %v2678 = vpop.f32.mrb[0].mxu0
        %v2679 = vpop.f32.mrb[0].mxu0
        %2680 = vdwg.mxu0
        %2682 = vrot.lane.b32.xlu0 %v2676, 96
        %v2683 = vpop.permute.xlu0 %2682
        %v2684 = vsel %vm2637, %v2676, 0
        %v2686 = vsel %vm2637, %v2683, 0
        %2688 = vmatprep.subr.mxu0 0.0
        %2689 = vmatpush1.xpose.msra.mxu0 %v2686
        %2690 = vmatprep.subr.mxu0 0.0
        %2691 = vmatpush1.xpose.msra.mxu0 0.0
        %2692 = vmatprep.subr.mxu0 0.0
        %2693 = vmatpush1.xpose.msra.mxu0 0.0
        %2694 = vmatprep.subr.mxu0 0.0
        %2695 = vmatpush1.xpose.msra.mxu0 0.0
        %2696 = vmatprep.subr.mxu0 0.0
        %2697 = vmatpush1.xpose.msra.mxu0 0.0
        %2698 = vmatprep.subr.mxu0 0.0
        %2699 = vmatpush1.xpose.msra.mxu0 0.0
        %2700 = vmatprep.subr.mxu0 0.0
        %2701 = vmatpush1.xpose.msra.mxu0 0.0
        %2702 = vmatprep.subr.mxu0 0.0
        %2703 = vmatpush1.xpose.msra.mxu0 0.0
        %2704 = vmatprep.subr.mxu0 0.0
        %2705 = vmatpush1.xpose.msra.mxu0 0.0
        %2706 = vmatprep.subr.mxu0 0.0
        %2707 = vmatpush1.xpose.msra.mxu0 0.0
        %2708 = vmatprep.subr.mxu0 0.0
        %2709 = vmatpush1.xpose.msra.mxu0 0.0
        %2710 = vmatprep.subr.mxu0 0.0
        %2711 = vmatpush1.xpose.msra.mxu0 0.0
        %2712 = vmatprep.subr.mxu0 0.0
        %2713 = vmatpush1.xpose.msra.mxu0 0.0
        %2714 = vmatprep.subr.mxu0 0.0
        %2715 = vmatpush1.xpose.msra.mxu0 0.0
        %2716 = vmatprep.subr.mxu0 0.0
        %2717 = vmatpush1.xpose.msra.mxu0 0.0
        %2718 = vmatprep.subr.mxu0 0.0
        %2719 = vmatpush1.xpose.msra.mxu0 0.0
        %2720 = vmatprep.subr.mxu0 0.0
        %2721 = vmatpush1.xpose.msra.mxu0 0.0
        %2722 = vmatprep.subr.mxu0 0.0
        %2723 = vmatpush1.xpose.msra.mxu0 0.0
        %2724 = vmatprep.subr.mxu0 0.0
        %2725 = vmatpush1.xpose.msra.mxu0 0.0
        %2726 = vmatprep.subr.mxu0 0.0
        %2727 = vmatpush1.xpose.msra.mxu0 0.0
        %2728 = vmatprep.subr.mxu0 0.0
        %2729 = vmatpush1.xpose.msra.mxu0 0.0
        %2730 = vmatprep.subr.mxu0 0.0
        %2731 = vmatpush1.xpose.msra.mxu0 0.0
        %2732 = vmatprep.subr.mxu0 0.0
        %2733 = vmatpush1.xpose.msra.mxu0 0.0
        %2734 = vmatprep.subr.mxu0 0.0
        %2735 = vmatpush1.xpose.msra.mxu0 0.0
        %2736 = vmatprep.subr.mxu0 0.0
        %2737 = vmatpush1.xpose.msra.mxu0 0.0
        %2738 = vmatprep.subr.mxu0 0.0
        %2739 = vmatpush1.xpose.msra.mxu0 0.0
        %2740 = vmatprep.subr.mxu0 0.0
        %2741 = vmatpush1.xpose.msra.mxu0 0.0
        %2742 = vmatprep.subr.mxu0 0.0
        %2743 = vmatpush1.xpose.msra.mxu0 0.0
        %2744 = vmatprep.subr.mxu0 0.0
        %2745 = vmatpush1.xpose.msra.mxu0 0.0
        %2746 = vmatprep.subr.mxu0 0.0
        %2747 = vmatpush1.xpose.msra.mxu0 0.0
        %2748 = vmatprep.subr.mxu0 0.0
        %2749 = vmatpush1.xpose.msra.mxu0 0.0
        %2750 = vmatprep.subr.mxu0 0.0
        %2751 = vmatpush1.xpose.msra.mxu0 0.0
        %2752 = vmatprep.mubr.f32.mxu0 0.0
        %2753 = vmatmul.mubr.f32.gmra.mrb[0].mxu0 %v2684
        %v2754 = vpop.f32.mrb[0].mxu0
        %v2755 = vadd.f32 0.0, %v2754
        %v2756 = vpop.f32.mrb[0].mxu0
        %2757 = vdwg.mxu0
        %v2758 = vmul.f32 %v2755, 0.17677669
        %vm2759 = vcmask 27648
        %v2760 = vsel %vm2759, %v2758, -inf
        %2761 = vmax.xlane.f32.xlu0 %v2760
        %v2762 = vpop.xlane.xlu0 %2761
        %v2763 = vsub.f32 %v2758, %v2762
        %v2764 = vmul.f32 %v2763, 1.442695
        %v2765 = vpow.pop %v2764
        %v2766 = vsel %vm2759, %v2765, 0.0
        %2767 = vadd.xlane.f32.xlu0 %v2766
        %v2768 = vpop.xlane.xlu0 %2767
        %v2769 = vrcp.pop %v2768
        %v2770 = vmul.f32 %v2765, %v2769
        %2771 = vrot.lane.b32.xlu0 %v2676, 64
        %v2772 = vpop.permute.xlu0 %2771
        %vm2773 = vcmask 31744
        %v2775 = vsel %vm2773, %v2770, 0
        %vm2777 = vcmask 1043456
        %v2778 = vsel %vm2777, %v2772, 0
        %2780 = vmatprep.subr.mxu0 0.0
        %2781 = vmatpush1.msra.mxu0 %v2778
        %2782 = vmatprep.subr.mxu0 0.0
        %2783 = vmatpush1.msra.mxu0 0.0
        %2784 = vmatprep.subr.mxu0 0.0
        %2785 = vmatpush1.msra.mxu0 0.0
        %2786 = vmatprep.subr.mxu0 0.0
        %2787 = vmatpush1.msra.mxu0 0.0
        %2788 = vmatprep.subr.mxu0 0.0
        %2789 = vmatpush1.msra.mxu0 0.0
        %2790 = vmatprep.subr.mxu0 0.0
        %2791 = vmatpush1.msra.mxu0 0.0
        %2792 = vmatprep.subr.mxu0 0.0
        %2793 = vmatpush1.msra.mxu0 0.0
        %2794 = vmatprep.subr.mxu0 0.0
        %2795 = vmatpush1.msra.mxu0 0.0
        %2796 = vmatprep.subr.mxu0 0.0
        %2797 = vmatpush1.msra.mxu0 0.0
        %2798 = vmatprep.subr.mxu0 0.0
        %2799 = vmatpush1.msra.mxu0 0.0
        %2800 = vmatprep.subr.mxu0 0.0
        %2801 = vmatpush1.msra.mxu0 0.0
        %2802 = vmatprep.subr.mxu0 0.0
        %2803 = vmatpush1.msra.mxu0 0.0
        %2804 = vmatprep.subr.mxu0 0.0
        %2805 = vmatpush1.msra.mxu0 0.0
        %2806 = vmatprep.subr.mxu0 0.0
        %2807 = vmatpush1.msra.mxu0 0.0
        %2808 = vmatprep.subr.mxu0 0.0
        %2809 = vmatpush1.msra.mxu0 0.0
        %2810 = vmatprep.subr.mxu0 0.0
        %2811 = vmatpush1.msra.mxu0 0.0
        %2812 = vmatprep.subr.mxu0 0.0
        %2813 = vmatpush1.msra.mxu0 0.0
        %2814 = vmatprep.subr.mxu0 0.0
        %2815 = vmatpush1.msra.mxu0 0.0
        %2816 = vmatprep.subr.mxu0 0.0
        %2817 = vmatpush1.msra.mxu0 0.0
        %2818 = vmatprep.subr.mxu0 0.0
        %2819 = vmatpush1.msra.mxu0 0.0
        %2820 = vmatprep.subr.mxu0 0.0
        %2821 = vmatpush1.msra.mxu0 0.0
        %2822 = vmatprep.subr.mxu0 0.0
        %2823 = vmatpush1.msra.mxu0 0.0
        %2824 = vmatprep.subr.mxu0 0.0
        %2825 = vmatpush1.msra.mxu0 0.0
        %2826 = vmatprep.subr.mxu0 0.0
        %2827 = vmatpush1.msra.mxu0 0.0
        %2828 = vmatprep.subr.mxu0 0.0
        %2829 = vmatpush1.msra.mxu0 0.0
        %2830 = vmatprep.subr.mxu0 0.0
        %2831 = vmatpush1.msra.mxu0 0.0
        %2832 = vmatprep.subr.mxu0 0.0
        %2833 = vmatpush1.msra.mxu0 0.0
        %2834 = vmatprep.subr.mxu0 0.0
        %2835 = vmatpush1.msra.mxu0 0.0
        %2836 = vmatprep.subr.mxu0 0.0
        %2837 = vmatpush1.msra.mxu0 0.0
        %2838 = vmatprep.subr.mxu0 0.0
        %2839 = vmatpush1.msra.mxu0 0.0
        %2840 = vmatprep.subr.mxu0 0.0
        %2841 = vmatpush1.msra.mxu0 0.0
        %2842 = vmatprep.subr.mxu0 0.0
        %2843 = vmatpush1.msra.mxu0 0.0
        %2844 = vmatprep.mubr.f32.mxu0 0.0
        %2845 = vmatmul.mubr.f32.gmra.mrb[0].mxu0 %v2775
        %v2846 = vpop.f32.mrb[0].mxu0
        %v2847 = vadd.f32 0.0, %v2846
        %v2848 = vpop.f32.mrb[0].mxu0
        %2849 = vdwg.mxu0
        %v2850 = vpack.c.bf16 %v2847, %v2847
        %v2851 = vld [vmem:[%s7] sm:$0xf]
        %v2852 = vld [vmem:[%s7 + $0x4] sm:$0xf]
        %v2853 = vld [vmem:[%s7 + $0x8] sm:$0xf]
        %v2854 = vld [vmem:[%s7 + $0xc] sm:$0xf]
        %v2855 = vlaneseq
        %v2856 = vshrl.u32 %v2855, 7
        %v2857 = vsub.s32 1, %v2856
        %v2858 = vrot.slane %v2599, %v2857
        %v2863 = vunpack.c.l.b16 %v2851
        %v2864 = vunpack.c.l.b16 %v2852
        %v2865 = vunpack.c.l.b16 %v2853
        %v2866 = vunpack.c.l.b16 %v2854
        %v2867 = vpack.c.b16 %v2864, %v2863
        %v2868 = vpack.c.b16 %v2866, %v2865
        %v2872 = vsel %vm2637, %v2850, 0
        %2874 = vmatprep.subr.bf16.mxu0 0
        %2875 = vmatpush1.bf16.msra.mxu0 %v2867
        %2876 = vmatprep.subr.bf16.mxu0 0
        %2877 = vmatpush1.bf16.msra.mxu0 %v2868
        %2878 = vmatprep.subr.bf16.mxu0 0
        %2879 = vmatpush1.bf16.msra.mxu0 0
        %2880 = vmatprep.subr.bf16.mxu0 0
        %2881 = vmatpush1.bf16.msra.mxu0 0
        %2882 = vmatprep.subr.bf16.mxu0 0
        %2883 = vmatpush1.bf16.msra.mxu0 0
        %2884 = vmatprep.subr.bf16.mxu0 0
        %2885 = vmatpush1.bf16.msra.mxu0 0
        %2886 = vmatprep.subr.bf16.mxu0 0
        %2887 = vmatpush1.bf16.msra.mxu0 0
        %2888 = vmatprep.subr.bf16.mxu0 0
        %2889 = vmatpush1.bf16.msra.mxu0 0
        %2890 = vmatprep.subr.bf16.mxu0 0
        %2891 = vmatpush1.bf16.msra.mxu0 0
        %2892 = vmatprep.subr.bf16.mxu0 0
        %2893 = vmatpush1.bf16.msra.mxu0 0
        %2894 = vmatprep.subr.bf16.mxu0 0
        %2895 = vmatpush1.bf16.msra.mxu0 0
        %2896 = vmatprep.subr.bf16.mxu0 0
        %2897 = vmatpush1.bf16.msra.mxu0 0
        %2898 = vmatprep.subr.bf16.mxu0 0
        %2899 = vmatpush1.bf16.msra.mxu0 0
        %2900 = vmatprep.subr.bf16.mxu0 0
        %2901 = vmatpush1.bf16.msra.mxu0 0
        %2902 = vmatprep.subr.bf16.mxu0 0
        %2903 = vmatpush1.bf16.msra.mxu0 0
        %2904 = vmatprep.subr.bf16.mxu0 0
        %2905 = vmatpush1.bf16.msra.mxu0 0
        %2906 = vmatprep.mubr.bf16.mxu0 0
        %2907 = vmatmul.mubr.bf16.gmra.mrb[0].mxu0 %v2872
        %v2908 = vpop.f32.mrb[0].mxu0
        %v2909 = vadd.f32 %v2858, %v2908
        %v2910 = vpop.f32.mrb[0].mxu0
        %v2911 = vpop.f32.mrb[0].mxu0
        %v2912 = vpop.f32.mrb[0].mxu0
        %2913 = vdwg.mxu0
        %v2914 = vadd.f32 %v2612, %v2909
        %vm2915 = vcmask 257024
        %v2916 = vsel %vm2915, %v2914, 0.0
        %2917 = vadd.xlane.f32.xlu0 %v2916
        %v2918 = vpop.xlane.xlu0 %2917
        %v2919 = vrcp.pop 32.0
        %v2920 = vmul.f32 %v2918, %v2919
        %v2921 = vsub.f32 %v2914, %v2920
        %v2922 = vmul.f32 %v2921, %v2921
        %v2923 = vsel %vm2915, %v2922, 0.0
        %2924 = vadd.xlane.f32.xlu0 %v2923
        %v2925 = vpop.xlane.xlu0 %2924
        %v2926 = vmul.f32 %v2925, %v2919
        %v2927 = vadd.f32 %v2926, 1e-05
        %v2928 = vrsqrt.pop %v2927
        %v2929 = vmul.f32 %v2921, %v2928
        %v2930 = vlaneseq
        %v2931 = vshrl.u32 %v2930, 7
        %v2932 = vsub.s32 2, %v2931
        %v2933 = vrot.slane %v2599, %v2932
        %v2934 = vmul.f32 %v2929, %v2933
        %v2935 = vlaneseq
        %v2936 = vshrl.u32 %v2935, 7
        %v2937 = vsub.s32 3, %v2936
        %v2938 = vrot.slane %v2599, %v2937
        %v2939 = vadd.f32 %v2934, %v2938
        %v2940 = vpack.c.bf16 %v2939, %v2939
        %v2941 = vld [vmem:[%s8] sm:$0xf]
        %v2942 = vld [vmem:[%s8 + $0x4] sm:$0xf]
        %v2943 = vld [vmem:[%s8 + $0x8] sm:$0xf]
        %v2944 = vld [vmem:[%s8 + $0xc] sm:$0xf]
        %v2945 = vld [vmem:[%s9] sm:$0x1]
        %v2947 = vlaneseq
        %v2948 = vshrl.u32 %v2947, 7
        %v2949 = vsub.s32 0, %v2948
        %v2950 = vrot.slane %v2945, %v2949
        %v2956 = vunpack.c.l.b16 %v2941
        %v2957 = vunpack.c.l.b16 %v2942
        %v2958 = vunpack.c.l.b16 %v2943
        %v2959 = vunpack.c.l.b16 %v2944
        %v2960 = vpack.c.b16 %v2957, %v2956
        %v2961 = vpack.c.b16 %v2959, %v2958
        %v2965 = vsel %vm2637, %v2940, 0
        %2967 = vmatprep.subr.bf16.mxu0 0
        %2968 = vmatpush1.bf16.msra.mxu0 %v2960
        %2969 = vmatprep.subr.bf16.mxu0 0
        %2970 = vmatpush1.bf16.msra.mxu0 %v2961
        %2971 = vmatprep.subr.bf16.mxu0 0
        %2972 = vmatpush1.bf16.msra.mxu0 0
        %2973 = vmatprep.subr.bf16.mxu0 0
        %2974 = vmatpush1.bf16.msra.mxu0 0
        %2975 = vmatprep.subr.bf16.mxu0 0
        %2976 = vmatpush1.bf16.msra.mxu0 0
        %2977 = vmatprep.subr.bf16.mxu0 0
        %2978 = vmatpush1.bf16.msra.mxu0 0
        %2979 = vmatprep.subr.bf16.mxu0 0
        %2980 = vmatpush1.bf16.msra.mxu0 0
        %2981 = vmatprep.subr.bf16.mxu0 0
        %2982 = vmatpush1.bf16.msra.mxu0 0
        %2983 = vmatprep.subr.bf16.mxu0 0
        %2984 = vmatpush1.bf16.msra.mxu0 0
        %2985 = vmatprep.subr.bf16.mxu0 0
        %2986 = vmatpush1.bf16.msra.mxu0 0
        %2987 = vmatprep.subr.bf16.mxu0 0
        %2988 = vmatpush1.bf16.msra.mxu0 0
        %2989 = vmatprep.subr.bf16.mxu0 0
        %2990 = vmatpush1.bf16.msra.mxu0 0
        %2991 = vmatprep.subr.bf16.mxu0 0
        %2992 = vmatpush1.bf16.msra.mxu0 0
        %2993 = vmatprep.subr.bf16.mxu0 0
        %2994 = vmatpush1.bf16.msra.mxu0 0
        %2995 = vmatprep.subr.bf16.mxu0 0
        %2996 = vmatpush1.bf16.msra.mxu0 0
        %2997 = vmatprep.subr.bf16.mxu0 0
        %2998 = vmatpush1.bf16.msra.mxu0 0
        %2999 = vmatprep.mubr.bf16.mxu0 0
        %3000 = vmatmul.mubr.bf16.gmra.mrb[0].mxu0 %v2965
        %v3001 = vpop.f32.mrb[0].mxu0
        %v3002 = vadd.f32 %v2950, %v3001
        %v3003 = vpop.f32.mrb[0].mxu0
        %v3004 = vpop.f32.mrb[0].mxu0
        %v3005 = vpop.f32.mrb[0].mxu0
        %3006 = vdwg.mxu0
        %v3007 = vmax.f32 %v3002, 0.0
        %v3008 = vpack.c.bf16 %v3007, %v3007
        %v3009 = vld [vmem:[%s10] sm:$0xf]
        %v3010 = vld [vmem:[%s10 + $0x4] sm:$0xf]
        %v3011 = vld [vmem:[%s10 + $0x8] sm:$0xf]
        %v3012 = vld [vmem:[%s10 + $0xc] sm:$0xf]
        %v3013 = vld [vmem:[%s10 + $0x10] sm:$0xf]
        %v3014 = vld [vmem:[%s10 + $0x14] sm:$0xf]
        %v3015 = vld [vmem:[%s10 + $0x18] sm:$0xf]
        %v3016 = vld [vmem:[%s10 + $0x1c] sm:$0xf]
        %v3017 = vlaneseq
        %v3018 = vshrl.u32 %v3017, 7
        %v3019 = vsub.s32 4, %v3018
        %v3020 = vrot.slane %v2599, %v3019
        %v3029 = vunpack.c.l.b16 %v3009
        %v3030 = vunpack.c.l.b16 %v3010
        %v3031 = vunpack.c.l.b16 %v3011
        %v3032 = vunpack.c.l.b16 %v3012
        %v3033 = vunpack.c.l.b16 %v3013
        %v3034 = vunpack.c.l.b16 %v3014
        %v3035 = vunpack.c.l.b16 %v3015
        %v3036 = vunpack.c.l.b16 %v3016
        %v3037 = vpack.c.b16 %v3030, %v3029
        %v3038 = vpack.c.b16 %v3032, %v3031
        %v3039 = vpack.c.b16 %v3034, %v3033
        %v3040 = vpack.c.b16 %v3036, %v3035
        %v3046 = vsel %vm1635, %v3008, 0
        %3048 = vmatprep.subr.bf16.mxu0 0
        %3049 = vmatpush1.bf16.msra.mxu0 %v3037
        %3050 = vmatprep.subr.bf16.mxu0 0
        %3051 = vmatpush1.bf16.msra.mxu0 %v3038
        %3052 = vmatprep.subr.bf16.mxu0 0
        %3053 = vmatpush1.bf16.msra.mxu0 %v3039
        %3054 = vmatprep.subr.bf16.mxu0 0
        %3055 = vmatpush1.bf16.msra.mxu0 %v3040
        %3056 = vmatprep.subr.bf16.mxu0 0
        %3057 = vmatpush1.bf16.msra.mxu0 0
        %3058 = vmatprep.subr.bf16.mxu0 0
        %3059 = vmatpush1.bf16.msra.mxu0 0
        %3060 = vmatprep.subr.bf16.mxu0 0
        %3061 = vmatpush1.bf16.msra.mxu0 0
        %3062 = vmatprep.subr.bf16.mxu0 0
        %3063 = vmatpush1.bf16.msra.mxu0 0
        %3064 = vmatprep.subr.bf16.mxu0 0
        %3065 = vmatpush1.bf16.msra.mxu0 0
        %3066 = vmatprep.subr.bf16.mxu0 0
        %3067 = vmatpush1.bf16.msra.mxu0 0
        %3068 = vmatprep.subr.bf16.mxu0 0
        %3069 = vmatpush1.bf16.msra.mxu0 0
        %3070 = vmatprep.subr.bf16.mxu0 0
        %3071 = vmatpush1.bf16.msra.mxu0 0
        %3072 = vmatprep.subr.bf16.mxu0 0
        %3073 = vmatpush1.bf16.msra.mxu0 0
        %3074 = vmatprep.subr.bf16.mxu0 0
        %3075 = vmatpush1.bf16.msra.mxu0 0
        %3076 = vmatprep.subr.bf16.mxu0 0
        %3077 = vmatpush1.bf16.msra.mxu0 0
        %3078 = vmatprep.subr.bf16.mxu0 0
        %3079 = vmatpush1.bf16.msra.mxu0 0
        %3080 = vmatprep.mubr.bf16.mxu0 0
        %3081 = vmatmul.mubr.bf16.gmra.mrb[0].mxu0 %v3046
        %v3082 = vpop.f32.mrb[0].mxu0
        %v3083 = vadd.f32 %v3020, %v3082
        %v3084 = vpop.f32.mrb[0].mxu0
        %v3085 = vpop.f32.mrb[0].mxu0
        %v3086 = vpop.f32.mrb[0].mxu0
        %3087 = vdwg.mxu0
        %v3088 = vadd.f32 %v2939, %v3083
        %v3089 = vsel %vm2915, %v3088, 0.0
        %3090 = vadd.xlane.f32.xlu0 %v3089
        %v3091 = vpop.xlane.xlu0 %3090
        %v3092 = vmul.f32 %v3091, %v2919
        %v3093 = vsub.f32 %v3088, %v3092
        %v3094 = vmul.f32 %v3093, %v3093
        %v3095 = vsel %vm2915, %v3094, 0.0
        %3096 = vadd.xlane.f32.xlu0 %v3095
        %v3097 = vpop.xlane.xlu0 %3096
        %v3098 = vmul.f32 %v3097, %v2919
        %v3099 = vadd.f32 %v3098, 1e-05
        %v3100 = vrsqrt.pop %v3099
        %v3101 = vmul.f32 %v3093, %v3100
        %v3102 = vlaneseq
        %v3103 = vshrl.u32 %v3102, 7
        %v3104 = vsub.s32 5, %v3103
        %v3105 = vrot.slane %v2599, %v3104
        %v3106 = vmul.f32 %v3101, %v3105
        %v3107 = vlaneseq
        %v3108 = vshrl.u32 %v3107, 7
        %v3109 = vsub.s32 6, %v3108
        %v3110 = vrot.slane %v2599, %v3109
        %v3111 = vadd.f32 %v3106, %v3110
        %v3112 = vsel %vm2915, %v3111, -inf
        %v3113 = vrot.slane %v3112, 4
        %v3114 = vmax.f32 %v3112, %v3113
        %v3115 = vrot.slane %v3114, 2
        %v3116 = vmax.f32 %v3114, %v3115
        %v3117 = vrot.slane %v3116, 1
        %v3118 = vmax.f32 %v3116, %v3117
        %v3119 = vpack.c.bf16 %v3118, %v3118
        %v3120 = vld [vmem:[%s11] sm:$0xf]
        %v3121 = vld [vmem:[%s11 + $0x4] sm:$0xf]
        %v3122 = vld [vmem:[%s11 + $0x8] sm:$0xf]
        %v3123 = vld [vmem:[%s11 + $0xc] sm:$0xf]
        %v3128 = vunpack.c.l.b16 %v3120
        %v3129 = vunpack.c.l.b16 %v3121
        %v3130 = vunpack.c.l.b16 %v3122
        %v3131 = vunpack.c.l.b16 %v3123
        %v3132 = vpack.c.b16 %v3129, %v3128
        %v3133 = vpack.c.b16 %v3131, %v3130
        %v3137 = vrot.slane %v2599, 7
        %v3140 = vsel %vm2637, %v3119, 0
        %3142 = vmatprep.subr.bf16.mxu0 0
        %3143 = vmatpush1.bf16.msra.mxu0 %v3132
        %3144 = vmatprep.subr.bf16.mxu0 0
        %3145 = vmatpush1.bf16.msra.mxu0 %v3133
        %3146 = vmatprep.subr.bf16.mxu0 0
        %3147 = vmatpush1.bf16.msra.mxu0 0
        %3148 = vmatprep.subr.bf16.mxu0 0
        %3149 = vmatpush1.bf16.msra.mxu0 0
        %3150 = vmatprep.subr.bf16.mxu0 0
        %3151 = vmatpush1.bf16.msra.mxu0 0
        %3152 = vmatprep.subr.bf16.mxu0 0
        %3153 = vmatpush1.bf16.msra.mxu0 0
        %3154 = vmatprep.subr.bf16.mxu0 0
        %3155 = vmatpush1.bf16.msra.mxu0 0
        %3156 = vmatprep.subr.bf16.mxu0 0
        %3157 = vmatpush1.bf16.msra.mxu0 0
        %3158 = vmatprep.subr.bf16.mxu0 0
        %3159 = vmatpush1.bf16.msra.mxu0 0
        %3160 = vmatprep.subr.bf16.mxu0 0
        %3161 = vmatpush1.bf16.msra.mxu0 0
        %3162 = vmatprep.subr.bf16.mxu0 0
        %3163 = vmatpush1.bf16.msra.mxu0 0
        %3164 = vmatprep.subr.bf16.mxu0 0
        %3165 = vmatpush1.bf16.msra.mxu0 0
        %3166 = vmatprep.subr.bf16.mxu0 0
        %3167 = vmatpush1.bf16.msra.mxu0 0
        %3168 = vmatprep.subr.bf16.mxu0 0
        %3169 = vmatpush1.bf16.msra.mxu0 0
        %3170 = vmatprep.subr.bf16.mxu0 0
        %3171 = vmatpush1.bf16.msra.mxu0 0
        %3172 = vmatprep.subr.bf16.mxu0 0
        %3173 = vmatpush1.bf16.msra.mxu0 0
        %3174 = vmatprep.mubr.bf16.mxu0 0
        %3175 = vmatmul.mubr.bf16.gmra.mrb[0].mxu0 %v3140
        %v3176 = vpop.f32.mrb[0].mxu0
        %v3177 = vadd.f32 %v3137, %v3176
        %v3178 = vpop.f32.mrb[0].mxu0
        %v3179 = vpop.f32.mrb[0].mxu0
        %v3180 = vpop.f32.mrb[0].mxu0
        %3181 = vdwg.mxu0
        %3182 = vst [vmem:[%s456] sm:$0x1] %v3177
      $region80: #{autoencoder_transpn_forward.2} parent=71 // pred_fallthru
        _
      %p3183 = scmp.lt.s32.totalorder %s28, 1
      %s3184 = scalar_select %p3183, %s28, 1
      %s3185 = scalar_lea.vmem %s13, %s3184
      // Predicated region
      $region81: #{autoencoder_transpn_forward.2} parent=71 // pred_check
        %p3186 = pneg %p334
      $region82: #{autoencoder_transpn_forward.2} parent=71 // pred_check_branch
        %3188 = sbr.rel (%p3186) target = $region84
      $region83: #{autoencoder_transpn_forward.2} parent=71 // pred_region
        _
      $region84: #{autoencoder_transpn_forward.2} parent=71 // pred_fallthru
        _
    $region72: #{autoencoder_transpn_forward.2} parent=5 // pred_fallthru
      _
    %p3189 = scmp.le.s32.totalorder 2, %s19
    // Predicated region
    $region85: #{autoencoder_transpn_forward.2} parent=5 // pred_check
      %p3190 = pneg %p3189
    $region86: #{autoencoder_transpn_forward.2} parent=5 // pred_check_branch
      %3192 = sbr.rel (%p3190) target = $region88
    $region87: #{autoencoder_transpn_forward.2} parent=5 // pred_region
      %s3193 = ssub.s32 %s19, 2
      // Predicated region
      $region89: #{autoencoder_transpn_forward.2} parent=87 // pred_check
        %p3194 = pneg %p340
      $region90: #{autoencoder_transpn_forward.2} parent=87 // pred_check_branch
        %3196 = sbr.rel (%p3194) target = $region92
      $region91: #{autoencoder_transpn_forward.2} parent=87 // pred_region
        %p3197 = scmp.lt.s32.totalorder %s30, 1
        %s3198 = scalar_select %p3197, %s30, 1
        %s3199 = scalar_lea.vmem %s13, %s3198
      $region92: #{autoencoder_transpn_forward.2} parent=87 // pred_fallthru
        _
    $region88: #{autoencoder_transpn_forward.2} parent=5 // pred_fallthru
      _
  $region6: #{autoencoder_transpn_forward.2} parent=0 // loop_footer
    %s23 = sadd.s32 1, %s19
  $region7: #{autoencoder_transpn_forward.2} parent=0 // loop_footer_branch
    %18 = sbr.rel target = $region3
  $region8: #{autoencoder_transpn_forward.2} parent=0 // loop_exit
    _

</llo_original>
